<compile_context>
chip_gen: v6e
topology: v6e:2x2x1
jax: 0.10.0
libtpu: 0.0.40
codegen_flags: <defaults>
</compile_context>

<pallas_src>
import math
from functools import partial

import jax
import jax.numpy as jnp
from jax.experimental import pallas as pl
from jax.experimental.pallas import tpu as pltpu

MM_DTYPE = jnp.bfloat16   # MXU operand dtype (accumulation stays f32)


def _select_tuning():
    """(vmem_limit_bytes, row_tile_cap) per TPU generation."""
    try:
        vmem_cap = pltpu.get_tpu_info().vmem_capacity_bytes
    except Exception:
        vmem_cap = None
    if vmem_cap is not None and vmem_cap >= 100 * 1024 * 1024:
        # v5e / v6e: 128 MiB VMEM -> bigger scoped limit + bigger row tiles.
        return 96 * 1024 * 1024, 512
    # v7x (64 MiB VMEM) or unknown: conservative.
    return 48 * 1024 * 1024, 256


VMEM_LIMIT, ROW_TILE_CAP = _select_tuning()


def _row_tile(m, cap):
    """Largest tile <= cap that divides m and is a multiple of 8, else m (full)."""
    for t in (512, 256, 128, 64, 32, 16, 8):
        if t <= cap and m % t == 0 and m >= t:
            return t
    return m


def _layernorm(h, gamma, beta, eps):
    mu = jnp.mean(h, axis=-1, keepdims=True)
    var = jnp.mean((h - mu) ** 2, axis=-1, keepdims=True)
    return (h - mu) * jax.lax.rsqrt(var + eps) * gamma + beta


# ----------------------------- fused per-layer kernel -----------------------------

def _layer_kernel(*refs, nhead, eps, fuse_input, seq_tile):
    # Fused encoder layer (post-LN):
    #   [optional input stage] -> Q/KV proj -> batched MHA -> out_proj -> +res -> LN1
    #   -> linear1 + ReLU + linear2 -> +res -> LN2
    if fuse_input:
        (x_ref, in_w_ref, in_b_ref, pe_ref,
         wq_ref, bq_ref, wkv_ref, bkv_ref, wo_ref, bo_ref, g1_ref, be1_ref,
         w1_ref, bf1_ref, w2_ref, bf2_ref, g2_ref, be2_ref, o_ref) = refs
    else:
        (x_ref,
         wq_ref, bq_ref, wkv_ref, bkv_ref, wo_ref, bo_ref, g1_ref, be1_ref,
         w1_ref, bf1_ref, w2_ref, bf2_ref, g2_ref, be2_ref, o_ref) = refs

    S = x_ref.shape[1]
    D = wo_ref.shape[0]
    Dh = D // nhead
    TQ = seq_tile
    mm = wq_ref.dtype

    # ---- input stage (first layer only): (t @ W_in + b_in)*sqrt(d) + PE.
    # sqrt(d_model) is pre-folded into W_in / b_in at parameter-prep time.
    if fuse_input:
        xr = x_ref[0].astype(mm)                                        # (S, Din)
        x = (jnp.dot(xr, in_w_ref[...], preferred_element_type=jnp.float32)
             + in_b_ref[...] + pe_ref[...])                             # (S, D) f32
    else:
        x = x_ref[0].astype(jnp.float32)                                # (S, D) f32

    # ---- query-row tile (residual + Q path); K/V use the full sequence.
    if TQ == S:
        x_q = x
    else:
        qi = pl.program_id(1)
        start = pl.multiple_of(qi * TQ, TQ)
        if fuse_input:
            xr_q = x_ref[0, pl.ds(start, TQ), :].astype(mm)
            x_q = (jnp.dot(xr_q, in_w_ref[...], preferred_element_type=jnp.float32)
                   + in_b_ref[...] + pe_ref[pl.ds(start, TQ), :])
        else:
            x_q = x_ref[0, pl.ds(start, TQ), :].astype(jnp.float32)

    # ---- attention: fused projections (1/sqrt(Dh) pre-folded into wq/bq).
    q = jnp.dot(x_q.astype(mm), wq_ref[...],
                preferred_element_type=jnp.float32) + bq_ref[...]        # (TQ, D)
    kv = jnp.dot(x.astype(mm), wkv_ref[...],
                 preferred_element_type=jnp.float32) + bkv_ref[...]      # (S, 2D)

    # Head-major tensors once (no per-head lane slices / concat).
    qh = pltpu.einshape("qhd->hqd", q.astype(mm).reshape(TQ, nhead, Dh))       # (H,TQ,Dh)
    kh = pltpu.einshape("khd->hkd", kv[:, :D].astype(mm).reshape(S, nhead, Dh))  # (H,S,Dh)
    vh = pltpu.einshape("khd->hkd", kv[:, D:].astype(mm).reshape(S, nhead, Dh))  # (H,S,Dh)

    s = jnp.einsum("hqd,hkd->hqk", qh, kh,
                   preferred_element_type=jnp.float32)                   # (H, TQ, S) f32
    m = jnp.max(s, axis=-1, keepdims=True)
    p = jnp.exp(s - m)
    l = jnp.sum(p, axis=-1, keepdims=True)
    p = p * pl.reciprocal(l, approx=True)                                # EUP, not VPU divide
    ctx = jnp.einsum("hqk,hkd->hqd", p.astype(mm), vh,
                     preferred_element_type=jnp.float32)                 # (H, TQ, Dh)
    ctx = pltpu.einshape("hqd->qhd", ctx.astype(mm)).reshape(TQ, D)      # back to (TQ, D)

    attn = jnp.dot(ctx, wo_ref[...],
                   preferred_element_type=jnp.float32) + bo_ref[...]
    h1 = _layernorm(x_q + attn, g1_ref[...], be1_ref[...], eps)          # norm1(x + attn)

    # ---- FFN (dropout = identity at inference)
    f = jnp.dot(h1.astype(mm), w1_ref[...],
                preferred_element_type=jnp.float32) + bf1_ref[...]       # (TQ, F)
    f = jnp.maximum(f, 0.0)
    y = jnp.dot(f.astype(mm), w2_ref[...],
                preferred_element_type=jnp.float32) + bf2_ref[...]       # (TQ, D)
    h2 = _layernorm(h1 + y, g2_ref[...], be2_ref[...], eps)              # norm2(h1 + ffn)

    o_ref[0] = h2.astype(o_ref.dtype)


# ----------------------------- wrapper -----------------------------

def encoder_layer_call(x, lp, *, nhead, eps, seq_tile, fuse_input=False,
                       in_w=None, in_b=None, pe=None,
                       out_dtype=jnp.bfloat16, vmem_limit=VMEM_LIMIT):
    B, S = x.shape[0], x.shape[1]
    D = lp["wo"].shape[0]
    F = lp["w1"].shape[1]
    TQ = seq_tile
    nq = S // TQ
    const = lambda bi, qi: (0, 0)

    in_specs, args = [], []
    if fuse_input:
        Din = x.shape[2]
        in_specs += [
            pl.BlockSpec((1, S, Din), lambda bi, qi: (bi, 0, 0)),
            pl.BlockSpec((Din, D), const),           # W_in (sqrt(d) folded), resident
            pl.BlockSpec((1, D), const),             # b_in (sqrt(d) folded)
            pl.BlockSpec((S, D), const),             # positional encoding
        ]
        args += [x, in_w, in_b, pe]
    else:
        in_specs += [pl.BlockSpec((1, S, D), lambda bi, qi: (bi, 0, 0))]
        args += [x]

    in_specs += [
        pl.BlockSpec((D, D), const),      # wq (1/sqrt(Dh) folded), resident
        pl.BlockSpec((1, D), const),      # bq
        pl.BlockSpec((D, 2 * D), const),  # wkv, resident
        pl.BlockSpec((1, 2 * D), const),  # bkv
        pl.BlockSpec((D, D), const),      # wo, resident
        pl.BlockSpec((1, D), const),      # bo
        pl.BlockSpec((1, D), const),      # ln1 gamma
        pl.BlockSpec((1, D), const),      # ln1 beta
        pl.BlockSpec((D, F), const),      # w1, resident
        pl.BlockSpec((1, F), const),      # b1
        pl.BlockSpec((F, D), const),      # w2, resident
        pl.BlockSpec((1, D), const),      # b2
        pl.BlockSpec((1, D), const),      # ln2 gamma
        pl.BlockSpec((1, D), const),      # ln2 beta
    ]
    args += [lp["wq"], lp["bq"], lp["wkv"], lp["bkv"], lp["wo"], lp["bo"],
             lp["ln1_g"], lp["ln1_b"], lp["w1"], lp["b1"], lp["w2"], lp["b2"],
             lp["ln2_g"], lp["ln2_b"]]

    return pl.pallas_call(
        partial(_layer_kernel, nhead=nhead, eps=eps,
                fuse_input=fuse_input, seq_tile=TQ),
        out_shape=jax.ShapeDtypeStruct((B, S, D), out_dtype),
        grid=(B, nq),
        in_specs=in_specs,
        out_specs=pl.BlockSpec((1, TQ, D), lambda bi, qi: (bi, qi, 0)),
        compiler_params=pltpu.CompilerParams(
            dimension_semantics=("parallel", "parallel"),
            vmem_limit_bytes=vmem_limit),
    )(*args)


# ----------------------------- model glue -----------------------------

def sinusoidal_pe(S, D):
    assert D % 2 == 0, "sinusoidal PE assumes even d_model"
    pos = jnp.arange(S, dtype=jnp.float32)[:, None]
    div = jnp.exp(jnp.arange(0, D, 2, dtype=jnp.float32) * (-math.log(10000.0) / D))
    pe = jnp.zeros((S, D), jnp.float32)
    pe = pe.at[:, 0::2].set(jnp.sin(pos * div))
    pe = pe.at[:, 1::2].set(jnp.cos(pos * div))
    return pe


def weather_encoder(x, params, *, d_model, nhead, eps=1e-5):
    B, S, _ = x.shape
    pe = sinusoidal_pe(S, d_model)
    TQ = _row_tile(S, ROW_TILE_CAP)
    n = len(params["layers"])
    h = x                                    # raw input; projection fused into layer 0
    for li, lp in enumerate(params["layers"]):
        h = encoder_layer_call(
            h, lp, nhead=nhead, eps=eps, seq_tile=TQ,
            fuse_input=(li == 0),
            in_w=params["in_w"] if li == 0 else None,
            in_b=params["in_b"] if li == 0 else None,
            pe=pe if li == 0 else None,
            # bf16 inter-layer activations (halves HBM traffic); final layer f32.
            out_dtype=jnp.float32 if li == n - 1 else jnp.bfloat16,
            vmem_limit=VMEM_LIMIT)
    return h


def init_params(key, ukmo_var_size, d_model, nhead, num_layers, dim_ff,
                w_dtype=MM_DTYPE):
    assert d_model % nhead == 0
    dh = d_model // nhead
    in_scale = math.sqrt(d_model)        # folded into input_proj at prep time
    q_scale = 1.0 / math.sqrt(dh)        # folded into Wq / bq at prep time

    def dense(k, din, dout, std=0.02, scale=1.0):
        return (scale * std * jax.random.normal(k, (din, dout), jnp.float32)).astype(w_dtype)

    keys = jax.random.split(key, 1 + num_layers)
    params = {
        "in_w": dense(keys[0], ukmo_var_size, d_model, scale=in_scale),
        "in_b": jnp.zeros((1, d_model), jnp.float32) * in_scale,
        "layers": [],
    }
    for li in range(num_layers):
        ks = jax.random.split(keys[1 + li], 4)
        lp = {
            "wq": dense(ks[0], d_model, d_model, scale=q_scale),   # pre-scaled Q proj
            "bq": jnp.zeros((1, d_model), jnp.float32) * q_scale,
            "wkv": dense(ks[1], d_model, 2 * d_model),             # fused Wk|Wv
            "bkv": jnp.zeros((1, 2 * d_model), jnp.float32),
            "wo": dense(ks[2], d_model, d_model),
            "bo": jnp.zeros((1, d_model), jnp.float32),
            "w1": dense(ks[3], d_model, dim_ff),
            "b1": jnp.zeros((1, dim_ff), jnp.float32),
            "w2": dense(jax.random.fold_in(ks[3], 1), dim_ff, d_model),
            "b2": jnp.zeros((1, d_model), jnp.float32),
            "ln1_g": jnp.ones((1, d_model), jnp.float32),
            "ln1_b": jnp.zeros((1, d_model), jnp.float32),
            "ln2_g": jnp.ones((1, d_model), jnp.float32),
            "ln2_b": jnp.zeros((1, d_model), jnp.float32),
        }
        params["layers"].append(lp)
    return params


if __name__ == "__main__":
    # Small demo shapes; d_model / dim_ff chosen 128-aligned (lane-dense) per review.
    B, S = 2, 8
    ukmo_var_size, d_model, nhead, num_layers, dim_ff = 4, 128, 4, 2, 256
    # dropout = 0.1 in the module; identity at inference (no RNG needed here).

    key = jax.random.PRNGKey(0)
    kp, kx = jax.random.split(key)
    params = init_params(kp, ukmo_var_size, d_model, nhead, num_layers, dim_ff)
    x = jax.random.normal(kx, (B, S, ukmo_var_size), jnp.float32)

    fwd = jax.jit(partial(weather_encoder, d_model=d_model, nhead=nhead))
    out = jax.block_until_ready(fwd(x, params))
    assert out.shape == (B, S, d_model)
    assert bool(jnp.all(jnp.isfinite(out)))
    print("KERNEL_OK")
</pallas_src>

<mosaic_0001>
module attributes {stable_mosaic.version = 11 : i64} {
  func.func @_layer_kernel(%arg0: i32, %arg1: i32, %arg2: memref<1x8x128xbf16, #tpu.memory_space<vmem>>, %arg3: memref<128x128xbf16, #tpu.memory_space<vmem>>, %arg4: memref<1x128xf32, #tpu.memory_space<vmem>>, %arg5: memref<128x256xbf16, #tpu.memory_space<vmem>>, %arg6: memref<1x256xf32, #tpu.memory_space<vmem>>, %arg7: memref<128x128xbf16, #tpu.memory_space<vmem>>, %arg8: memref<1x128xf32, #tpu.memory_space<vmem>>, %arg9: memref<1x128xf32, #tpu.memory_space<vmem>>, %arg10: memref<1x128xf32, #tpu.memory_space<vmem>>, %arg11: memref<128x256xbf16, #tpu.memory_space<vmem>>, %arg12: memref<1x256xf32, #tpu.memory_space<vmem>>, %arg13: memref<256x128xbf16, #tpu.memory_space<vmem>>, %arg14: memref<1x128xf32, #tpu.memory_space<vmem>>, %arg15: memref<1x128xf32, #tpu.memory_space<vmem>>, %arg16: memref<1x128xf32, #tpu.memory_space<vmem>>, %arg17: memref<1x8x128xf32, #tpu.memory_space<vmem>>) attributes {dimension_semantics = [#tpu.dimension_semantics<parallel>, #tpu.dimension_semantics<parallel>], iteration_bounds = array<i64: 2, 1>, scalar_prefetch = 0 : i64, scratch_operands = 0 : i64, tpu.core_type = #tpu.core_type<tc>, window_params = [{transform_indices = @transform_0, window_bounds = array<i64: 1, 8, 128>}, {pipeline_mode = #tpu.pipeline_mode<synchronous>, transform_indices = @transform_1, window_bounds = array<i64: 128, 128>}, {pipeline_mode = #tpu.pipeline_mode<synchronous>, transform_indices = @transform_2, window_bounds = array<i64: 1, 128>}, {pipeline_mode = #tpu.pipeline_mode<synchronous>, transform_indices = @transform_3, window_bounds = array<i64: 128, 256>}, {pipeline_mode = #tpu.pipeline_mode<synchronous>, transform_indices = @transform_4, window_bounds = array<i64: 1, 256>}, {pipeline_mode = #tpu.pipeline_mode<synchronous>, transform_indices = @transform_5, window_bounds = array<i64: 128, 128>}, {pipeline_mode = #tpu.pipeline_mode<synchronous>, transform_indices = @transform_6, window_bounds = array<i64: 1, 128>}, {pipeline_mode = #tpu.pipeline_mode<synchronous>, transform_indices = @transform_7, window_bounds = array<i64: 1, 128>}, {pipeline_mode = #tpu.pipeline_mode<synchronous>, transform_indices = @transform_8, window_bounds = array<i64: 1, 128>}, {pipeline_mode = #tpu.pipeline_mode<synchronous>, transform_indices = @transform_9, window_bounds = array<i64: 128, 256>}, {pipeline_mode = #tpu.pipeline_mode<synchronous>, transform_indices = @transform_10, window_bounds = array<i64: 1, 256>}, {pipeline_mode = #tpu.pipeline_mode<synchronous>, transform_indices = @transform_11, window_bounds = array<i64: 256, 128>}, {pipeline_mode = #tpu.pipeline_mode<synchronous>, transform_indices = @transform_12, window_bounds = array<i64: 1, 128>}, {pipeline_mode = #tpu.pipeline_mode<synchronous>, transform_indices = @transform_13, window_bounds = array<i64: 1, 128>}, {pipeline_mode = #tpu.pipeline_mode<synchronous>, transform_indices = @transform_14, window_bounds = array<i64: 1, 128>}, {transform_indices = @transform_15, window_bounds = array<i64: 1, 8, 128>}]} {
    %c0 = arith.constant 0 : index
    %c0_0 = arith.constant 0 : index
    %c0_1 = arith.constant 0 : index
    %0 = vector.load %arg2[%c0, %c0_0, %c0_1] : memref<1x8x128xbf16, #tpu.memory_space<vmem>>, vector<1x8x128xbf16>
    %1 = vector.shape_cast %0 : vector<1x8x128xbf16> to vector<8x128xbf16>
    %2 = arith.extf %1 : vector<8x128xbf16> to vector<8x128xf32>
    %3 = arith.truncf %2 : vector<8x128xf32> to vector<8x128xbf16>
    %c0_2 = arith.constant 0 : index
    %c0_3 = arith.constant 0 : index
    %4 = vector.load %arg3[%c0_2, %c0_3] : memref<128x128xbf16, #tpu.memory_space<vmem>>, vector<128x128xbf16>
    %cst = arith.constant dense<0.000000e+00> : vector<8x128xf32>
    %5 = tpu.matmul %3, %4, %cst {dimension_numbers = #tpu.dot_dimension_numbers<[1], [0], [0], [1], [0, 0, 1, 1], [], []>} : vector<8x128xbf16>, vector<128x128xbf16>, vector<8x128xf32> -> vector<8x128xf32>
    %c0_4 = arith.constant 0 : index
    %c0_5 = arith.constant 0 : index
    %6 = vector.load %arg4[%c0_4, %c0_5] : memref<1x128xf32, #tpu.memory_space<vmem>>, vector<1x128xf32>
    %7 = vector.broadcast %6 : vector<1x128xf32> to vector<8x128xf32>
    %8 = arith.addf %5, %7 : vector<8x128xf32>
    %9 = arith.truncf %2 : vector<8x128xf32> to vector<8x128xbf16>
    %c0_6 = arith.constant 0 : index
    %c0_7 = arith.constant 0 : index
    %10 = vector.load %arg5[%c0_6, %c0_7] : memref<128x256xbf16, #tpu.memory_space<vmem>>, vector<128x256xbf16>
    %cst_8 = arith.constant dense<0.000000e+00> : vector<8x256xf32>
    %11 = tpu.matmul %9, %10, %cst_8 {dimension_numbers = #tpu.dot_dimension_numbers<[1], [0], [0], [1], [0, 0, 1, 1], [], []>} : vector<8x128xbf16>, vector<128x256xbf16>, vector<8x256xf32> -> vector<8x256xf32>
    %c0_9 = arith.constant 0 : index
    %c0_10 = arith.constant 0 : index
    %12 = vector.load %arg6[%c0_9, %c0_10] : memref<1x256xf32, #tpu.memory_space<vmem>>, vector<1x256xf32>
    %13 = vector.broadcast %12 : vector<1x256xf32> to vector<8x256xf32>
    %14 = arith.addf %11, %13 : vector<8x256xf32>
    %15 = arith.truncf %8 : vector<8x128xf32> to vector<8x128xbf16>
    %16 = vector.shape_cast %15 : vector<8x128xbf16> to vector<8x4x32xbf16>
    %17 = tpu.transpose %16, [1, 0, 2] : vector<8x4x32xbf16> -> vector<4x8x32xbf16>
    %18 = vector.extract_strided_slice %14 {offsets = [0, 0], sizes = [8, 128], strides = [1, 1]} : vector<8x256xf32> to vector<8x128xf32>
    %19 = arith.truncf %18 : vector<8x128xf32> to vector<8x128xbf16>
    %20 = vector.shape_cast %19 : vector<8x128xbf16> to vector<8x4x32xbf16>
    %21 = tpu.transpose %20, [1, 0, 2] : vector<8x4x32xbf16> -> vector<4x8x32xbf16>
    %22 = vector.extract_strided_slice %14 {offsets = [0, 128], sizes = [8, 128], strides = [1, 1]} : vector<8x256xf32> to vector<8x128xf32>
    %23 = arith.truncf %22 : vector<8x128xf32> to vector<8x128xbf16>
    %24 = vector.shape_cast %23 : vector<8x128xbf16> to vector<8x4x32xbf16>
    %25 = tpu.transpose %24, [1, 0, 2] : vector<8x4x32xbf16> -> vector<4x8x32xbf16>
    "tpu.trace_start"() <{level = 10 : i32, message = "hqd,hkd->hqk"}> : () -> ()
    %cst_11 = arith.constant dense<0.000000e+00> : vector<4x8x8xf32>
    %26 = tpu.matmul %17, %21, %cst_11 {dimension_numbers = #tpu.dot_dimension_numbers<[2], [2], [1], [1], [0, 0, 0, 1, 1, 1], [0], [0]>} : vector<4x8x32xbf16>, vector<4x8x32xbf16>, vector<4x8x8xf32> -> vector<4x8x8xf32>
    "tpu.trace_stop"() : () -> ()
    %cst_12 = arith.constant dense<0xFF800000> : vector<4x8xf32>
    %27 = vector.multi_reduction <maximumf>, %26, %cst_12 [2] : vector<4x8x8xf32> to vector<4x8xf32>
    %28 = vector.shape_cast %27 : vector<4x8xf32> to vector<4x8x1xf32>
    %29 = vector.broadcast %28 : vector<4x8x1xf32> to vector<4x8x8xf32>
    %30 = arith.subf %26, %29 : vector<4x8x8xf32>
    %31 = math.exp %30 : vector<4x8x8xf32>
    %cst_13 = arith.constant dense<0.000000e+00> : vector<4x8xf32>
    %32 = vector.multi_reduction <add>, %31, %cst_13 [2] : vector<4x8x8xf32> to vector<4x8xf32>
    %33 = vector.shape_cast %32 : vector<4x8xf32> to vector<4x8x1xf32>
    %34 = tpu.reciprocal %33 {approx = true} : vector<4x8x1xf32> -> vector<4x8x1xf32>
    %35 = vector.broadcast %34 : vector<4x8x1xf32> to vector<4x8x8xf32>
    %36 = arith.mulf %31, %35 : vector<4x8x8xf32>
    %37 = arith.truncf %36 : vector<4x8x8xf32> to vector<4x8x8xbf16>
    "tpu.trace_start"() <{level = 10 : i32, message = "hqk,hkd->hqd"}> : () -> ()
    %cst_14 = arith.constant dense<0.000000e+00> : vector<4x8x32xf32>
    %38 = tpu.matmul %37, %25, %cst_14 {dimension_numbers = #tpu.dot_dimension_numbers<[2], [1], [1], [2], [0, 0, 0, 1, 1, 2], [0], [0]>} : vector<4x8x8xbf16>, vector<4x8x32xbf16>, vector<4x8x32xf32> -> vector<4x8x32xf32>
    "tpu.trace_stop"() : () -> ()
    %39 = arith.truncf %38 : vector<4x8x32xf32> to vector<4x8x32xbf16>
    %40 = tpu.transpose %39, [1, 0, 2] : vector<4x8x32xbf16> -> vector<8x4x32xbf16>
    %41 = vector.shape_cast %40 : vector<8x4x32xbf16> to vector<8x128xbf16>
    %c0_15 = arith.constant 0 : index
    %c0_16 = arith.constant 0 : index
    %42 = vector.load %arg7[%c0_15, %c0_16] : memref<128x128xbf16, #tpu.memory_space<vmem>>, vector<128x128xbf16>
    %cst_17 = arith.constant dense<0.000000e+00> : vector<8x128xf32>
    %43 = tpu.matmul %41, %42, %cst_17 {dimension_numbers = #tpu.dot_dimension_numbers<[1], [0], [0], [1], [0, 0, 1, 1], [], []>} : vector<8x128xbf16>, vector<128x128xbf16>, vector<8x128xf32> -> vector<8x128xf32>
    %c0_18 = arith.constant 0 : index
    %c0_19 = arith.constant 0 : index
    %44 = vector.load %arg8[%c0_18, %c0_19] : memref<1x128xf32, #tpu.memory_space<vmem>>, vector<1x128xf32>
    %45 = vector.broadcast %44 : vector<1x128xf32> to vector<8x128xf32>
    %46 = arith.addf %43, %45 : vector<8x128xf32>
    %47 = arith.addf %2, %46 : vector<8x128xf32>
    %c0_20 = arith.constant 0 : index
    %c0_21 = arith.constant 0 : index
    %48 = vector.load %arg9[%c0_20, %c0_21] : memref<1x128xf32, #tpu.memory_space<vmem>>, vector<1x128xf32>
    %c0_22 = arith.constant 0 : index
    %c0_23 = arith.constant 0 : index
    %49 = vector.load %arg10[%c0_22, %c0_23] : memref<1x128xf32, #tpu.memory_space<vmem>>, vector<1x128xf32>
    %cst_24 = arith.constant dense<0.000000e+00> : vector<8xf32>
    %50 = vector.multi_reduction <add>, %47, %cst_24 [1] : vector<8x128xf32> to vector<8xf32>
    %51 = vector.shape_cast %50 : vector<8xf32> to vector<8x1xf32>
    %cst_25 = arith.constant 1.280000e+02 : f32
    %52 = vector.broadcast %cst_25 : f32 to vector<8x1xf32>
    %53 = arith.divf %51, %52 : vector<8x1xf32>
    %54 = vector.broadcast %53 : vector<8x1xf32> to vector<8x128xf32>
    %55 = arith.subf %47, %54 : vector<8x128xf32>
    %56 = arith.mulf %55, %55 : vector<8x128xf32>
    %cst_26 = arith.constant dense<0.000000e+00> : vector<8xf32>
    %57 = vector.multi_reduction <add>, %56, %cst_26 [1] : vector<8x128xf32> to vector<8xf32>
    %58 = vector.shape_cast %57 : vector<8xf32> to vector<8x1xf32>
    %cst_27 = arith.constant 1.280000e+02 : f32
    %59 = vector.broadcast %cst_27 : f32 to vector<8x1xf32>
    %60 = arith.divf %58, %59 : vector<8x1xf32>
    %61 = vector.broadcast %53 : vector<8x1xf32> to vector<8x128xf32>
    %62 = arith.subf %47, %61 : vector<8x128xf32>
    %cst_28 = arith.constant 9.99999974E-6 : f32
    %63 = vector.broadcast %cst_28 : f32 to vector<8x1xf32>
    %64 = arith.addf %60, %63 : vector<8x1xf32>
    %65 = math.rsqrt %64 : vector<8x1xf32>
    %66 = vector.broadcast %65 : vector<8x1xf32> to vector<8x128xf32>
    %67 = arith.mulf %62, %66 : vector<8x128xf32>
    %68 = vector.broadcast %48 : vector<1x128xf32> to vector<8x128xf32>
    %69 = arith.mulf %67, %68 : vector<8x128xf32>
    %70 = vector.broadcast %49 : vector<1x128xf32> to vector<8x128xf32>
    %71 = arith.addf %69, %70 : vector<8x128xf32>
    %72 = arith.truncf %71 : vector<8x128xf32> to vector<8x128xbf16>
    %c0_29 = arith.constant 0 : index
    %c0_30 = arith.constant 0 : index
    %73 = vector.load %arg11[%c0_29, %c0_30] : memref<128x256xbf16, #tpu.memory_space<vmem>>, vector<128x256xbf16>
    %cst_31 = arith.constant dense<0.000000e+00> : vector<8x256xf32>
    %74 = tpu.matmul %72, %73, %cst_31 {dimension_numbers = #tpu.dot_dimension_numbers<[1], [0], [0], [1], [0, 0, 1, 1], [], []>} : vector<8x128xbf16>, vector<128x256xbf16>, vector<8x256xf32> -> vector<8x256xf32>
    %c0_32 = arith.constant 0 : index
    %c0_33 = arith.constant 0 : index
    %75 = vector.load %arg12[%c0_32, %c0_33] : memref<1x256xf32, #tpu.memory_space<vmem>>, vector<1x256xf32>
    %76 = vector.broadcast %75 : vector<1x256xf32> to vector<8x256xf32>
    %77 = arith.addf %74, %76 : vector<8x256xf32>
    %cst_34 = arith.constant 0.000000e+00 : f32
    %78 = vector.broadcast %cst_34 : f32 to vector<8x256xf32>
    %79 = arith.maximumf %77, %78 : vector<8x256xf32>
    %80 = arith.truncf %79 : vector<8x256xf32> to vector<8x256xbf16>
    %c0_35 = arith.constant 0 : index
    %c0_36 = arith.constant 0 : index
    %81 = vector.load %arg13[%c0_35, %c0_36] : memref<256x128xbf16, #tpu.memory_space<vmem>>, vector<256x128xbf16>
    %cst_37 = arith.constant dense<0.000000e+00> : vector<8x128xf32>
    %82 = tpu.matmul %80, %81, %cst_37 {dimension_numbers = #tpu.dot_dimension_numbers<[1], [0], [0], [1], [0, 0, 1, 1], [], []>} : vector<8x256xbf16>, vector<256x128xbf16>, vector<8x128xf32> -> vector<8x128xf32>
    %c0_38 = arith.constant 0 : index
    %c0_39 = arith.constant 0 : index
    %83 = vector.load %arg14[%c0_38, %c0_39] : memref<1x128xf32, #tpu.memory_space<vmem>>, vector<1x128xf32>
    %84 = vector.broadcast %83 : vector<1x128xf32> to vector<8x128xf32>
    %85 = arith.addf %82, %84 : vector<8x128xf32>
    %86 = arith.addf %71, %85 : vector<8x128xf32>
    %c0_40 = arith.constant 0 : index
    %c0_41 = arith.constant 0 : index
    %87 = vector.load %arg15[%c0_40, %c0_41] : memref<1x128xf32, #tpu.memory_space<vmem>>, vector<1x128xf32>
    %c0_42 = arith.constant 0 : index
    %c0_43 = arith.constant 0 : index
    %88 = vector.load %arg16[%c0_42, %c0_43] : memref<1x128xf32, #tpu.memory_space<vmem>>, vector<1x128xf32>
    %cst_44 = arith.constant dense<0.000000e+00> : vector<8xf32>
    %89 = vector.multi_reduction <add>, %86, %cst_44 [1] : vector<8x128xf32> to vector<8xf32>
    %90 = vector.shape_cast %89 : vector<8xf32> to vector<8x1xf32>
    %cst_45 = arith.constant 1.280000e+02 : f32
    %91 = vector.broadcast %cst_45 : f32 to vector<8x1xf32>
    %92 = arith.divf %90, %91 : vector<8x1xf32>
    %93 = vector.broadcast %92 : vector<8x1xf32> to vector<8x128xf32>
    %94 = arith.subf %86, %93 : vector<8x128xf32>
    %95 = arith.mulf %94, %94 : vector<8x128xf32>
    %cst_46 = arith.constant dense<0.000000e+00> : vector<8xf32>
    %96 = vector.multi_reduction <add>, %95, %cst_46 [1] : vector<8x128xf32> to vector<8xf32>
    %97 = vector.shape_cast %96 : vector<8xf32> to vector<8x1xf32>
    %cst_47 = arith.constant 1.280000e+02 : f32
    %98 = vector.broadcast %cst_47 : f32 to vector<8x1xf32>
    %99 = arith.divf %97, %98 : vector<8x1xf32>
    %100 = vector.broadcast %92 : vector<8x1xf32> to vector<8x128xf32>
    %101 = arith.subf %86, %100 : vector<8x128xf32>
    %cst_48 = arith.constant 9.99999974E-6 : f32
    %102 = vector.broadcast %cst_48 : f32 to vector<8x1xf32>
    %103 = arith.addf %99, %102 : vector<8x1xf32>
    %104 = math.rsqrt %103 : vector<8x1xf32>
    %105 = vector.broadcast %104 : vector<8x1xf32> to vector<8x128xf32>
    %106 = arith.mulf %101, %105 : vector<8x128xf32>
    %107 = vector.broadcast %87 : vector<1x128xf32> to vector<8x128xf32>
    %108 = arith.mulf %106, %107 : vector<8x128xf32>
    %109 = vector.broadcast %88 : vector<1x128xf32> to vector<8x128xf32>
    %110 = arith.addf %108, %109 : vector<8x128xf32>
    %c0_49 = arith.constant 0 : index
    %c0_50 = arith.constant 0 : index
    %c0_51 = arith.constant 0 : index
    %111 = vector.load %arg17[%c0_49, %c0_50, %c0_51] : memref<1x8x128xf32, #tpu.memory_space<vmem>>, vector<1x8x128xf32>
    %112 = vector.shape_cast %111 : vector<1x8x128xf32> to vector<8x128xf32>
    %113 = vector.shape_cast %110 : vector<8x128xf32> to vector<1x8x128xf32>
    tpu.vector_store %arg17[%c0_49, %c0_50, %c0_51], %113 {strides = array<i32>} : memref<1x8x128xf32, #tpu.memory_space<vmem>>, vector<1x8x128xf32>,
    return
  }
  func.func @transform_0(%arg0: i32, %arg1: i32) -> (i32, i32, i32) {
    %c0_i32 = arith.constant 0 : i32
    %c0_i32_0 = arith.constant 0 : i32
    %c0_i32_1 = arith.constant 0 : i32
    return %arg0, %c0_i32, %c0_i32_0 : i32, i32, i32
  }
  func.func @transform_1(%arg0: i32, %arg1: i32) -> (i32, i32) {
    %c0_i32 = arith.constant 0 : i32
    %c0_i32_0 = arith.constant 0 : i32
    %c0_i32_1 = arith.constant 0 : i32
    return %c0_i32, %c0_i32_0 : i32, i32
  }
  func.func @transform_2(%arg0: i32, %arg1: i32) -> (i32, i32) {
    %c0_i32 = arith.constant 0 : i32
    %c0_i32_0 = arith.constant 0 : i32
    %c0_i32_1 = arith.constant 0 : i32
    return %c0_i32, %c0_i32_0 : i32, i32
  }
  func.func @transform_3(%arg0: i32, %arg1: i32) -> (i32, i32) {
    %c0_i32 = arith.constant 0 : i32
    %c0_i32_0 = arith.constant 0 : i32
    %c0_i32_1 = arith.constant 0 : i32
    return %c0_i32, %c0_i32_0 : i32, i32
  }
  func.func @transform_4(%arg0: i32, %arg1: i32) -> (i32, i32) {
    %c0_i32 = arith.constant 0 : i32
    %c0_i32_0 = arith.constant 0 : i32
    %c0_i32_1 = arith.constant 0 : i32
    return %c0_i32, %c0_i32_0 : i32, i32
  }
  func.func @transform_5(%arg0: i32, %arg1: i32) -> (i32, i32) {
    %c0_i32 = arith.constant 0 : i32
    %c0_i32_0 = arith.constant 0 : i32
    %c0_i32_1 = arith.constant 0 : i32
    return %c0_i32, %c0_i32_0 : i32, i32
  }
  func.func @transform_6(%arg0: i32, %arg1: i32) -> (i32, i32) {
    %c0_i32 = arith.constant 0 : i32
    %c0_i32_0 = arith.constant 0 : i32
    %c0_i32_1 = arith.constant 0 : i32
    return %c0_i32, %c0_i32_0 : i32, i32
  }
  func.func @transform_7(%arg0: i32, %arg1: i32) -> (i32, i32) {
    %c0_i32 = arith.constant 0 : i32
    %c0_i32_0 = arith.constant 0 : i32
    %c0_i32_1 = arith.constant 0 : i32
    return %c0_i32, %c0_i32_0 : i32, i32
  }
  func.func @transform_8(%arg0: i32, %arg1: i32) -> (i32, i32) {
    %c0_i32 = arith.constant 0 : i32
    %c0_i32_0 = arith.constant 0 : i32
    %c0_i32_1 = arith.constant 0 : i32
    return %c0_i32, %c0_i32_0 : i32, i32
  }
  func.func @transform_9(%arg0: i32, %arg1: i32) -> (i32, i32) {
    %c0_i32 = arith.constant 0 : i32
    %c0_i32_0 = arith.constant 0 : i32
    %c0_i32_1 = arith.constant 0 : i32
    return %c0_i32, %c0_i32_0 : i32, i32
  }
  func.func @transform_10(%arg0: i32, %arg1: i32) -> (i32, i32) {
    %c0_i32 = arith.constant 0 : i32
    %c0_i32_0 = arith.constant 0 : i32
    %c0_i32_1 = arith.constant 0 : i32
    return %c0_i32, %c0_i32_0 : i32, i32
  }
  func.func @transform_11(%arg0: i32, %arg1: i32) -> (i32, i32) {
    %c0_i32 = arith.constant 0 : i32
    %c0_i32_0 = arith.constant 0 : i32
    %c0_i32_1 = arith.constant 0 : i32
    return %c0_i32, %c0_i32_0 : i32, i32
  }
  func.func @transform_12(%arg0: i32, %arg1: i32) -> (i32, i32) {
    %c0_i32 = arith.constant 0 : i32
    %c0_i32_0 = arith.constant 0 : i32
    %c0_i32_1 = arith.constant 0 : i32
    return %c0_i32, %c0_i32_0 : i32, i32
  }
  func.func @transform_13(%arg0: i32, %arg1: i32) -> (i32, i32) {
    %c0_i32 = arith.constant 0 : i32
    %c0_i32_0 = arith.constant 0 : i32
    %c0_i32_1 = arith.constant 0 : i32
    return %c0_i32, %c0_i32_0 : i32, i32
  }
  func.func @transform_14(%arg0: i32, %arg1: i32) -> (i32, i32) {
    %c0_i32 = arith.constant 0 : i32
    %c0_i32_0 = arith.constant 0 : i32
    %c0_i32_1 = arith.constant 0 : i32
    return %c0_i32, %c0_i32_0 : i32, i32
  }
  func.func @transform_15(%arg0: i32, %arg1: i32) -> (i32, i32, i32) {
    %c0_i32 = arith.constant 0 : i32
    %c0_i32_0 = arith.constant 0 : i32
    return %arg0, %arg1, %c0_i32 : i32, i32, i32
  }
}

module attributes {stable_mosaic.version = 11 : i64} {
  func.func @_layer_kernel(%arg0: i32, %arg1: i32, %arg2: memref<1x8x4xf32, #tpu.memory_space<vmem>>, %arg3: memref<4x128xbf16, #tpu.memory_space<vmem>>, %arg4: memref<1x128xf32, #tpu.memory_space<vmem>>, %arg5: memref<8x128xf32, #tpu.memory_space<vmem>>, %arg6: memref<128x128xbf16, #tpu.memory_space<vmem>>, %arg7: memref<1x128xf32, #tpu.memory_space<vmem>>, %arg8: memref<128x256xbf16, #tpu.memory_space<vmem>>, %arg9: memref<1x256xf32, #tpu.memory_space<vmem>>, %arg10: memref<128x128xbf16, #tpu.memory_space<vmem>>, %arg11: memref<1x128xf32, #tpu.memory_space<vmem>>, %arg12: memref<1x128xf32, #tpu.memory_space<vmem>>, %arg13: memref<1x128xf32, #tpu.memory_space<vmem>>, %arg14: memref<128x256xbf16, #tpu.memory_space<vmem>>, %arg15: memref<1x256xf32, #tpu.memory_space<vmem>>, %arg16: memref<256x128xbf16, #tpu.memory_space<vmem>>, %arg17: memref<1x128xf32, #tpu.memory_space<vmem>>, %arg18: memref<1x128xf32, #tpu.memory_space<vmem>>, %arg19: memref<1x128xf32, #tpu.memory_space<vmem>>, %arg20: memref<1x8x128xbf16, #tpu.memory_space<vmem>>) attributes {dimension_semantics = [#tpu.dimension_semantics<parallel>, #tpu.dimension_semantics<parallel>], iteration_bounds = array<i64: 2, 1>, scalar_prefetch = 0 : i64, scratch_operands = 0 : i64, tpu.core_type = #tpu.core_type<tc>, window_params = [{transform_indices = @transform_0, window_bounds = array<i64: 1, 8, 4>}, {pipeline_mode = #tpu.pipeline_mode<synchronous>, transform_indices = @transform_1, window_bounds = array<i64: 4, 128>}, {pipeline_mode = #tpu.pipeline_mode<synchronous>, transform_indices = @transform_2, window_bounds = array<i64: 1, 128>}, {pipeline_mode = #tpu.pipeline_mode<synchronous>, transform_indices = @transform_3, window_bounds = array<i64: 8, 128>}, {pipeline_mode = #tpu.pipeline_mode<synchronous>, transform_indices = @transform_4, window_bounds = array<i64: 128, 128>}, {pipeline_mode = #tpu.pipeline_mode<synchronous>, transform_indices = @transform_5, window_bounds = array<i64: 1, 128>}, {pipeline_mode = #tpu.pipeline_mode<synchronous>, transform_indices = @transform_6, window_bounds = array<i64: 128, 256>}, {pipeline_mode = #tpu.pipeline_mode<synchronous>, transform_indices = @transform_7, window_bounds = array<i64: 1, 256>}, {pipeline_mode = #tpu.pipeline_mode<synchronous>, transform_indices = @transform_8, window_bounds = array<i64: 128, 128>}, {pipeline_mode = #tpu.pipeline_mode<synchronous>, transform_indices = @transform_9, window_bounds = array<i64: 1, 128>}, {pipeline_mode = #tpu.pipeline_mode<synchronous>, transform_indices = @transform_10, window_bounds = array<i64: 1, 128>}, {pipeline_mode = #tpu.pipeline_mode<synchronous>, transform_indices = @transform_11, window_bounds = array<i64: 1, 128>}, {pipeline_mode = #tpu.pipeline_mode<synchronous>, transform_indices = @transform_12, window_bounds = array<i64: 128, 256>}, {pipeline_mode = #tpu.pipeline_mode<synchronous>, transform_indices = @transform_13, window_bounds = array<i64: 1, 256>}, {pipeline_mode = #tpu.pipeline_mode<synchronous>, transform_indices = @transform_14, window_bounds = array<i64: 256, 128>}, {pipeline_mode = #tpu.pipeline_mode<synchronous>, transform_indices = @transform_15, window_bounds = array<i64: 1, 128>}, {pipeline_mode = #tpu.pipeline_mode<synchronous>, transform_indices = @transform_16, window_bounds = array<i64: 1, 128>}, {pipeline_mode = #tpu.pipeline_mode<synchronous>, transform_indices = @transform_17, window_bounds = array<i64: 1, 128>}, {transform_indices = @transform_18, window_bounds = array<i64: 1, 8, 128>}]} {
    %c0 = arith.constant 0 : index
    %c0_0 = arith.constant 0 : index
    %c0_1 = arith.constant 0 : index
    %0 = vector.load %arg2[%c0, %c0_0, %c0_1] : memref<1x8x4xf32, #tpu.memory_space<vmem>>, vector<1x8x4xf32>
    %1 = vector.shape_cast %0 : vector<1x8x4xf32> to vector<8x4xf32>
    %2 = arith.truncf %1 : vector<8x4xf32> to vector<8x4xbf16>
    %c0_2 = arith.constant 0 : index
    %c0_3 = arith.constant 0 : index
    %3 = vector.load %arg3[%c0_2, %c0_3] : memref<4x128xbf16, #tpu.memory_space<vmem>>, vector<4x128xbf16>
    %cst = arith.constant dense<0.000000e+00> : vector<8x128xf32>
    %4 = tpu.matmul %2, %3, %cst {dimension_numbers = #tpu.dot_dimension_numbers<[1], [0], [0], [1], [0, 0, 1, 1], [], []>} : vector<8x4xbf16>, vector<4x128xbf16>, vector<8x128xf32> -> vector<8x128xf32>
    %c0_4 = arith.constant 0 : index
    %c0_5 = arith.constant 0 : index
    %5 = vector.load %arg4[%c0_4, %c0_5] : memref<1x128xf32, #tpu.memory_space<vmem>>, vector<1x128xf32>
    %6 = vector.broadcast %5 : vector<1x128xf32> to vector<8x128xf32>
    %7 = arith.addf %4, %6 : vector<8x128xf32>
    %c0_6 = arith.constant 0 : index
    %c0_7 = arith.constant 0 : index
    %8 = vector.load %arg5[%c0_6, %c0_7] : memref<8x128xf32, #tpu.memory_space<vmem>>, vector<8x128xf32>
    %9 = arith.addf %7, %8 : vector<8x128xf32>
    %10 = arith.truncf %9 : vector<8x128xf32> to vector<8x128xbf16>
    %c0_8 = arith.constant 0 : index
    %c0_9 = arith.constant 0 : index
    %11 = vector.load %arg6[%c0_8, %c0_9] : memref<128x128xbf16, #tpu.memory_space<vmem>>, vector<128x128xbf16>
    %cst_10 = arith.constant dense<0.000000e+00> : vector<8x128xf32>
    %12 = tpu.matmul %10, %11, %cst_10 {dimension_numbers = #tpu.dot_dimension_numbers<[1], [0], [0], [1], [0, 0, 1, 1], [], []>} : vector<8x128xbf16>, vector<128x128xbf16>, vector<8x128xf32> -> vector<8x128xf32>
    %c0_11 = arith.constant 0 : index
    %c0_12 = arith.constant 0 : index
    %13 = vector.load %arg7[%c0_11, %c0_12] : memref<1x128xf32, #tpu.memory_space<vmem>>, vector<1x128xf32>
    %14 = vector.broadcast %13 : vector<1x128xf32> to vector<8x128xf32>
    %15 = arith.addf %12, %14 : vector<8x128xf32>
    %16 = arith.truncf %9 : vector<8x128xf32> to vector<8x128xbf16>
    %c0_13 = arith.constant 0 : index
    %c0_14 = arith.constant 0 : index
    %17 = vector.load %arg8[%c0_13, %c0_14] : memref<128x256xbf16, #tpu.memory_space<vmem>>, vector<128x256xbf16>
    %cst_15 = arith.constant dense<0.000000e+00> : vector<8x256xf32>
    %18 = tpu.matmul %16, %17, %cst_15 {dimension_numbers = #tpu.dot_dimension_numbers<[1], [0], [0], [1], [0, 0, 1, 1], [], []>} : vector<8x128xbf16>, vector<128x256xbf16>, vector<8x256xf32> -> vector<8x256xf32>
    %c0_16 = arith.constant 0 : index
    %c0_17 = arith.constant 0 : index
    %19 = vector.load %arg9[%c0_16, %c0_17] : memref<1x256xf32, #tpu.memory_space<vmem>>, vector<1x256xf32>
    %20 = vector.broadcast %19 : vector<1x256xf32> to vector<8x256xf32>
    %21 = arith.addf %18, %20 : vector<8x256xf32>
    %22 = arith.truncf %15 : vector<8x128xf32> to vector<8x128xbf16>
    %23 = vector.shape_cast %22 : vector<8x128xbf16> to vector<8x4x32xbf16>
    %24 = tpu.transpose %23, [1, 0, 2] : vector<8x4x32xbf16> -> vector<4x8x32xbf16>
    %25 = vector.extract_strided_slice %21 {offsets = [0, 0], sizes = [8, 128], strides = [1, 1]} : vector<8x256xf32> to vector<8x128xf32>
    %26 = arith.truncf %25 : vector<8x128xf32> to vector<8x128xbf16>
    %27 = vector.shape_cast %26 : vector<8x128xbf16> to vector<8x4x32xbf16>
    %28 = tpu.transpose %27, [1, 0, 2] : vector<8x4x32xbf16> -> vector<4x8x32xbf16>
    %29 = vector.extract_strided_slice %21 {offsets = [0, 128], sizes = [8, 128], strides = [1, 1]} : vector<8x256xf32> to vector<8x128xf32>
    %30 = arith.truncf %29 : vector<8x128xf32> to vector<8x128xbf16>
    %31 = vector.shape_cast %30 : vector<8x128xbf16> to vector<8x4x32xbf16>
    %32 = tpu.transpose %31, [1, 0, 2] : vector<8x4x32xbf16> -> vector<4x8x32xbf16>
    "tpu.trace_start"() <{level = 10 : i32, message = "hqd,hkd->hqk"}> : () -> ()
    %cst_18 = arith.constant dense<0.000000e+00> : vector<4x8x8xf32>
    %33 = tpu.matmul %24, %28, %cst_18 {dimension_numbers = #tpu.dot_dimension_numbers<[2], [2], [1], [1], [0, 0, 0, 1, 1, 1], [0], [0]>} : vector<4x8x32xbf16>, vector<4x8x32xbf16>, vector<4x8x8xf32> -> vector<4x8x8xf32>
    "tpu.trace_stop"() : () -> ()
    %cst_19 = arith.constant dense<0xFF800000> : vector<4x8xf32>
    %34 = vector.multi_reduction <maximumf>, %33, %cst_19 [2] : vector<4x8x8xf32> to vector<4x8xf32>
    %35 = vector.shape_cast %34 : vector<4x8xf32> to vector<4x8x1xf32>
    %36 = vector.broadcast %35 : vector<4x8x1xf32> to vector<4x8x8xf32>
    %37 = arith.subf %33, %36 : vector<4x8x8xf32>
    %38 = math.exp %37 : vector<4x8x8xf32>
    %cst_20 = arith.constant dense<0.000000e+00> : vector<4x8xf32>
    %39 = vector.multi_reduction <add>, %38, %cst_20 [2] : vector<4x8x8xf32> to vector<4x8xf32>
    %40 = vector.shape_cast %39 : vector<4x8xf32> to vector<4x8x1xf32>
    %41 = tpu.reciprocal %40 {approx = true} : vector<4x8x1xf32> -> vector<4x8x1xf32>
    %42 = vector.broadcast %41 : vector<4x8x1xf32> to vector<4x8x8xf32>
    %43 = arith.mulf %38, %42 : vector<4x8x8xf32>
    %44 = arith.truncf %43 : vector<4x8x8xf32> to vector<4x8x8xbf16>
    "tpu.trace_start"() <{level = 10 : i32, message = "hqk,hkd->hqd"}> : () -> ()
    %cst_21 = arith.constant dense<0.000000e+00> : vector<4x8x32xf32>
    %45 = tpu.matmul %44, %32, %cst_21 {dimension_numbers = #tpu.dot_dimension_numbers<[2], [1], [1], [2], [0, 0, 0, 1, 1, 2], [0], [0]>} : vector<4x8x8xbf16>, vector<4x8x32xbf16>, vector<4x8x32xf32> -> vector<4x8x32xf32>
    "tpu.trace_stop"() : () -> ()
    %46 = arith.truncf %45 : vector<4x8x32xf32> to vector<4x8x32xbf16>
    %47 = tpu.transpose %46, [1, 0, 2] : vector<4x8x32xbf16> -> vector<8x4x32xbf16>
    %48 = vector.shape_cast %47 : vector<8x4x32xbf16> to vector<8x128xbf16>
    %c0_22 = arith.constant 0 : index
    %c0_23 = arith.constant 0 : index
    %49 = vector.load %arg10[%c0_22, %c0_23] : memref<128x128xbf16, #tpu.memory_space<vmem>>, vector<128x128xbf16>
    %cst_24 = arith.constant dense<0.000000e+00> : vector<8x128xf32>
    %50 = tpu.matmul %48, %49, %cst_24 {dimension_numbers = #tpu.dot_dimension_numbers<[1], [0], [0], [1], [0, 0, 1, 1], [], []>} : vector<8x128xbf16>, vector<128x128xbf16>, vector<8x128xf32> -> vector<8x128xf32>
    %c0_25 = arith.constant 0 : index
    %c0_26 = arith.constant 0 : index
    %51 = vector.load %arg11[%c0_25, %c0_26] : memref<1x128xf32, #tpu.memory_space<vmem>>, vector<1x128xf32>
    %52 = vector.broadcast %51 : vector<1x128xf32> to vector<8x128xf32>
    %53 = arith.addf %50, %52 : vector<8x128xf32>
    %54 = arith.addf %9, %53 : vector<8x128xf32>
    %c0_27 = arith.constant 0 : index
    %c0_28 = arith.constant 0 : index
    %55 = vector.load %arg12[%c0_27, %c0_28] : memref<1x128xf32, #tpu.memory_space<vmem>>, vector<1x128xf32>
    %c0_29 = arith.constant 0 : index
    %c0_30 = arith.constant 0 : index
    %56 = vector.load %arg13[%c0_29, %c0_30] : memref<1x128xf32, #tpu.memory_space<vmem>>, vector<1x128xf32>
    %cst_31 = arith.constant dense<0.000000e+00> : vector<8xf32>
    %57 = vector.multi_reduction <add>, %54, %cst_31 [1] : vector<8x128xf32> to vector<8xf32>
    %58 = vector.shape_cast %57 : vector<8xf32> to vector<8x1xf32>
    %cst_32 = arith.constant 1.280000e+02 : f32
    %59 = vector.broadcast %cst_32 : f32 to vector<8x1xf32>
    %60 = arith.divf %58, %59 : vector<8x1xf32>
    %61 = vector.broadcast %60 : vector<8x1xf32> to vector<8x128xf32>
    %62 = arith.subf %54, %61 : vector<8x128xf32>
    %63 = arith.mulf %62, %62 : vector<8x128xf32>
    %cst_33 = arith.constant dense<0.000000e+00> : vector<8xf32>
    %64 = vector.multi_reduction <add>, %63, %cst_33 [1] : vector<8x128xf32> to vector<8xf32>
    %65 = vector.shape_cast %64 : vector<8xf32> to vector<8x1xf32>
    %cst_34 = arith.constant 1.280000e+02 : f32
    %66 = vector.broadcast %cst_34 : f32 to vector<8x1xf32>
    %67 = arith.divf %65, %66 : vector<8x1xf32>
    %68 = vector.broadcast %60 : vector<8x1xf32> to vector<8x128xf32>
    %69 = arith.subf %54, %68 : vector<8x128xf32>
    %cst_35 = arith.constant 9.99999974E-6 : f32
    %70 = vector.broadcast %cst_35 : f32 to vector<8x1xf32>
    %71 = arith.addf %67, %70 : vector<8x1xf32>
    %72 = math.rsqrt %71 : vector<8x1xf32>
    %73 = vector.broadcast %72 : vector<8x1xf32> to vector<8x128xf32>
    %74 = arith.mulf %69, %73 : vector<8x128xf32>
    %75 = vector.broadcast %55 : vector<1x128xf32> to vector<8x128xf32>
    %76 = arith.mulf %74, %75 : vector<8x128xf32>
    %77 = vector.broadcast %56 : vector<1x128xf32> to vector<8x128xf32>
    %78 = arith.addf %76, %77 : vector<8x128xf32>
    %79 = arith.truncf %78 : vector<8x128xf32> to vector<8x128xbf16>
    %c0_36 = arith.constant 0 : index
    %c0_37 = arith.constant 0 : index
    %80 = vector.load %arg14[%c0_36, %c0_37] : memref<128x256xbf16, #tpu.memory_space<vmem>>, vector<128x256xbf16>
    %cst_38 = arith.constant dense<0.000000e+00> : vector<8x256xf32>
    %81 = tpu.matmul %79, %80, %cst_38 {dimension_numbers = #tpu.dot_dimension_numbers<[1], [0], [0], [1], [0, 0, 1, 1], [], []>} : vector<8x128xbf16>, vector<128x256xbf16>, vector<8x256xf32> -> vector<8x256xf32>
    %c0_39 = arith.constant 0 : index
    %c0_40 = arith.constant 0 : index
    %82 = vector.load %arg15[%c0_39, %c0_40] : memref<1x256xf32, #tpu.memory_space<vmem>>, vector<1x256xf32>
    %83 = vector.broadcast %82 : vector<1x256xf32> to vector<8x256xf32>
    %84 = arith.addf %81, %83 : vector<8x256xf32>
    %cst_41 = arith.constant 0.000000e+00 : f32
    %85 = vector.broadcast %cst_41 : f32 to vector<8x256xf32>
    %86 = arith.maximumf %84, %85 : vector<8x256xf32>
    %87 = arith.truncf %86 : vector<8x256xf32> to vector<8x256xbf16>
    %c0_42 = arith.constant 0 : index
    %c0_43 = arith.constant 0 : index
    %88 = vector.load %arg16[%c0_42, %c0_43] : memref<256x128xbf16, #tpu.memory_space<vmem>>, vector<256x128xbf16>
    %cst_44 = arith.constant dense<0.000000e+00> : vector<8x128xf32>
    %89 = tpu.matmul %87, %88, %cst_44 {dimension_numbers = #tpu.dot_dimension_numbers<[1], [0], [0], [1], [0, 0, 1, 1], [], []>} : vector<8x256xbf16>, vector<256x128xbf16>, vector<8x128xf32> -> vector<8x128xf32>
    %c0_45 = arith.constant 0 : index
    %c0_46 = arith.constant 0 : index
    %90 = vector.load %arg17[%c0_45, %c0_46] : memref<1x128xf32, #tpu.memory_space<vmem>>, vector<1x128xf32>
    %91 = vector.broadcast %90 : vector<1x128xf32> to vector<8x128xf32>
    %92 = arith.addf %89, %91 : vector<8x128xf32>
    %93 = arith.addf %78, %92 : vector<8x128xf32>
    %c0_47 = arith.constant 0 : index
    %c0_48 = arith.constant 0 : index
    %94 = vector.load %arg18[%c0_47, %c0_48] : memref<1x128xf32, #tpu.memory_space<vmem>>, vector<1x128xf32>
    %c0_49 = arith.constant 0 : index
    %c0_50 = arith.constant 0 : index
    %95 = vector.load %arg19[%c0_49, %c0_50] : memref<1x128xf32, #tpu.memory_space<vmem>>, vector<1x128xf32>
    %cst_51 = arith.constant dense<0.000000e+00> : vector<8xf32>
    %96 = vector.multi_reduction <add>, %93, %cst_51 [1] : vector<8x128xf32> to vector<8xf32>
    %97 = vector.shape_cast %96 : vector<8xf32> to vector<8x1xf32>
    %cst_52 = arith.constant 1.280000e+02 : f32
    %98 = vector.broadcast %cst_52 : f32 to vector<8x1xf32>
    %99 = arith.divf %97, %98 : vector<8x1xf32>
    %100 = vector.broadcast %99 : vector<8x1xf32> to vector<8x128xf32>
    %101 = arith.subf %93, %100 : vector<8x128xf32>
    %102 = arith.mulf %101, %101 : vector<8x128xf32>
    %cst_53 = arith.constant dense<0.000000e+00> : vector<8xf32>
    %103 = vector.multi_reduction <add>, %102, %cst_53 [1] : vector<8x128xf32> to vector<8xf32>
    %104 = vector.shape_cast %103 : vector<8xf32> to vector<8x1xf32>
    %cst_54 = arith.constant 1.280000e+02 : f32
    %105 = vector.broadcast %cst_54 : f32 to vector<8x1xf32>
    %106 = arith.divf %104, %105 : vector<8x1xf32>
    %107 = vector.broadcast %99 : vector<8x1xf32> to vector<8x128xf32>
    %108 = arith.subf %93, %107 : vector<8x128xf32>
    %cst_55 = arith.constant 9.99999974E-6 : f32
    %109 = vector.broadcast %cst_55 : f32 to vector<8x1xf32>
    %110 = arith.addf %106, %109 : vector<8x1xf32>
    %111 = math.rsqrt %110 : vector<8x1xf32>
    %112 = vector.broadcast %111 : vector<8x1xf32> to vector<8x128xf32>
    %113 = arith.mulf %108, %112 : vector<8x128xf32>
    %114 = vector.broadcast %94 : vector<1x128xf32> to vector<8x128xf32>
    %115 = arith.mulf %113, %114 : vector<8x128xf32>
    %116 = vector.broadcast %95 : vector<1x128xf32> to vector<8x128xf32>
    %117 = arith.addf %115, %116 : vector<8x128xf32>
    %118 = arith.truncf %117 : vector<8x128xf32> to vector<8x128xbf16>
    %c0_56 = arith.constant 0 : index
    %c0_57 = arith.constant 0 : index
    %c0_58 = arith.constant 0 : index
    %119 = vector.load %arg20[%c0_56, %c0_57, %c0_58] : memref<1x8x128xbf16, #tpu.memory_space<vmem>>, vector<1x8x128xbf16>
    %120 = vector.shape_cast %119 : vector<1x8x128xbf16> to vector<8x128xbf16>
    %121 = vector.shape_cast %118 : vector<8x128xbf16> to vector<1x8x128xbf16>
    tpu.vector_store %arg20[%c0_56, %c0_57, %c0_58], %121 {strides = array<i32>} : memref<1x8x128xbf16, #tpu.memory_space<vmem>>, vector<1x8x128xbf16>,
    return
  }
  func.func @transform_0(%arg0: i32, %arg1: i32) -> (i32, i32, i32) {
    %c0_i32 = arith.constant 0 : i32
    %c0_i32_0 = arith.constant 0 : i32
    %c0_i32_1 = arith.constant 0 : i32
    return %arg0, %c0_i32, %c0_i32_0 : i32, i32, i32
  }
  func.func @transform_1(%arg0: i32, %arg1: i32) -> (i32, i32) {
    %c0_i32 = arith.constant 0 : i32
    %c0_i32_0 = arith.constant 0 : i32
    %c0_i32_1 = arith.constant 0 : i32
    return %c0_i32, %c0_i32_0 : i32, i32
  }
  func.func @transform_2(%arg0: i32, %arg1: i32) -> (i32, i32) {
    %c0_i32 = arith.constant 0 : i32
    %c0_i32_0 = arith.constant 0 : i32
    %c0_i32_1 = arith.constant 0 : i32
    return %c0_i32, %c0_i32_0 : i32, i32
  }
  func.func @transform_3(%arg0: i32, %arg1: i32) -> (i32, i32) {
    %c0_i32 = arith.constant 0 : i32
    %c0_i32_0 = arith.constant 0 : i32
    %c0_i32_1 = arith.constant 0 : i32
    return %c0_i32, %c0_i32_0 : i32, i32
  }
  func.func @transform_4(%arg0: i32, %arg1: i32) -> (i32, i32) {
    %c0_i32 = arith.constant 0 : i32
    %c0_i32_0 = arith.constant 0 : i32
    %c0_i32_1 = arith.constant 0 : i32
    return %c0_i32, %c0_i32_0 : i32, i32
  }
  func.func @transform_5(%arg0: i32, %arg1: i32) -> (i32, i32) {
    %c0_i32 = arith.constant 0 : i32
    %c0_i32_0 = arith.constant 0 : i32
    %c0_i32_1 = arith.constant 0 : i32
    return %c0_i32, %c0_i32_0 : i32, i32
  }
  func.func @transform_6(%arg0: i32, %arg1: i32) -> (i32, i32) {
    %c0_i32 = arith.constant 0 : i32
    %c0_i32_0 = arith.constant 0 : i32
    %c0_i32_1 = arith.constant 0 : i32
    return %c0_i32, %c0_i32_0 : i32, i32
  }
  func.func @transform_7(%arg0: i32, %arg1: i32) -> (i32, i32) {
    %c0_i32 = arith.constant 0 : i32
    %c0_i32_0 = arith.constant 0 : i32
    %c0_i32_1 = arith.constant 0 : i32
    return %c0_i32, %c0_i32_0 : i32, i32
  }
  func.func @transform_8(%arg0: i32, %arg1: i32) -> (i32, i32) {
    %c0_i32 = arith.constant 0 : i32
    %c0_i32_0 = arith.constant 0 : i32
    %c0_i32_1 = arith.constant 0 : i32
    return %c0_i32, %c0_i32_0 : i32, i32
  }
  func.func @transform_9(%arg0: i32, %arg1: i32) -> (i32, i32) {
    %c0_i32 = arith.constant 0 : i32
    %c0_i32_0 = arith.constant 0 : i32
    %c0_i32_1 = arith.constant 0 : i32
    return %c0_i32, %c0_i32_0 : i32, i32
  }
  func.func @transform_10(%arg0: i32, %arg1: i32) -> (i32, i32) {
    %c0_i32 = arith.constant 0 : i32
    %c0_i32_0 = arith.constant 0 : i32
    %c0_i32_1 = arith.constant 0 : i32
    return %c0_i32, %c0_i32_0 : i32, i32
  }
  func.func @transform_11(%arg0: i32, %arg1: i32) -> (i32, i32) {
    %c0_i32 = arith.constant 0 : i32
    %c0_i32_0 = arith.constant 0 : i32
    %c0_i32_1 = arith.constant 0 : i32
    return %c0_i32, %c0_i32_0 : i32, i32
  }
  func.func @transform_12(%arg0: i32, %arg1: i32) -> (i32, i32) {
    %c0_i32 = arith.constant 0 : i32
    %c0_i32_0 = arith.constant 0 : i32
    %c0_i32_1 = arith.constant 0 : i32
    return %c0_i32, %c0_i32_0 : i32, i32
  }
  func.func @transform_13(%arg0: i32, %arg1: i32) -> (i32, i32) {
    %c0_i32 = arith.constant 0 : i32
    %c0_i32_0 = arith.constant 0 : i32
    %c0_i32_1 = arith.constant 0 : i32
    return %c0_i32, %c0_i32_0 : i32, i32
  }
  func.func @transform_14(%arg0: i32, %arg1: i32) -> (i32, i32) {
    %c0_i32 = arith.constant 0 : i32
    %c0_i32_0 = arith.constant 0 : i32
    %c0_i32_1 = arith.constant 0 : i32
    return %c0_i32, %c0_i32_0 : i32, i32
  }
  func.func @transform_15(%arg0: i32, %arg1: i32) -> (i32, i32) {
    %c0_i32 = arith.constant 0 : i32
    %c0_i32_0 = arith.constant 0 : i32
    %c0_i32_1 = arith.constant 0 : i32
    return %c0_i32, %c0_i32_0 : i32, i32
  }
  func.func @transform_16(%arg0: i32, %arg1: i32) -> (i32, i32) {
    %c0_i32 = arith.constant 0 : i32
    %c0_i32_0 = arith.constant 0 : i32
    %c0_i32_1 = arith.constant 0 : i32
    return %c0_i32, %c0_i32_0 : i32, i32
  }
  func.func @transform_17(%arg0: i32, %arg1: i32) -> (i32, i32) {
    %c0_i32 = arith.constant 0 : i32
    %c0_i32_0 = arith.constant 0 : i32
    %c0_i32_1 = arith.constant 0 : i32
    return %c0_i32, %c0_i32_0 : i32, i32
  }
  func.func @transform_18(%arg0: i32, %arg1: i32) -> (i32, i32, i32) {
    %c0_i32 = arith.constant 0 : i32
    %c0_i32_0 = arith.constant 0 : i32
    return %arg0, %arg1, %c0_i32 : i32, i32, i32
  }
}

</mosaic_0001>

<llo_original>
// kernel: weather_encoder.2
$region0: #{weather_encoder.2}
  #allocation0 [shape = 'u32[]', space=smem, size = 0x4, offset = 0x4, fixed_abs, tag = 'smem constant byte address 0x4 - core index']
  #allocation1 [shape = 'u32[144,128]{1,0:T(1,128)}', space=vmem, size = 0x12000, scoped, tag = 'internal scratch']
  %s0 = inlined_call_operand.vmem [shape: f32[2,8,4], index: 0, kind: input, shape index: {}]
  %s1 = inlined_call_operand.vmem [shape: bf16[4,128], index: 1, kind: input, shape index: {}]
  %s2 = inlined_call_operand.vmem [shape: f32[1,128], index: 2, kind: input, shape index: {}]
  %s3 = inlined_call_operand.vmem [shape: f32[8,128], index: 3, kind: input, shape index: {}]
  %s4 = inlined_call_operand.vmem [shape: bf16[128,128], index: 4, kind: input, shape index: {}]
  %s5 = inlined_call_operand.hbm [shape: f32[1,128], index: 5, kind: input, shape index: {}]
  %s6 = inlined_call_operand.vmem [shape: bf16[128,256], index: 6, kind: input, shape index: {}]
  %s7 = inlined_call_operand.hbm [shape: f32[1,256], index: 7, kind: input, shape index: {}]
  %s8 = inlined_call_operand.hbm [shape: bf16[128,128], index: 8, kind: input, shape index: {}]
  %s9 = inlined_call_operand.hbm [shape: f32[1,128], index: 9, kind: input, shape index: {}]
  %s10 = inlined_call_operand.hbm [shape: f32[1,128], index: 10, kind: input, shape index: {}]
  %s11 = inlined_call_operand.hbm [shape: f32[1,128], index: 11, kind: input, shape index: {}]
  %s12 = inlined_call_operand.vmem [shape: bf16[128,256], index: 12, kind: input, shape index: {}]
  %s13 = inlined_call_operand.hbm [shape: f32[1,256], index: 13, kind: input, shape index: {}]
  %s14 = inlined_call_operand.vmem [shape: bf16[256,128], index: 14, kind: input, shape index: {}]
  %s15 = inlined_call_operand.hbm [shape: f32[1,128], index: 15, kind: input, shape index: {}]
  %s16 = inlined_call_operand.vmem [shape: f32[1,128], index: 16, kind: input, shape index: {}]
  %s17 = inlined_call_operand.vmem [shape: f32[1,128], index: 17, kind: input, shape index: {}]
  %s18 = inlined_call_operand.vmem [shape: bf16[2,8,128], index: 18, kind: output, shape index: {}]
  %s19 = sld [smem:[#allocation0]]
  $region137: #{weather_encoder.2} parent=0
    _
  %s21 = ssub.s32 1, %s19
  %s22 = scalar_select 0, %s21, %s19
  $region1: #{weather_encoder.2} parent=0
    #allocation2 [shape = 'u8[512]{0}', space=vmem, size = 0x400, scoped, tag = 'input window, operand 5, single buffered']
    #allocation3 [shape = 's32[2]{0}', space=sflag, size = 0x8, scoped, tag = 'scoped memory for weather_encoder.2']
    #allocation4 [shape = 'u8[1024]{0}', space=vmem, size = 0x400, scoped, tag = 'input window, operand 7, single buffered']
    #allocation5 [shape = 's32[1]{0}', space=sflag, size = 0x4, scoped, tag = 'scoped memory for weather_encoder.2']
    #allocation6 [shape = 'u8[32768]{0}', space=vmem, size = 0x8000, scoped, tag = 'input window, operand 8, single buffered']
    #allocation7 [shape = 'u8[512]{0}', space=vmem, size = 0x400, scoped, tag = 'input window, operand 9, single buffered']
    #allocation8 [shape = 's32[1]{0}', space=sflag, size = 0x4, scoped, tag = 'scoped memory for weather_encoder.2']
    #allocation9 [shape = 'u8[512]{0}', space=vmem, size = 0x400, scoped, tag = 'input window, operand 10, single buffered']
    #allocation10 [shape = 'u8[512]{0}', space=vmem, size = 0x400, scoped, tag = 'input window, operand 11, single buffered']
    #allocation11 [shape = 's32[1]{0}', space=sflag, size = 0x4, scoped, tag = 'scoped memory for weather_encoder.2']
    #allocation12 [shape = 'u8[1024]{0}', space=vmem, size = 0x400, scoped, tag = 'input window, operand 13, single buffered']
    #allocation13 [shape = 'u8[512]{0}', space=vmem, size = 0x400, scoped, tag = 'input window, operand 15, single buffered']
    #allocation14 [shape = 's32[1]{0}', space=sflag, size = 0x4, scoped, tag = 'scoped memory for weather_encoder.2']
    %23 = vsyncpa [#allocation3], 0
    %24 = vsyncpa [#allocation5], 0
    %25 = vsyncpa [#allocation8], 0
    %26 = vsyncpa [#allocation11], 0
    %27 = vsyncpa [#allocation14], 0
    loop: start=0, step=1, limit=4
    $region2: #{weather_encoder.2} parent=1 // loop_pre_header
      _
    $region3: #{weather_encoder.2} parent=1 // loop_header
      %s29 = sphi 0, %s33
      %p30 = scmp.ge.s32.totalorder %s29, 4
      %s36 = sphi 0, %s48
      %s37 = sphi 0, %s44
      %s38 = sphi 0, %s36
      %s39 = sphi 0, %s37
      %s40 = sphi 0, %s38
      %s41 = sphi 0, %s39
      %s51 = sphi 0, %s53
      %s54 = sphi 0, %s51
      %s55 = sphi 0, %s54
      %s71 = sphi 0, %s55
      %s75 = sphi 0, %s75
      %s77 = sphi 0, %s75
      %s78 = sphi 0, %s77
      %s92 = sphi 0, %s78
      %s96 = sphi 0, %s96
      %s98 = sphi 0, %s96
      %s99 = sphi 0, %s98
      %s113 = sphi 0, %s99
      %s117 = sphi 0, %s117
      %s119 = sphi 0, %s117
      %s120 = sphi 0, %s119
      %s134 = sphi 0, %s120
      %s138 = sphi 0, %s138
      %s140 = sphi 0, %s138
      %s141 = sphi 0, %s140
      %s155 = sphi 0, %s141
      %s159 = sphi 0, %s159
      %s161 = sphi 0, %s159
      %s162 = sphi 0, %s161
      %s176 = sphi 0, %s162
      %s180 = sphi 0, %s180
      %s182 = sphi 0, %s180
      %s183 = sphi 0, %s182
      %s197 = sphi 0, %s183
      %s201 = sphi 0, %s201
      %s203 = sphi 0, %s201
      %s204 = sphi 0, %s203
      %s218 = sphi 0, %s204
      %s222 = sphi 0, %s222
      %s224 = sphi 0, %s222
      %s225 = sphi 0, %s224
      %s239 = sphi 0, %s225
      %s243 = sphi 0, %s243
      %s245 = sphi 0, %s243
      %s246 = sphi 0, %s245
      %s260 = sphi 0, %s246
      %s264 = sphi 0, %s264
      %s266 = sphi 0, %s264
      %s267 = sphi 0, %s266
      %s281 = sphi 0, %s267
      %s285 = sphi 0, %s285
      %s287 = sphi 0, %s285
      %s288 = sphi 0, %s287
      %s302 = sphi 0, %s288
      %s306 = sphi 0, %s306
      %s308 = sphi 0, %s306
      %s309 = sphi 0, %s308
      %s323 = sphi 0, %s309
      %s327 = sphi 0, %s327
      %s329 = sphi 0, %s327
      %s330 = sphi 0, %s329
      %s344 = sphi 0, %s330
      %s348 = sphi 0, %s348
      %s350 = sphi 0, %s348
      %s351 = sphi 0, %s350
      %s365 = sphi 0, %s351
      %s369 = sphi 0, %s369
      %s371 = sphi 0, %s369
      %s372 = sphi 0, %s371
      %s386 = sphi 0, %s372
      %s390 = sphi 0, %s390
      %s392 = sphi 0, %s390
      %s393 = sphi 0, %s392
      %s407 = sphi 0, %s393
      %s411 = sphi 0, %s411
      %s413 = sphi 0, %s411
      %s414 = sphi 0, %s413
      %s428 = sphi 0, %s414
      %s436 = sphi 0, %s438
      %s439 = sphi 0, %s436
      %s440 = sphi 0, %s439
      %s456 = sphi 0, %s440
    $region4: #{weather_encoder.2} parent=1 // loop_header_branch
      %32 = sbr.rel (%p30) target = $region8
    $region5: #{weather_encoder.2} parent=1 // loop_body
      %s34 = ssub.s32 %s29, 1
      %s35 = ssub.s32 %s29, 2
      %s42 = sadd.s32 1, %s37
      %p43 = scmp.ge.s32.totalorder %s42, 1
      %s44 = scalar_select %p43, 0, %s42
      %s45 = sadd.s32 1, %s36
      %s46 = scalar_select %p43, %s45, %s36
      %p47 = scmp.ge.s32.totalorder %s46, 2
      %s48 = scalar_select %p47, 0, %s46
      %s49 = ssub.s32 %s36, %s48
      %p50 = scmp.eq.s32.totalorder %s49, 0
      %s52 = sadd.s32 %s51, 1
      %s53 = scalar_select %p50, %s51, %s52
      %p56 = pneg %p50
      %p57 = scmp.eq.s32.totalorder %s29, 1
      %p58 = por %p56, %p57
      %p59 = scmp.ne.s32.totalorder %s51, %s54
      %p60 = scmp.eq.s32.totalorder %s29, 0
      %p61 = por %p59, %p60
      %p62 = scmp.ne.s32.totalorder %s51, %s54
      %p63 = scmp.eq.s32.totalorder %s34, 1
      %p64 = por %p62, %p63
      %p65 = scmp.ne.s32.totalorder %s54, %s55
      %p66 = scmp.eq.s32.totalorder %s34, 0
      %p67 = por %p65, %p66
      %p68 = scmp.ne.s32.totalorder %s54, %s55
      %p69 = scmp.eq.s32.totalorder %s35, 1
      %p70 = por %p68, %p69
      %p72 = scmp.ne.s32.totalorder %s55, %s71
      %p73 = scmp.eq.s32.totalorder %s35, 0
      %p74 = por %p72, %p73
      %s76 = sadd.s32 %s75, 1
      %p79 = scmp.eq.s32.totalorder %s29, 1
      %p80 = scmp.ne.s32.totalorder %s75, %s77
      %p81 = scmp.eq.s32.totalorder %s29, 0
      %p82 = por %p80, %p81
      %p83 = scmp.ne.s32.totalorder %s75, %s77
      %p84 = scmp.eq.s32.totalorder %s34, 1
      %p85 = por %p83, %p84
      %p86 = scmp.ne.s32.totalorder %s77, %s78
      %p87 = scmp.eq.s32.totalorder %s34, 0
      %p88 = por %p86, %p87
      %p89 = scmp.ne.s32.totalorder %s77, %s78
      %p90 = scmp.eq.s32.totalorder %s35, 1
      %p91 = por %p89, %p90
      %p93 = scmp.ne.s32.totalorder %s78, %s92
      %p94 = scmp.eq.s32.totalorder %s35, 0
      %p95 = por %p93, %p94
      %s97 = sadd.s32 %s96, 1
      %p100 = scmp.eq.s32.totalorder %s29, 1
      %p101 = scmp.ne.s32.totalorder %s96, %s98
      %p102 = scmp.eq.s32.totalorder %s29, 0
      %p103 = por %p101, %p102
      %p104 = scmp.ne.s32.totalorder %s96, %s98
      %p105 = scmp.eq.s32.totalorder %s34, 1
      %p106 = por %p104, %p105
      %p107 = scmp.ne.s32.totalorder %s98, %s99
      %p108 = scmp.eq.s32.totalorder %s34, 0
      %p109 = por %p107, %p108
      %p110 = scmp.ne.s32.totalorder %s98, %s99
      %p111 = scmp.eq.s32.totalorder %s35, 1
      %p112 = por %p110, %p111
      %p114 = scmp.ne.s32.totalorder %s99, %s113
      %p115 = scmp.eq.s32.totalorder %s35, 0
      %p116 = por %p114, %p115
      %s118 = sadd.s32 %s117, 1
      %p121 = scmp.eq.s32.totalorder %s29, 1
      %p122 = scmp.ne.s32.totalorder %s117, %s119
      %p123 = scmp.eq.s32.totalorder %s29, 0
      %p124 = por %p122, %p123
      %p125 = scmp.ne.s32.totalorder %s117, %s119
      %p126 = scmp.eq.s32.totalorder %s34, 1
      %p127 = por %p125, %p126
      %p128 = scmp.ne.s32.totalorder %s119, %s120
      %p129 = scmp.eq.s32.totalorder %s34, 0
      %p130 = por %p128, %p129
      %p131 = scmp.ne.s32.totalorder %s119, %s120
      %p132 = scmp.eq.s32.totalorder %s35, 1
      %p133 = por %p131, %p132
      %p135 = scmp.ne.s32.totalorder %s120, %s134
      %p136 = scmp.eq.s32.totalorder %s35, 0
      %p137 = por %p135, %p136
      %s139 = sadd.s32 %s138, 1
      %p142 = scmp.eq.s32.totalorder %s29, 1
      %p143 = scmp.ne.s32.totalorder %s138, %s140
      %p144 = scmp.eq.s32.totalorder %s29, 0
      %p145 = por %p143, %p144
      %p146 = scmp.ne.s32.totalorder %s138, %s140
      %p147 = scmp.eq.s32.totalorder %s34, 1
      %p148 = por %p146, %p147
      %p149 = scmp.ne.s32.totalorder %s140, %s141
      %p150 = scmp.eq.s32.totalorder %s34, 0
      %p151 = por %p149, %p150
      %p152 = scmp.ne.s32.totalorder %s140, %s141
      %p153 = scmp.eq.s32.totalorder %s35, 1
      %p154 = por %p152, %p153
      %p156 = scmp.ne.s32.totalorder %s141, %s155
      %p157 = scmp.eq.s32.totalorder %s35, 0
      %p158 = por %p156, %p157
      %s160 = sadd.s32 %s159, 1
      %p163 = scmp.eq.s32.totalorder %s29, 1
      %p164 = scmp.ne.s32.totalorder %s159, %s161
      %p165 = scmp.eq.s32.totalorder %s29, 0
      %p166 = por %p164, %p165
      %p167 = scmp.ne.s32.totalorder %s159, %s161
      %p168 = scmp.eq.s32.totalorder %s34, 1
      %p169 = por %p167, %p168
      %p170 = scmp.ne.s32.totalorder %s161, %s162
      %p171 = scmp.eq.s32.totalorder %s34, 0
      %p172 = por %p170, %p171
      %p173 = scmp.ne.s32.totalorder %s161, %s162
      %p174 = scmp.eq.s32.totalorder %s35, 1
      %p175 = por %p173, %p174
      %p177 = scmp.ne.s32.totalorder %s162, %s176
      %p178 = scmp.eq.s32.totalorder %s35, 0
      %p179 = por %p177, %p178
      %s181 = sadd.s32 %s180, 1
      %p184 = scmp.eq.s32.totalorder %s29, 1
      %p185 = scmp.ne.s32.totalorder %s180, %s182
      %p186 = scmp.eq.s32.totalorder %s29, 0
      %p187 = por %p185, %p186
      %p188 = scmp.ne.s32.totalorder %s180, %s182
      %p189 = scmp.eq.s32.totalorder %s34, 1
      %p190 = por %p188, %p189
      %p191 = scmp.ne.s32.totalorder %s182, %s183
      %p192 = scmp.eq.s32.totalorder %s34, 0
      %p193 = por %p191, %p192
      %p194 = scmp.ne.s32.totalorder %s182, %s183
      %p195 = scmp.eq.s32.totalorder %s35, 1
      %p196 = por %p194, %p195
      %p198 = scmp.ne.s32.totalorder %s183, %s197
      %p199 = scmp.eq.s32.totalorder %s35, 0
      %p200 = por %p198, %p199
      %s202 = sadd.s32 %s201, 1
      %p205 = scmp.eq.s32.totalorder %s29, 1
      %p206 = scmp.ne.s32.totalorder %s201, %s203
      %p207 = scmp.eq.s32.totalorder %s29, 0
      %p208 = por %p206, %p207
      %p209 = scmp.ne.s32.totalorder %s201, %s203
      %p210 = scmp.eq.s32.totalorder %s34, 1
      %p211 = por %p209, %p210
      %p212 = scmp.ne.s32.totalorder %s203, %s204
      %p213 = scmp.eq.s32.totalorder %s34, 0
      %p214 = por %p212, %p213
      %p215 = scmp.ne.s32.totalorder %s203, %s204
      %p216 = scmp.eq.s32.totalorder %s35, 1
      %p217 = por %p215, %p216
      %p219 = scmp.ne.s32.totalorder %s204, %s218
      %p220 = scmp.eq.s32.totalorder %s35, 0
      %p221 = por %p219, %p220
      %s223 = sadd.s32 %s222, 1
      %p226 = scmp.eq.s32.totalorder %s29, 1
      %p227 = scmp.ne.s32.totalorder %s222, %s224
      %p228 = scmp.eq.s32.totalorder %s29, 0
      %p229 = por %p227, %p228
      %p230 = scmp.ne.s32.totalorder %s222, %s224
      %p231 = scmp.eq.s32.totalorder %s34, 1
      %p232 = por %p230, %p231
      %p233 = scmp.ne.s32.totalorder %s224, %s225
      %p234 = scmp.eq.s32.totalorder %s34, 0
      %p235 = por %p233, %p234
      %p236 = scmp.ne.s32.totalorder %s224, %s225
      %p237 = scmp.eq.s32.totalorder %s35, 1
      %p238 = por %p236, %p237
      %p240 = scmp.ne.s32.totalorder %s225, %s239
      %p241 = scmp.eq.s32.totalorder %s35, 0
      %p242 = por %p240, %p241
      %s244 = sadd.s32 %s243, 1
      %p247 = scmp.eq.s32.totalorder %s29, 1
      %p248 = scmp.ne.s32.totalorder %s243, %s245
      %p249 = scmp.eq.s32.totalorder %s29, 0
      %p250 = por %p248, %p249
      %p251 = scmp.ne.s32.totalorder %s243, %s245
      %p252 = scmp.eq.s32.totalorder %s34, 1
      %p253 = por %p251, %p252
      %p254 = scmp.ne.s32.totalorder %s245, %s246
      %p255 = scmp.eq.s32.totalorder %s34, 0
      %p256 = por %p254, %p255
      %p257 = scmp.ne.s32.totalorder %s245, %s246
      %p258 = scmp.eq.s32.totalorder %s35, 1
      %p259 = por %p257, %p258
      %p261 = scmp.ne.s32.totalorder %s246, %s260
      %p262 = scmp.eq.s32.totalorder %s35, 0
      %p263 = por %p261, %p262
      %s265 = sadd.s32 %s264, 1
      %p268 = scmp.eq.s32.totalorder %s29, 1
      %p269 = scmp.ne.s32.totalorder %s264, %s266
      %p270 = scmp.eq.s32.totalorder %s29, 0
      %p271 = por %p269, %p270
      %p272 = scmp.ne.s32.totalorder %s264, %s266
      %p273 = scmp.eq.s32.totalorder %s34, 1
      %p274 = por %p272, %p273
      %p275 = scmp.ne.s32.totalorder %s266, %s267
      %p276 = scmp.eq.s32.totalorder %s34, 0
      %p277 = por %p275, %p276
      %p278 = scmp.ne.s32.totalorder %s266, %s267
      %p279 = scmp.eq.s32.totalorder %s35, 1
      %p280 = por %p278, %p279
      %p282 = scmp.ne.s32.totalorder %s267, %s281
      %p283 = scmp.eq.s32.totalorder %s35, 0
      %p284 = por %p282, %p283
      %s286 = sadd.s32 %s285, 1
      %p289 = scmp.eq.s32.totalorder %s29, 1
      %p290 = scmp.ne.s32.totalorder %s285, %s287
      %p291 = scmp.eq.s32.totalorder %s29, 0
      %p292 = por %p290, %p291
      %p293 = scmp.ne.s32.totalorder %s285, %s287
      %p294 = scmp.eq.s32.totalorder %s34, 1
      %p295 = por %p293, %p294
      %p296 = scmp.ne.s32.totalorder %s287, %s288
      %p297 = scmp.eq.s32.totalorder %s34, 0
      %p298 = por %p296, %p297
      %p299 = scmp.ne.s32.totalorder %s287, %s288
      %p300 = scmp.eq.s32.totalorder %s35, 1
      %p301 = por %p299, %p300
      %p303 = scmp.ne.s32.totalorder %s288, %s302
      %p304 = scmp.eq.s32.totalorder %s35, 0
      %p305 = por %p303, %p304
      %s307 = sadd.s32 %s306, 1
      %p310 = scmp.eq.s32.totalorder %s29, 1
      %p311 = scmp.ne.s32.totalorder %s306, %s308
      %p312 = scmp.eq.s32.totalorder %s29, 0
      %p313 = por %p311, %p312
      %p314 = scmp.ne.s32.totalorder %s306, %s308
      %p315 = scmp.eq.s32.totalorder %s34, 1
      %p316 = por %p314, %p315
      %p317 = scmp.ne.s32.totalorder %s308, %s309
      %p318 = scmp.eq.s32.totalorder %s34, 0
      %p319 = por %p317, %p318
      %p320 = scmp.ne.s32.totalorder %s308, %s309
      %p321 = scmp.eq.s32.totalorder %s35, 1
      %p322 = por %p320, %p321
      %p324 = scmp.ne.s32.totalorder %s309, %s323
      %p325 = scmp.eq.s32.totalorder %s35, 0
      %p326 = por %p324, %p325
      %s328 = sadd.s32 %s327, 1
      %p331 = scmp.eq.s32.totalorder %s29, 1
      %p332 = scmp.ne.s32.totalorder %s327, %s329
      %p333 = scmp.eq.s32.totalorder %s29, 0
      %p334 = por %p332, %p333
      %p335 = scmp.ne.s32.totalorder %s327, %s329
      %p336 = scmp.eq.s32.totalorder %s34, 1
      %p337 = por %p335, %p336
      %p338 = scmp.ne.s32.totalorder %s329, %s330
      %p339 = scmp.eq.s32.totalorder %s34, 0
      %p340 = por %p338, %p339
      %p341 = scmp.ne.s32.totalorder %s329, %s330
      %p342 = scmp.eq.s32.totalorder %s35, 1
      %p343 = por %p341, %p342
      %p345 = scmp.ne.s32.totalorder %s330, %s344
      %p346 = scmp.eq.s32.totalorder %s35, 0
      %p347 = por %p345, %p346
      %s349 = sadd.s32 %s348, 1
      %p352 = scmp.eq.s32.totalorder %s29, 1
      %p353 = scmp.ne.s32.totalorder %s348, %s350
      %p354 = scmp.eq.s32.totalorder %s29, 0
      %p355 = por %p353, %p354
      %p356 = scmp.ne.s32.totalorder %s348, %s350
      %p357 = scmp.eq.s32.totalorder %s34, 1
      %p358 = por %p356, %p357
      %p359 = scmp.ne.s32.totalorder %s350, %s351
      %p360 = scmp.eq.s32.totalorder %s34, 0
      %p361 = por %p359, %p360
      %p362 = scmp.ne.s32.totalorder %s350, %s351
      %p363 = scmp.eq.s32.totalorder %s35, 1
      %p364 = por %p362, %p363
      %p366 = scmp.ne.s32.totalorder %s351, %s365
      %p367 = scmp.eq.s32.totalorder %s35, 0
      %p368 = por %p366, %p367
      %s370 = sadd.s32 %s369, 1
      %p373 = scmp.eq.s32.totalorder %s29, 1
      %p374 = scmp.ne.s32.totalorder %s369, %s371
      %p375 = scmp.eq.s32.totalorder %s29, 0
      %p376 = por %p374, %p375
      %p377 = scmp.ne.s32.totalorder %s369, %s371
      %p378 = scmp.eq.s32.totalorder %s34, 1
      %p379 = por %p377, %p378
      %p380 = scmp.ne.s32.totalorder %s371, %s372
      %p381 = scmp.eq.s32.totalorder %s34, 0
      %p382 = por %p380, %p381
      %p383 = scmp.ne.s32.totalorder %s371, %s372
      %p384 = scmp.eq.s32.totalorder %s35, 1
      %p385 = por %p383, %p384
      %p387 = scmp.ne.s32.totalorder %s372, %s386
      %p388 = scmp.eq.s32.totalorder %s35, 0
      %p389 = por %p387, %p388
      %s391 = sadd.s32 %s390, 1
      %p394 = scmp.eq.s32.totalorder %s29, 1
      %p395 = scmp.ne.s32.totalorder %s390, %s392
      %p396 = scmp.eq.s32.totalorder %s29, 0
      %p397 = por %p395, %p396
      %p398 = scmp.ne.s32.totalorder %s390, %s392
      %p399 = scmp.eq.s32.totalorder %s34, 1
      %p400 = por %p398, %p399
      %p401 = scmp.ne.s32.totalorder %s392, %s393
      %p402 = scmp.eq.s32.totalorder %s34, 0
      %p403 = por %p401, %p402
      %p404 = scmp.ne.s32.totalorder %s392, %s393
      %p405 = scmp.eq.s32.totalorder %s35, 1
      %p406 = por %p404, %p405
      %p408 = scmp.ne.s32.totalorder %s393, %s407
      %p409 = scmp.eq.s32.totalorder %s35, 0
      %p410 = por %p408, %p409
      %s412 = sadd.s32 %s411, 1
      %p415 = scmp.eq.s32.totalorder %s29, 1
      %p416 = scmp.ne.s32.totalorder %s411, %s413
      %p417 = scmp.eq.s32.totalorder %s29, 0
      %p418 = por %p416, %p417
      %p419 = scmp.ne.s32.totalorder %s411, %s413
      %p420 = scmp.eq.s32.totalorder %s34, 1
      %p421 = por %p419, %p420
      %p422 = scmp.ne.s32.totalorder %s413, %s414
      %p423 = scmp.eq.s32.totalorder %s34, 0
      %p424 = por %p422, %p423
      %p425 = scmp.ne.s32.totalorder %s413, %s414
      %p426 = scmp.eq.s32.totalorder %s35, 1
      %p427 = por %p425, %p426
      %p429 = scmp.ne.s32.totalorder %s414, %s428
      %p430 = scmp.eq.s32.totalorder %s35, 0
      %p431 = por %p429, %p430
      %s432 = ssub.s32 %s36, %s48
      %s433 = ssub.s32 %s37, %s44
      %s434 = sor.u32 %s432, %s433
      %p435 = scmp.eq.s32.totalorder %s434, 0
      %s437 = sadd.s32 %s436, 1
      %s438 = scalar_select %p435, %s436, %s437
      %p441 = pneg %p435
      %p442 = scmp.eq.s32.totalorder %s29, 1
      %p443 = por %p441, %p442
      %p444 = scmp.ne.s32.totalorder %s436, %s439
      %p445 = scmp.eq.s32.totalorder %s29, 0
      %p446 = por %p444, %p445
      %p447 = scmp.ne.s32.totalorder %s436, %s439
      %p448 = scmp.eq.s32.totalorder %s34, 1
      %p449 = por %p447, %p448
      %p450 = scmp.ne.s32.totalorder %s439, %s440
      %p451 = scmp.eq.s32.totalorder %s34, 0
      %p452 = por %p450, %p451
      %p453 = scmp.ne.s32.totalorder %s439, %s440
      %p454 = scmp.eq.s32.totalorder %s35, 1
      %p455 = por %p453, %p454
      %p457 = scmp.ne.s32.totalorder %s440, %s456
      %p458 = scmp.eq.s32.totalorder %s35, 0
      %p459 = por %p457, %p458
      %p460 = scmp.le.s32.totalorder 1, %s29
      %p461 = scmp.lt.s32.totalorder %s29, 3
      %p462 = pnand %p460, %p461
      %p463 = pneg %p462
      // Predicated region
      $region9: #{weather_encoder.2} parent=5 // pred_check
        _
      $region10: #{weather_encoder.2} parent=5 // pred_check_branch
        %465 = sbr.rel (%p462) target = $region12
      $region11: #{weather_encoder.2} parent=5 // pred_region
        %s466 = ssub.s32 %s29, 1
        // Predicated region
        $region13: #{weather_encoder.2} parent=11 // pred_check
          %p467 = pneg %p88
        $region14: #{weather_encoder.2} parent=11 // pred_check_branch
          %469 = sbr.rel (%p467) target = $region16
        $region15: #{weather_encoder.2} parent=11 // pred_region
          _
        $region16: #{weather_encoder.2} parent=11 // pred_fallthru
          _
        // Predicated region
        $region17: #{weather_encoder.2} parent=11 // pred_check
          %p470 = pneg %p109
        $region18: #{weather_encoder.2} parent=11 // pred_check_branch
          %472 = sbr.rel (%p470) target = $region20
        $region19: #{weather_encoder.2} parent=11 // pred_region
          _
        $region20: #{weather_encoder.2} parent=11 // pred_fallthru
          _
        // Predicated region
        $region21: #{weather_encoder.2} parent=11 // pred_check
          %p473 = pneg %p130
        $region22: #{weather_encoder.2} parent=11 // pred_check_branch
          %475 = sbr.rel (%p473) target = $region24
        $region23: #{weather_encoder.2} parent=11 // pred_region
          _
        $region24: #{weather_encoder.2} parent=11 // pred_fallthru
          _
        // Predicated region
        $region25: #{weather_encoder.2} parent=11 // pred_check
          %p476 = pneg %p151
        $region26: #{weather_encoder.2} parent=11 // pred_check_branch
          %478 = sbr.rel (%p476) target = $region28
        $region27: #{weather_encoder.2} parent=11 // pred_region
          _
        $region28: #{weather_encoder.2} parent=11 // pred_fallthru
          _
        // Predicated region
        $region29: #{weather_encoder.2} parent=11 // pred_check
          %p479 = pneg %p172
        $region30: #{weather_encoder.2} parent=11 // pred_check_branch
          %481 = sbr.rel (%p479) target = $region32
        $region31: #{weather_encoder.2} parent=11 // pred_region
          %s483 = ssub.s32 16, 16
          %484 = vsyncadd [#allocation3], %s483
          %s486 = sshll.u32 [#allocation2], 4
          %s487 = int_to_ptr.vmem [resolvable:$true] %s486
          %489 = dma.hbm_to_vmem [thread:$0]  %s5, 16, %s487, [#allocation3]
        $region32: #{weather_encoder.2} parent=11 // pred_fallthru
          _
        // Predicated region
        $region33: #{weather_encoder.2} parent=11 // pred_check
          %p490 = pneg %p193
        $region34: #{weather_encoder.2} parent=11 // pred_check_branch
          %492 = sbr.rel (%p490) target = $region36
        $region35: #{weather_encoder.2} parent=11 // pred_region
          _
        $region36: #{weather_encoder.2} parent=11 // pred_fallthru
          _
        // Predicated region
        $region37: #{weather_encoder.2} parent=11 // pred_check
          %p493 = pneg %p214
        $region38: #{weather_encoder.2} parent=11 // pred_check_branch
          %495 = sbr.rel (%p493) target = $region40
        $region39: #{weather_encoder.2} parent=11 // pred_region
          %s497 = ssub.s32 32, 32
          %498 = vsyncadd [#allocation5], %s497
          %s500 = sshll.u32 [#allocation4], 4
          %s501 = int_to_ptr.vmem [resolvable:$true] %s500
          %503 = dma.hbm_to_vmem [thread:$0]  %s7, 32, %s501, [#allocation5]
        $region40: #{weather_encoder.2} parent=11 // pred_fallthru
          _
        // Predicated region
        $region41: #{weather_encoder.2} parent=11 // pred_check
          %p504 = pneg %p235
        $region42: #{weather_encoder.2} parent=11 // pred_check_branch
          %506 = sbr.rel (%p504) target = $region44
        $region43: #{weather_encoder.2} parent=11 // pred_region
          %s508 = ssub.s32 1024, 1024
          %509 = vsyncadd [#allocation5], %s508
          %s510 = sshll.u32 [#allocation6], 4
          %s511 = int_to_ptr.vmem [resolvable:$true] %s510
          %516 = dma.hbm_to_vmem [thread:$0]  %s8, 1024, %s511, [#allocation5], 64, 64, 4
        $region44: #{weather_encoder.2} parent=11 // pred_fallthru
          _
        // Predicated region
        $region45: #{weather_encoder.2} parent=11 // pred_check
          %p517 = pneg %p256
        $region46: #{weather_encoder.2} parent=11 // pred_check_branch
          %519 = sbr.rel (%p517) target = $region48
        $region47: #{weather_encoder.2} parent=11 // pred_region
          %s521 = ssub.s32 16, 16
          %522 = vsyncadd [#allocation8], %s521
          %s524 = sshll.u32 [#allocation7], 4
          %s525 = int_to_ptr.vmem [resolvable:$true] %s524
          %527 = dma.hbm_to_vmem [thread:$0]  %s9, 16, %s525, [#allocation8]
        $region48: #{weather_encoder.2} parent=11 // pred_fallthru
          _
        // Predicated region
        $region49: #{weather_encoder.2} parent=11 // pred_check
          %p528 = pneg %p277
        $region50: #{weather_encoder.2} parent=11 // pred_check_branch
          %530 = sbr.rel (%p528) target = $region52
        $region51: #{weather_encoder.2} parent=11 // pred_region
          %s532 = ssub.s32 16, 16
          %533 = vsyncadd [#allocation8], %s532
          %s535 = sshll.u32 [#allocation9], 4
          %s536 = int_to_ptr.vmem [resolvable:$true] %s535
          %538 = dma.hbm_to_vmem [thread:$0]  %s10, 16, %s536, [#allocation8]
        $region52: #{weather_encoder.2} parent=11 // pred_fallthru
          _
        // Predicated region
        $region53: #{weather_encoder.2} parent=11 // pred_check
          %p539 = pneg %p298
        $region54: #{weather_encoder.2} parent=11 // pred_check_branch
          %541 = sbr.rel (%p539) target = $region56
        $region55: #{weather_encoder.2} parent=11 // pred_region
          %s543 = ssub.s32 16, 16
          %544 = vsyncadd [#allocation11], %s543
          %s546 = sshll.u32 [#allocation10], 4
          %s547 = int_to_ptr.vmem [resolvable:$true] %s546
          %549 = dma.hbm_to_vmem [thread:$0]  %s11, 16, %s547, [#allocation11]
        $region56: #{weather_encoder.2} parent=11 // pred_fallthru
          _
        // Predicated region
        $region57: #{weather_encoder.2} parent=11 // pred_check
          %p550 = pneg %p319
        $region58: #{weather_encoder.2} parent=11 // pred_check_branch
          %552 = sbr.rel (%p550) target = $region60
        $region59: #{weather_encoder.2} parent=11 // pred_region
          _
        $region60: #{weather_encoder.2} parent=11 // pred_fallthru
          _
        // Predicated region
        $region61: #{weather_encoder.2} parent=11 // pred_check
          %p553 = pneg %p340
        $region62: #{weather_encoder.2} parent=11 // pred_check_branch
          %555 = sbr.rel (%p553) target = $region64
        $region63: #{weather_encoder.2} parent=11 // pred_region
          %s557 = ssub.s32 32, 32
          %558 = vsyncadd [#allocation11], %s557
          %s560 = sshll.u32 [#allocation12], 4
          %s561 = int_to_ptr.vmem [resolvable:$true] %s560
          %563 = dma.hbm_to_vmem [thread:$0]  %s13, 32, %s561, [#allocation11]
        $region64: #{weather_encoder.2} parent=11 // pred_fallthru
          _
        // Predicated region
        $region65: #{weather_encoder.2} parent=11 // pred_check
          %p564 = pneg %p361
        $region66: #{weather_encoder.2} parent=11 // pred_check_branch
          %566 = sbr.rel (%p564) target = $region68
        $region67: #{weather_encoder.2} parent=11 // pred_region
          _
        $region68: #{weather_encoder.2} parent=11 // pred_fallthru
          _
        // Predicated region
        $region69: #{weather_encoder.2} parent=11 // pred_check
          %p567 = pneg %p382
        $region70: #{weather_encoder.2} parent=11 // pred_check_branch
          %569 = sbr.rel (%p567) target = $region72
        $region71: #{weather_encoder.2} parent=11 // pred_region
          %s571 = ssub.s32 16, 16
          %572 = vsyncadd [#allocation14], %s571
          %s574 = sshll.u32 [#allocation13], 4
          %s575 = int_to_ptr.vmem [resolvable:$true] %s574
          %577 = dma.hbm_to_vmem [thread:$0]  %s15, 16, %s575, [#allocation14]
        $region72: #{weather_encoder.2} parent=11 // pred_fallthru
          _
        // Predicated region
        $region73: #{weather_encoder.2} parent=11 // pred_check
          %p578 = pneg %p403
        $region74: #{weather_encoder.2} parent=11 // pred_check_branch
          %580 = sbr.rel (%p578) target = $region76
        $region75: #{weather_encoder.2} parent=11 // pred_region
          _
        $region76: #{weather_encoder.2} parent=11 // pred_fallthru
          _
        // Predicated region
        $region77: #{weather_encoder.2} parent=11 // pred_check
          %p581 = pneg %p424
        $region78: #{weather_encoder.2} parent=11 // pred_check_branch
          %583 = sbr.rel (%p581) target = $region80
        $region79: #{weather_encoder.2} parent=11 // pred_region
          _
        $region80: #{weather_encoder.2} parent=11 // pred_fallthru
          _
      $region12: #{weather_encoder.2} parent=5 // pred_fallthru
        _
      %p584 = scmp.lt.s32.totalorder %s29, 2
      // Predicated region
      $region81: #{weather_encoder.2} parent=5 // pred_check
        %p585 = pneg %p584
      $region82: #{weather_encoder.2} parent=5 // pred_check_branch
        %587 = sbr.rel (%p585) target = $region84
      $region83: #{weather_encoder.2} parent=5 // pred_region
        // Predicated region
        $region85: #{weather_encoder.2} parent=83 // pred_check
          %p588 = pneg %p61
        $region86: #{weather_encoder.2} parent=83 // pred_check_branch
          %590 = sbr.rel (%p588) target = $region88
        $region87: #{weather_encoder.2} parent=83 // pred_region
          %p591 = scmp.lt.s32.totalorder %s36, 1
          %s592 = scalar_select %p591, %s36, 1
          %s593 = smul.addr %s592, 8
          %s594 = scalar_lea.vmem %s0, %s593
        $region88: #{weather_encoder.2} parent=83 // pred_fallthru
          _
      $region84: #{weather_encoder.2} parent=5 // pred_fallthru
        _
      %p595 = scmp.le.s32.totalorder 1, %s29
      %p596 = scmp.lt.s32.totalorder %s29, 3
      %p597 = pnand %p595, %p596
      %p598 = pneg %p597
      // Predicated region
      $region89: #{weather_encoder.2} parent=5 // pred_check
        _
      $region90: #{weather_encoder.2} parent=5 // pred_check_branch
        %600 = sbr.rel (%p597) target = $region92
      $region91: #{weather_encoder.2} parent=5 // pred_region
        %s601 = ssub.s32 %s29, 1
        // Predicated region
        $region93: #{weather_encoder.2} parent=91 // pred_check
          %p602 = pneg %p172
        $region94: #{weather_encoder.2} parent=91 // pred_check_branch
          %604 = sbr.rel (%p602) target = $region96
        $region95: #{weather_encoder.2} parent=91 // pred_region
          %605 = dma.done [#allocation3], 16
        $region96: #{weather_encoder.2} parent=91 // pred_fallthru
          _
        // Predicated region
        $region97: #{weather_encoder.2} parent=91 // pred_check
          %p606 = pneg %p214
        $region98: #{weather_encoder.2} parent=91 // pred_check_branch
          %608 = sbr.rel (%p606) target = $region100
        $region99: #{weather_encoder.2} parent=91 // pred_region
          %609 = dma.done [#allocation5], 32
        $region100: #{weather_encoder.2} parent=91 // pred_fallthru
          _
        // Predicated region
        $region101: #{weather_encoder.2} parent=91 // pred_check
          %p610 = pneg %p235
        $region102: #{weather_encoder.2} parent=91 // pred_check_branch
          %612 = sbr.rel (%p610) target = $region104
        $region103: #{weather_encoder.2} parent=91 // pred_region
          %613 = dma.done [#allocation5], 1024
        $region104: #{weather_encoder.2} parent=91 // pred_fallthru
          _
        // Predicated region
        $region105: #{weather_encoder.2} parent=91 // pred_check
          %p614 = pneg %p256
        $region106: #{weather_encoder.2} parent=91 // pred_check_branch
          %616 = sbr.rel (%p614) target = $region108
        $region107: #{weather_encoder.2} parent=91 // pred_region
          %617 = dma.done [#allocation8], 16
        $region108: #{weather_encoder.2} parent=91 // pred_fallthru
          _
        // Predicated region
        $region109: #{weather_encoder.2} parent=91 // pred_check
          %p618 = pneg %p277
        $region110: #{weather_encoder.2} parent=91 // pred_check_branch
          %620 = sbr.rel (%p618) target = $region112
        $region111: #{weather_encoder.2} parent=91 // pred_region
          %621 = dma.done [#allocation8], 16
        $region112: #{weather_encoder.2} parent=91 // pred_fallthru
          _
        // Predicated region
        $region113: #{weather_encoder.2} parent=91 // pred_check
          %p622 = pneg %p298
        $region114: #{weather_encoder.2} parent=91 // pred_check_branch
          %624 = sbr.rel (%p622) target = $region116
        $region115: #{weather_encoder.2} parent=91 // pred_region
          %625 = dma.done [#allocation11], 16
        $region116: #{weather_encoder.2} parent=91 // pred_fallthru
          _
        // Predicated region
        $region117: #{weather_encoder.2} parent=91 // pred_check
          %p626 = pneg %p340
        $region118: #{weather_encoder.2} parent=91 // pred_check_branch
          %628 = sbr.rel (%p626) target = $region120
        $region119: #{weather_encoder.2} parent=91 // pred_region
          %629 = dma.done [#allocation11], 32
        $region120: #{weather_encoder.2} parent=91 // pred_fallthru
          _
        // Predicated region
        $region121: #{weather_encoder.2} parent=91 // pred_check
          %p630 = pneg %p382
        $region122: #{weather_encoder.2} parent=91 // pred_check_branch
          %632 = sbr.rel (%p630) target = $region124
        $region123: #{weather_encoder.2} parent=91 // pred_region
          %633 = dma.done [#allocation14], 16
        $region124: #{weather_encoder.2} parent=91 // pred_fallthru
          _
        %p634 = scmp.lt.s32.totalorder %s38, 1
        %s635 = scalar_select %p634, %s38, 1
        %s636 = smul.addr %s635, 8
        %s637 = scalar_lea.vmem %s0, %s636
        %p638 = pneg %p67
        %p639 = pneg %p64
        %p640 = pneg %p88
        %p641 = pneg %p85
        %p642 = pneg %p109
        %p643 = pneg %p106
        %p644 = pneg %p130
        %p645 = pneg %p127
        %p646 = pneg %p151
        %p647 = pneg %p148
        %p648 = pneg %p172
        %p649 = pneg %p169
        %p650 = pneg %p193
        %p651 = pneg %p190
        %p652 = pneg %p214
        %p653 = pneg %p211
        %p654 = pneg %p235
        %p655 = pneg %p232
        %p656 = pneg %p256
        %p657 = pneg %p253
        %p658 = pneg %p277
        %p659 = pneg %p274
        %p660 = pneg %p298
        %p661 = pneg %p295
        %p662 = pneg %p319
        %p663 = pneg %p316
        %p664 = pneg %p340
        %p665 = pneg %p337
        %p666 = pneg %p361
        %p667 = pneg %p358
        %p668 = pneg %p382
        %p669 = pneg %p379
        %p670 = pneg %p403
        %p671 = pneg %p400
        %p672 = pneg %p424
        %p673 = pneg %p421
        %p674 = pneg %p452
        %p675 = pneg %p449
        %p676 = scmp.lt.s32.totalorder %s38, 1
        %s677 = scalar_select %p676, %s38, 1
        %p678 = scmp.lt.s32.totalorder %s39, 0
        %s679 = scalar_select %p678, %s39, 0
        %s680 = sadd.s32 %s679, %s677
        %s681 = smul.addr %s680, 4
        %s682 = scalar_lea.vmem %s18, %s681
        %p683 = scmp.lt.s32.totalorder %s38, 1
        %s684 = scalar_select %p683, %s38, 1
        %s685 = smul.addr %s684, 8
        %s686 = scalar_lea.vmem %s0, %s685
        %p687 = scmp.lt.s32.totalorder %s38, 1
        %s688 = scalar_select %p687, %s38, 1
        %p689 = scmp.lt.s32.totalorder %s39, 0
        %s690 = scalar_select %p689, %s39, 0
        %s691 = sadd.s32 %s690, %s688
        %s692 = smul.addr %s691, 4
        %s693 = scalar_lea.vmem %s18, %s692
        %v695 = vld [vmem:[%s686] sm:$0xff]
        %v696 = vpack.c.bf16 %v695, %v695
        %v697 = vld [vmem:[%s1] sm:$0x3]
        %v698 = vld [vmem:[%s2] sm:$0x1]
        %v700 = vlaneseq
        %v701 = vshrl.u32 %v700, 7
        %v702 = vsub.s32 0, %v701
        %v703 = vrot.slane %v698, %v702
        %vm705 = vcmask 31744
        %v707 = vsel %vm705, %v696, 0
        %vm709 = vcmask 1041408
        %v711 = vsel %vm709, %v697, 0
        %713 = vmatprep.subr.bf16.mxu0 0
        %714 = vmatpush1.bf16.msra.mxu0 0
        %715 = vmatprep.subr.bf16.mxu0 0
        %716 = vmatpush1.bf16.msra.mxu0 0
        %717 = vmatprep.subr.bf16.mxu0 0
        %718 = vmatpush1.bf16.msra.mxu0 0
        %719 = vmatprep.subr.bf16.mxu0 0
        %720 = vmatpush1.bf16.msra.mxu0 0
        %721 = vmatprep.subr.bf16.mxu0 0
        %722 = vmatpush1.bf16.msra.mxu0 0
        %723 = vmatprep.subr.bf16.mxu0 0
        %724 = vmatpush1.bf16.msra.mxu0 0
        %725 = vmatprep.subr.bf16.mxu0 0
        %726 = vmatpush1.bf16.msra.mxu0 0
        %727 = vmatprep.subr.bf16.mxu0 0
        %728 = vmatpush1.bf16.msra.mxu0 %v711
        %729 = vmatprep.subr.bf16.mxu0 0
        %730 = vmatpush2.bf16.msra.mxu0 0
        %731 = vmatprep.subr.bf16.mxu0 0
        %732 = vmatpush2.bf16.msra.mxu0 0
        %733 = vmatprep.subr.bf16.mxu0 0
        %734 = vmatpush2.bf16.msra.mxu0 0
        %735 = vmatprep.subr.bf16.mxu0 0
        %736 = vmatpush2.bf16.msra.mxu0 0
        %737 = vmatprep.subr.bf16.mxu0 0
        %738 = vmatpush2.bf16.msra.mxu0 0
        %739 = vmatprep.subr.bf16.mxu0 0
        %740 = vmatpush2.bf16.msra.mxu0 0
        %741 = vmatprep.subr.bf16.mxu0 0
        %742 = vmatpush2.bf16.msra.mxu0 0
        %743 = vmatprep.subr.bf16.mxu0 0
        %744 = vmatpush2.bf16.msra.mxu0 0
        %745 = vmatprep.mubr.bf16.mxu0 0
        %746 = vmatmul.mubr.bf16.gmra.mxu0 %v707
        %v747 = vpop.f32.mrf.mxu0
        %v748 = vadd.f32 %v703, %v747
        %v749 = vpop.f32.mrf.mxu0
        %v750 = vpop.f32.mrf.mxu0
        %v751 = vpop.f32.mrf.mxu0
        %752 = vdwg.mxu0
        %v753 = vld [vmem:[%s3] sm:$0xff]
        %v754 = vadd.f32 %v748, %v753
        %v755 = vpack.c.bf16 %v754, %v754
        %v756 = vld [vmem:[%s4] sm:$0xf]
        %v757 = vld [vmem:[%s4 + $0x4] sm:$0xf]
        %v758 = vld [vmem:[%s4 + $0x8] sm:$0xf]
        %v759 = vld [vmem:[%s4 + $0xc] sm:$0xf]
        %v760 = vld [vmem:[%s4 + $0x10] sm:$0xf]
        %v761 = vld [vmem:[%s4 + $0x14] sm:$0xf]
        %v762 = vld [vmem:[%s4 + $0x18] sm:$0xf]
        %v763 = vld [vmem:[%s4 + $0x1c] sm:$0xf]
        %v764 = vld [vmem:[%s4 + $0x20] sm:$0xf]
        %v765 = vld [vmem:[%s4 + $0x24] sm:$0xf]
        %v766 = vld [vmem:[%s4 + $0x28] sm:$0xf]
        %v767 = vld [vmem:[%s4 + $0x2c] sm:$0xf]
        %v768 = vld [vmem:[%s4 + $0x30] sm:$0xf]
        %v769 = vld [vmem:[%s4 + $0x34] sm:$0xf]
        %v770 = vld [vmem:[%s4 + $0x38] sm:$0xf]
        %v771 = vld [vmem:[%s4 + $0x3c] sm:$0xf]
        %v772 = vld [vmem:[#allocation2] sm:$0x1]
        %v774 = vlaneseq
        %v775 = vshrl.u32 %v774, 7
        %v776 = vsub.s32 0, %v775
        %v777 = vrot.slane %v772, %v776
        %v795 = vunpack.c.l.b16 %v756
        %v796 = vunpack.c.l.b16 %v757
        %v797 = vunpack.c.l.b16 %v758
        %v798 = vunpack.c.l.b16 %v759
        %v799 = vunpack.c.l.b16 %v760
        %v800 = vunpack.c.l.b16 %v761
        %v801 = vunpack.c.l.b16 %v762
        %v802 = vunpack.c.l.b16 %v763
        %v803 = vunpack.c.l.b16 %v764
        %v804 = vunpack.c.l.b16 %v765
        %v805 = vunpack.c.l.b16 %v766
        %v806 = vunpack.c.l.b16 %v767
        %v807 = vunpack.c.l.b16 %v768
        %v808 = vunpack.c.l.b16 %v769
        %v809 = vunpack.c.l.b16 %v770
        %v810 = vunpack.c.l.b16 %v771
        %v811 = vpack.c.b16 %v796, %v795
        %v812 = vpack.c.b16 %v798, %v797
        %v813 = vpack.c.b16 %v800, %v799
        %v814 = vpack.c.b16 %v802, %v801
        %v815 = vpack.c.b16 %v804, %v803
        %v816 = vpack.c.b16 %v806, %v805
        %v817 = vpack.c.b16 %v808, %v807
        %v818 = vpack.c.b16 %v810, %v809
        %827 = vmatprep.subr.bf16.mxu0 0
        %828 = vmatpush1.bf16.msra.mxu0 %v818
        %829 = vmatprep.subr.bf16.mxu0 0
        %830 = vmatpush1.bf16.msra.mxu0 %v817
        %831 = vmatprep.subr.bf16.mxu0 0
        %832 = vmatpush1.bf16.msra.mxu0 %v816
        %833 = vmatprep.subr.bf16.mxu0 0
        %834 = vmatpush1.bf16.msra.mxu0 %v815
        %835 = vmatprep.subr.bf16.mxu0 0
        %836 = vmatpush1.bf16.msra.mxu0 %v814
        %837 = vmatprep.subr.bf16.mxu0 0
        %838 = vmatpush1.bf16.msra.mxu0 %v813
        %839 = vmatprep.subr.bf16.mxu0 0
        %840 = vmatpush1.bf16.msra.mxu0 %v812
        %841 = vmatprep.subr.bf16.mxu0 0
        %842 = vmatpush1.bf16.msra.mxu0 %v811
        %843 = vmatprep.subr.bf16.mxu0 0
        %844 = vmatpush2.bf16.msra.mxu0 0
        %845 = vmatprep.subr.bf16.mxu0 0
        %846 = vmatpush2.bf16.msra.mxu0 0
        %847 = vmatprep.subr.bf16.mxu0 0
        %848 = vmatpush2.bf16.msra.mxu0 0
        %849 = vmatprep.subr.bf16.mxu0 0
        %850 = vmatpush2.bf16.msra.mxu0 0
        %851 = vmatprep.subr.bf16.mxu0 0
        %852 = vmatpush2.bf16.msra.mxu0 0
        %853 = vmatprep.subr.bf16.mxu0 0
        %854 = vmatpush2.bf16.msra.mxu0 0
        %855 = vmatprep.subr.bf16.mxu0 0
        %856 = vmatpush2.bf16.msra.mxu0 0
        %857 = vmatprep.subr.bf16.mxu0 0
        %858 = vmatpush2.bf16.msra.mxu0 0
        %859 = vmatprep.mubr.bf16.mxu0 0
        %860 = vmatmul.mubr.bf16.gmra.mxu0 %v755
        %v861 = vpop.f32.mrf.mxu0
        %v862 = vadd.f32 %v777, %v861
        %v863 = vpop.f32.mrf.mxu0
        %v864 = vpop.f32.mrf.mxu0
        %v865 = vpop.f32.mrf.mxu0
        %866 = vdwg.mxu0
        %v867 = vld [vmem:[%s6] sm:$0xff]
        %v868 = vld [vmem:[%s6 + $0x8] sm:$0xff]
        %v869 = vld [vmem:[%s6 + $0x10] sm:$0xff]
        %v870 = vld [vmem:[%s6 + $0x18] sm:$0xff]
        %v871 = vld [vmem:[%s6 + $0x20] sm:$0xff]
        %v872 = vld [vmem:[%s6 + $0x28] sm:$0xff]
        %v873 = vld [vmem:[%s6 + $0x30] sm:$0xff]
        %v874 = vld [vmem:[%s6 + $0x38] sm:$0xff]
        %v875 = vld [vmem:[%s6 + $0x40] sm:$0xff]
        %v876 = vld [vmem:[%s6 + $0x48] sm:$0xff]
        %v877 = vld [vmem:[%s6 + $0x50] sm:$0xff]
        %v878 = vld [vmem:[%s6 + $0x58] sm:$0xff]
        %v879 = vld [vmem:[%s6 + $0x60] sm:$0xff]
        %v880 = vld [vmem:[%s6 + $0x68] sm:$0xff]
        %v881 = vld [vmem:[%s6 + $0x70] sm:$0xff]
        %v882 = vld [vmem:[%s6 + $0x78] sm:$0xff]
        %v883 = vld [vmem:[#allocation4] sm:$0x3]
        %v885 = vlaneseq
        %v886 = vshrl.u32 %v885, 7
        %v887 = vsub.s32 0, %v886
        %v888 = vrot.slane %v883, %v887
        %v889 = vlaneseq
        %v890 = vshrl.u32 %v889, 7
        %v891 = vsub.s32 1, %v890
        %v892 = vrot.slane %v883, %v891
        %v911 = vunpack.c.l.b16 %v867
        %v912 = vunpack.c.h.b16 %v867
        %v913 = vunpack.c.l.b16 %v868
        %v914 = vunpack.c.h.b16 %v868
        %v915 = vunpack.c.l.b16 %v869
        %v916 = vunpack.c.h.b16 %v869
        %v917 = vunpack.c.l.b16 %v870
        %v918 = vunpack.c.h.b16 %v870
        %v919 = vunpack.c.l.b16 %v871
        %v920 = vunpack.c.h.b16 %v871
        %v921 = vunpack.c.l.b16 %v872
        %v922 = vunpack.c.h.b16 %v872
        %v923 = vunpack.c.l.b16 %v873
        %v924 = vunpack.c.h.b16 %v873
        %v925 = vunpack.c.l.b16 %v874
        %v926 = vunpack.c.h.b16 %v874
        %v927 = vunpack.c.l.b16 %v875
        %v928 = vunpack.c.h.b16 %v875
        %v929 = vunpack.c.l.b16 %v876
        %v930 = vunpack.c.h.b16 %v876
        %v931 = vunpack.c.l.b16 %v877
        %v932 = vunpack.c.h.b16 %v877
        %v933 = vunpack.c.l.b16 %v878
        %v934 = vunpack.c.h.b16 %v878
        %v935 = vunpack.c.l.b16 %v879
        %v936 = vunpack.c.h.b16 %v879
        %v937 = vunpack.c.l.b16 %v880
        %v938 = vunpack.c.h.b16 %v880
        %v939 = vunpack.c.l.b16 %v881
        %v940 = vunpack.c.h.b16 %v881
        %v941 = vunpack.c.l.b16 %v882
        %v942 = vunpack.c.h.b16 %v882
        %v943 = vpack.c.b16 %v913, %v911
        %v944 = vpack.c.b16 %v914, %v912
        %v945 = vpack.c.b16 %v917, %v915
        %v946 = vpack.c.b16 %v918, %v916
        %v947 = vpack.c.b16 %v921, %v919
        %v948 = vpack.c.b16 %v922, %v920
        %v949 = vpack.c.b16 %v925, %v923
        %v950 = vpack.c.b16 %v926, %v924
        %v951 = vpack.c.b16 %v929, %v927
        %v952 = vpack.c.b16 %v930, %v928
        %v953 = vpack.c.b16 %v933, %v931
        %v954 = vpack.c.b16 %v934, %v932
        %v955 = vpack.c.b16 %v937, %v935
        %v956 = vpack.c.b16 %v938, %v936
        %v957 = vpack.c.b16 %v941, %v939
        %v958 = vpack.c.b16 %v942, %v940
        %975 = vmatprep.subr.bf16.mxu0 %v958
        %976 = vmatpush1.bf16.msra.mxu0 %v957
        %977 = vmatprep.subr.bf16.mxu0 %v956
        %978 = vmatpush1.bf16.msra.mxu0 %v955
        %979 = vmatprep.subr.bf16.mxu0 %v954
        %980 = vmatpush1.bf16.msra.mxu0 %v953
        %981 = vmatprep.subr.bf16.mxu0 %v952
        %982 = vmatpush1.bf16.msra.mxu0 %v951
        %983 = vmatprep.subr.bf16.mxu0 %v950
        %984 = vmatpush1.bf16.msra.mxu0 %v949
        %985 = vmatprep.subr.bf16.mxu0 %v948
        %986 = vmatpush1.bf16.msra.mxu0 %v947
        %987 = vmatprep.subr.bf16.mxu0 %v946
        %988 = vmatpush1.bf16.msra.mxu0 %v945
        %989 = vmatprep.subr.bf16.mxu0 %v944
        %990 = vmatpush1.bf16.msra.mxu0 %v943
        %991 = vmatprep.subr.bf16.mxu0 0
        %992 = vmatpush2.bf16.msra.mxu0 0
        %993 = vmatprep.subr.bf16.mxu0 0
        %994 = vmatpush2.bf16.msra.mxu0 0
        %995 = vmatprep.subr.bf16.mxu0 0
        %996 = vmatpush2.bf16.msra.mxu0 0
        %997 = vmatprep.subr.bf16.mxu0 0
        %998 = vmatpush2.bf16.msra.mxu0 0
        %999 = vmatprep.subr.bf16.mxu0 0
        %1000 = vmatpush2.bf16.msra.mxu0 0
        %1001 = vmatprep.subr.bf16.mxu0 0
        %1002 = vmatpush2.bf16.msra.mxu0 0
        %1003 = vmatprep.subr.bf16.mxu0 0
        %1004 = vmatpush2.bf16.msra.mxu0 0
        %1005 = vmatprep.subr.bf16.mxu0 0
        %1006 = vmatpush2.bf16.msra.mxu0 0
        %1007 = vmatprep.mubr.bf16.mxu0 0
        %1008 = vmatmul.mubr.bf16.gmra.mxu0 %v755
        %v1009 = vpop.f32.mrf.mxu0
        %v1010 = vadd.f32 %v888, %v1009
        %v1011 = vpop.f32.mrf.mxu0
        %v1012 = vadd.f32 %v892, %v1011
        %v1013 = vpop.f32.mrf.mxu0
        %v1014 = vpop.f32.mrf.mxu0
        %1015 = vdwg.mxu0
        %v1016 = vpack.c.bf16 %v862, %v862
        %1018 = vrot.lane.b32.xlu0 %v1016, 96
        %v1019 = vpop.permute.xlu0 %1018
        %1020 = vrot.lane.b32.xlu0 %v1016, 64
        %v1021 = vpop.permute.xlu0 %1020
        %1022 = vrot.lane.b32.xlu0 %v1016, 32
        %v1023 = vpop.permute.xlu0 %1022
        %v1025 = vunpack.c.l.s4 1983009808
        %v1026 = vunpack.c.0.s8 %v1025
        %v1027 = vlaneseq
        %v1028 = vshrl.u32 %v1027, 7
        %v1029 = vsub.s32 %v1026, %v1028
        %v1030 = vrot.slane %v1016, %v1029
        %v1033 = vunpack.c.l.s4 1983009808
        %v1034 = vunpack.c.0.s8 %v1033
        %v1035 = vlaneseq
        %v1036 = vshrl.u32 %v1035, 7
        %v1037 = vsub.s32 %v1034, %v1036
        %v1038 = vrot.slane %v1021, %v1037
        %v1039 = vcombine.low %v1030, %v1038
        %v1040 = vcombine.high %v1030, %v1038
        %v1042 = vunpack.c.l.s4 1934713408
        %v1043 = vunpack.c.0.s8 %v1042
        %v1044 = vlaneseq
        %v1045 = vshrl.u32 %v1044, 7
        %v1046 = vsub.s32 %v1043, %v1045
        %v1047 = vrot.slane %v1039, %v1046
        %v1049 = vunpack.c.l.s4 1934713408
        %v1050 = vunpack.c.0.s8 %v1049
        %v1051 = vlaneseq
        %v1052 = vshrl.u32 %v1051, 7
        %v1053 = vsub.s32 %v1050, %v1052
        %v1054 = vrot.slane %v1040, %v1053
        %v1055 = vcombine.high %v1047, 0
        %v1056 = vcombine.high %v1054, 0
        %v1059 = vunpack.c.l.s4 1983009808
        %v1060 = vunpack.c.0.s8 %v1059
        %v1061 = vlaneseq
        %v1062 = vshrl.u32 %v1061, 7
        %v1063 = vsub.s32 %v1060, %v1062
        %v1064 = vrot.slane %v1019, %v1063
        %v1067 = vunpack.c.l.s4 1983009808
        %v1068 = vunpack.c.0.s8 %v1067
        %v1069 = vlaneseq
        %v1070 = vshrl.u32 %v1069, 7
        %v1071 = vsub.s32 %v1068, %v1070
        %v1072 = vrot.slane %v1023, %v1071
        %v1073 = vcombine.low %v1064, %v1072
        %v1074 = vcombine.high %v1064, %v1072
        %v1076 = vunpack.c.l.s4 1934713408
        %v1077 = vunpack.c.0.s8 %v1076
        %v1078 = vlaneseq
        %v1079 = vshrl.u32 %v1078, 7
        %v1080 = vsub.s32 %v1077, %v1079
        %v1081 = vrot.slane %v1073, %v1080
        %v1083 = vunpack.c.l.s4 1934713408
        %v1084 = vunpack.c.0.s8 %v1083
        %v1085 = vlaneseq
        %v1086 = vshrl.u32 %v1085, 7
        %v1087 = vsub.s32 %v1084, %v1086
        %v1088 = vrot.slane %v1074, %v1087
        %v1089 = vcombine.high %v1081, 0
        %v1090 = vcombine.high %v1088, 0
        %v1093 = vpack.i.b16 %v1081, %v1047
        %v1095 = vshrl.u32 %v1047, 16
        %v1096 = vshrl.u32 %v1081, 16
        %v1097 = vpack.i.b16 %v1096, %v1095
        %v1101 = vpack.i.b16 %v1089, %v1055
        %v1103 = vshrl.u32 %v1055, 16
        %v1104 = vshrl.u32 %v1089, 16
        %v1105 = vpack.i.b16 %v1104, %v1103
        %v1109 = vpack.i.b16 %v1088, %v1054
        %v1111 = vshrl.u32 %v1054, 16
        %v1112 = vshrl.u32 %v1088, 16
        %v1113 = vpack.i.b16 %v1112, %v1111
        %v1117 = vpack.i.b16 %v1090, %v1056
        %v1119 = vshrl.u32 %v1056, 16
        %v1120 = vshrl.u32 %v1090, 16
        %v1121 = vpack.i.b16 %v1120, %v1119
        %v1123 = vcombine.low %v1093, %v1109
        %v1125 = vunpack.c.l.s4 1983009808
        %v1126 = vunpack.c.0.s8 %v1125
        %v1127 = vlaneseq
        %v1128 = vshrl.u32 %v1127, 7
        %v1129 = vsub.s32 %v1126, %v1128
        %v1130 = vrot.slane %v1123, %v1129
        %v1131 = vcombine.low %v1101, %v1117
        %v1133 = vunpack.c.l.s4 1983009808
        %v1134 = vunpack.c.0.s8 %v1133
        %v1135 = vlaneseq
        %v1136 = vshrl.u32 %v1135, 7
        %v1137 = vsub.s32 %v1134, %v1136
        %v1138 = vrot.slane %v1131, %v1137
        %v1139 = vcombine.low %v1130, %v1138
        %v1141 = vunpack.c.l.s4 1934713408
        %v1142 = vunpack.c.0.s8 %v1141
        %v1143 = vlaneseq
        %v1144 = vshrl.u32 %v1143, 7
        %v1145 = vsub.s32 %v1142, %v1144
        %v1146 = vrot.slane %v1139, %v1145
        %v1147 = vcombine.high %v1146, 0
        %v1148 = vcombine.low %v1097, %v1113
        %v1150 = vunpack.c.l.s4 1983009808
        %v1151 = vunpack.c.0.s8 %v1150
        %v1152 = vlaneseq
        %v1153 = vshrl.u32 %v1152, 7
        %v1154 = vsub.s32 %v1151, %v1153
        %v1155 = vrot.slane %v1148, %v1154
        %v1156 = vcombine.low %v1105, %v1121
        %v1158 = vunpack.c.l.s4 1983009808
        %v1159 = vunpack.c.0.s8 %v1158
        %v1160 = vlaneseq
        %v1161 = vshrl.u32 %v1160, 7
        %v1162 = vsub.s32 %v1159, %v1161
        %v1163 = vrot.slane %v1156, %v1162
        %v1164 = vcombine.low %v1155, %v1163
        %v1166 = vunpack.c.l.s4 1934713408
        %v1167 = vunpack.c.0.s8 %v1166
        %v1168 = vlaneseq
        %v1169 = vshrl.u32 %v1168, 7
        %v1170 = vsub.s32 %v1167, %v1169
        %v1171 = vrot.slane %v1164, %v1170
        %v1172 = vcombine.high %v1171, 0
        %v1175 = vpack.i.b16 %v1171, %v1146
        %v1176 = vshrl.u32 %v1146, 16
        %v1177 = vshrl.u32 %v1171, 16
        %v1178 = vpack.i.b16 %v1177, %v1176
        %v1181 = vpack.i.b16 %v1172, %v1147
        %v1182 = vshrl.u32 %v1147, 16
        %v1183 = vshrl.u32 %v1172, 16
        %v1184 = vpack.i.b16 %v1183, %v1182
        %v1185 = vpack.c.bf16 %v1010, %v1010
        %1187 = vrot.lane.b32.xlu0 %v1185, 96
        %v1188 = vpop.permute.xlu0 %1187
        %1189 = vrot.lane.b32.xlu0 %v1185, 64
        %v1190 = vpop.permute.xlu0 %1189
        %1191 = vrot.lane.b32.xlu0 %v1185, 32
        %v1192 = vpop.permute.xlu0 %1191
        %v1194 = vunpack.c.l.s4 1983009808
        %v1195 = vunpack.c.0.s8 %v1194
        %v1196 = vlaneseq
        %v1197 = vshrl.u32 %v1196, 7
        %v1198 = vsub.s32 %v1195, %v1197
        %v1199 = vrot.slane %v1185, %v1198
        %v1202 = vunpack.c.l.s4 1983009808
        %v1203 = vunpack.c.0.s8 %v1202
        %v1204 = vlaneseq
        %v1205 = vshrl.u32 %v1204, 7
        %v1206 = vsub.s32 %v1203, %v1205
        %v1207 = vrot.slane %v1190, %v1206
        %v1208 = vcombine.low %v1199, %v1207
        %v1209 = vcombine.high %v1199, %v1207
        %v1211 = vunpack.c.l.s4 1934713408
        %v1212 = vunpack.c.0.s8 %v1211
        %v1213 = vlaneseq
        %v1214 = vshrl.u32 %v1213, 7
        %v1215 = vsub.s32 %v1212, %v1214
        %v1216 = vrot.slane %v1208, %v1215
        %v1218 = vunpack.c.l.s4 1934713408
        %v1219 = vunpack.c.0.s8 %v1218
        %v1220 = vlaneseq
        %v1221 = vshrl.u32 %v1220, 7
        %v1222 = vsub.s32 %v1219, %v1221
        %v1223 = vrot.slane %v1209, %v1222
        %v1224 = vcombine.high %v1216, 0
        %v1225 = vcombine.high %v1223, 0
        %v1228 = vunpack.c.l.s4 1983009808
        %v1229 = vunpack.c.0.s8 %v1228
        %v1230 = vlaneseq
        %v1231 = vshrl.u32 %v1230, 7
        %v1232 = vsub.s32 %v1229, %v1231
        %v1233 = vrot.slane %v1188, %v1232
        %v1236 = vunpack.c.l.s4 1983009808
        %v1237 = vunpack.c.0.s8 %v1236
        %v1238 = vlaneseq
        %v1239 = vshrl.u32 %v1238, 7
        %v1240 = vsub.s32 %v1237, %v1239
        %v1241 = vrot.slane %v1192, %v1240
        %v1242 = vcombine.low %v1233, %v1241
        %v1243 = vcombine.high %v1233, %v1241
        %v1245 = vunpack.c.l.s4 1934713408
        %v1246 = vunpack.c.0.s8 %v1245
        %v1247 = vlaneseq
        %v1248 = vshrl.u32 %v1247, 7
        %v1249 = vsub.s32 %v1246, %v1248
        %v1250 = vrot.slane %v1242, %v1249
        %v1252 = vunpack.c.l.s4 1934713408
        %v1253 = vunpack.c.0.s8 %v1252
        %v1254 = vlaneseq
        %v1255 = vshrl.u32 %v1254, 7
        %v1256 = vsub.s32 %v1253, %v1255
        %v1257 = vrot.slane %v1243, %v1256
        %v1258 = vcombine.high %v1250, 0
        %v1259 = vcombine.high %v1257, 0
        %v1262 = vpack.i.b16 %v1250, %v1216
        %v1264 = vshrl.u32 %v1216, 16
        %v1265 = vshrl.u32 %v1250, 16
        %v1266 = vpack.i.b16 %v1265, %v1264
        %v1270 = vpack.i.b16 %v1258, %v1224
        %v1272 = vshrl.u32 %v1224, 16
        %v1273 = vshrl.u32 %v1258, 16
        %v1274 = vpack.i.b16 %v1273, %v1272
        %v1278 = vpack.i.b16 %v1257, %v1223
        %v1280 = vshrl.u32 %v1223, 16
        %v1281 = vshrl.u32 %v1257, 16
        %v1282 = vpack.i.b16 %v1281, %v1280
        %v1286 = vpack.i.b16 %v1259, %v1225
        %v1288 = vshrl.u32 %v1225, 16
        %v1289 = vshrl.u32 %v1259, 16
        %v1290 = vpack.i.b16 %v1289, %v1288
        %v1292 = vcombine.low %v1262, %v1278
        %v1294 = vunpack.c.l.s4 1983009808
        %v1295 = vunpack.c.0.s8 %v1294
        %v1296 = vlaneseq
        %v1297 = vshrl.u32 %v1296, 7
        %v1298 = vsub.s32 %v1295, %v1297
        %v1299 = vrot.slane %v1292, %v1298
        %v1300 = vcombine.low %v1270, %v1286
        %v1302 = vunpack.c.l.s4 1983009808
        %v1303 = vunpack.c.0.s8 %v1302
        %v1304 = vlaneseq
        %v1305 = vshrl.u32 %v1304, 7
        %v1306 = vsub.s32 %v1303, %v1305
        %v1307 = vrot.slane %v1300, %v1306
        %v1308 = vcombine.low %v1299, %v1307
        %v1310 = vunpack.c.l.s4 1934713408
        %v1311 = vunpack.c.0.s8 %v1310
        %v1312 = vlaneseq
        %v1313 = vshrl.u32 %v1312, 7
        %v1314 = vsub.s32 %v1311, %v1313
        %v1315 = vrot.slane %v1308, %v1314
        %v1316 = vcombine.high %v1315, 0
        %v1317 = vcombine.low %v1266, %v1282
        %v1319 = vunpack.c.l.s4 1983009808
        %v1320 = vunpack.c.0.s8 %v1319
        %v1321 = vlaneseq
        %v1322 = vshrl.u32 %v1321, 7
        %v1323 = vsub.s32 %v1320, %v1322
        %v1324 = vrot.slane %v1317, %v1323
        %v1325 = vcombine.low %v1274, %v1290
        %v1327 = vunpack.c.l.s4 1983009808
        %v1328 = vunpack.c.0.s8 %v1327
        %v1329 = vlaneseq
        %v1330 = vshrl.u32 %v1329, 7
        %v1331 = vsub.s32 %v1328, %v1330
        %v1332 = vrot.slane %v1325, %v1331
        %v1333 = vcombine.low %v1324, %v1332
        %v1335 = vunpack.c.l.s4 1934713408
        %v1336 = vunpack.c.0.s8 %v1335
        %v1337 = vlaneseq
        %v1338 = vshrl.u32 %v1337, 7
        %v1339 = vsub.s32 %v1336, %v1338
        %v1340 = vrot.slane %v1333, %v1339
        %v1341 = vcombine.high %v1340, 0
        %v1344 = vpack.i.b16 %v1340, %v1315
        %v1345 = vshrl.u32 %v1315, 16
        %v1346 = vshrl.u32 %v1340, 16
        %v1347 = vpack.i.b16 %v1346, %v1345
        %v1350 = vpack.i.b16 %v1341, %v1316
        %v1351 = vshrl.u32 %v1316, 16
        %v1352 = vshrl.u32 %v1341, 16
        %v1353 = vpack.i.b16 %v1352, %v1351
        %v1354 = vpack.c.bf16 %v1012, %v1012
        %1356 = vrot.lane.b32.xlu0 %v1354, 96
        %v1357 = vpop.permute.xlu0 %1356
        %1358 = vrot.lane.b32.xlu0 %v1354, 64
        %v1359 = vpop.permute.xlu0 %1358
        %1360 = vrot.lane.b32.xlu0 %v1354, 32
        %v1361 = vpop.permute.xlu0 %1360
        %v1363 = vunpack.c.l.s4 1983009808
        %v1364 = vunpack.c.0.s8 %v1363
        %v1365 = vlaneseq
        %v1366 = vshrl.u32 %v1365, 7
        %v1367 = vsub.s32 %v1364, %v1366
        %v1368 = vrot.slane %v1354, %v1367
        %v1371 = vunpack.c.l.s4 1983009808
        %v1372 = vunpack.c.0.s8 %v1371
        %v1373 = vlaneseq
        %v1374 = vshrl.u32 %v1373, 7
        %v1375 = vsub.s32 %v1372, %v1374
        %v1376 = vrot.slane %v1359, %v1375
        %v1377 = vcombine.low %v1368, %v1376
        %v1378 = vcombine.high %v1368, %v1376
        %v1380 = vunpack.c.l.s4 1934713408
        %v1381 = vunpack.c.0.s8 %v1380
        %v1382 = vlaneseq
        %v1383 = vshrl.u32 %v1382, 7
        %v1384 = vsub.s32 %v1381, %v1383
        %v1385 = vrot.slane %v1377, %v1384
        %v1387 = vunpack.c.l.s4 1934713408
        %v1388 = vunpack.c.0.s8 %v1387
        %v1389 = vlaneseq
        %v1390 = vshrl.u32 %v1389, 7
        %v1391 = vsub.s32 %v1388, %v1390
        %v1392 = vrot.slane %v1378, %v1391
        %v1393 = vcombine.high %v1385, 0
        %v1394 = vcombine.high %v1392, 0
        %v1397 = vunpack.c.l.s4 1983009808
        %v1398 = vunpack.c.0.s8 %v1397
        %v1399 = vlaneseq
        %v1400 = vshrl.u32 %v1399, 7
        %v1401 = vsub.s32 %v1398, %v1400
        %v1402 = vrot.slane %v1357, %v1401
        %v1405 = vunpack.c.l.s4 1983009808
        %v1406 = vunpack.c.0.s8 %v1405
        %v1407 = vlaneseq
        %v1408 = vshrl.u32 %v1407, 7
        %v1409 = vsub.s32 %v1406, %v1408
        %v1410 = vrot.slane %v1361, %v1409
        %v1411 = vcombine.low %v1402, %v1410
        %v1412 = vcombine.high %v1402, %v1410
        %v1414 = vunpack.c.l.s4 1934713408
        %v1415 = vunpack.c.0.s8 %v1414
        %v1416 = vlaneseq
        %v1417 = vshrl.u32 %v1416, 7
        %v1418 = vsub.s32 %v1415, %v1417
        %v1419 = vrot.slane %v1411, %v1418
        %v1421 = vunpack.c.l.s4 1934713408
        %v1422 = vunpack.c.0.s8 %v1421
        %v1423 = vlaneseq
        %v1424 = vshrl.u32 %v1423, 7
        %v1425 = vsub.s32 %v1422, %v1424
        %v1426 = vrot.slane %v1412, %v1425
        %v1427 = vcombine.high %v1419, 0
        %v1428 = vcombine.high %v1426, 0
        %v1431 = vpack.i.b16 %v1419, %v1385
        %v1433 = vshrl.u32 %v1385, 16
        %v1434 = vshrl.u32 %v1419, 16
        %v1435 = vpack.i.b16 %v1434, %v1433
        %v1439 = vpack.i.b16 %v1427, %v1393
        %v1441 = vshrl.u32 %v1393, 16
        %v1442 = vshrl.u32 %v1427, 16
        %v1443 = vpack.i.b16 %v1442, %v1441
        %v1447 = vpack.i.b16 %v1426, %v1392
        %v1449 = vshrl.u32 %v1392, 16
        %v1450 = vshrl.u32 %v1426, 16
        %v1451 = vpack.i.b16 %v1450, %v1449
        %v1455 = vpack.i.b16 %v1428, %v1394
        %v1457 = vshrl.u32 %v1394, 16
        %v1458 = vshrl.u32 %v1428, 16
        %v1459 = vpack.i.b16 %v1458, %v1457
        %v1461 = vcombine.low %v1431, %v1447
        %v1463 = vunpack.c.l.s4 1983009808
        %v1464 = vunpack.c.0.s8 %v1463
        %v1465 = vlaneseq
        %v1466 = vshrl.u32 %v1465, 7
        %v1467 = vsub.s32 %v1464, %v1466
        %v1468 = vrot.slane %v1461, %v1467
        %v1469 = vcombine.low %v1439, %v1455
        %v1471 = vunpack.c.l.s4 1983009808
        %v1472 = vunpack.c.0.s8 %v1471
        %v1473 = vlaneseq
        %v1474 = vshrl.u32 %v1473, 7
        %v1475 = vsub.s32 %v1472, %v1474
        %v1476 = vrot.slane %v1469, %v1475
        %v1477 = vcombine.low %v1468, %v1476
        %v1479 = vunpack.c.l.s4 1934713408
        %v1480 = vunpack.c.0.s8 %v1479
        %v1481 = vlaneseq
        %v1482 = vshrl.u32 %v1481, 7
        %v1483 = vsub.s32 %v1480, %v1482
        %v1484 = vrot.slane %v1477, %v1483
        %v1485 = vcombine.high %v1484, 0
        %v1486 = vcombine.low %v1435, %v1451
        %v1488 = vunpack.c.l.s4 1983009808
        %v1489 = vunpack.c.0.s8 %v1488
        %v1490 = vlaneseq
        %v1491 = vshrl.u32 %v1490, 7
        %v1492 = vsub.s32 %v1489, %v1491
        %v1493 = vrot.slane %v1486, %v1492
        %v1494 = vcombine.low %v1443, %v1459
        %v1496 = vunpack.c.l.s4 1983009808
        %v1497 = vunpack.c.0.s8 %v1496
        %v1498 = vlaneseq
        %v1499 = vshrl.u32 %v1498, 7
        %v1500 = vsub.s32 %v1497, %v1499
        %v1501 = vrot.slane %v1494, %v1500
        %v1502 = vcombine.low %v1493, %v1501
        %v1504 = vunpack.c.l.s4 1934713408
        %v1505 = vunpack.c.0.s8 %v1504
        %v1506 = vlaneseq
        %v1507 = vshrl.u32 %v1506, 7
        %v1508 = vsub.s32 %v1505, %v1507
        %v1509 = vrot.slane %v1502, %v1508
        %v1510 = vcombine.high %v1509, 0
        %v1513 = vpack.i.b16 %v1509, %v1484
        %v1514 = vshrl.u32 %v1484, 16
        %v1515 = vshrl.u32 %v1509, 16
        %v1516 = vpack.i.b16 %v1515, %v1514
        %v1519 = vpack.i.b16 %v1510, %v1485
        %v1520 = vshrl.u32 %v1485, 16
        %v1521 = vshrl.u32 %v1510, 16
        %v1522 = vpack.i.b16 %v1521, %v1520
        %vm1523 = vcmask 261120
        %v1525 = vsel %vm1523, %v1175, 0
        %v1528 = vsel %vm1523, %v1344, 0
        %1530 = vmatprep.subr.bf16.mxu0 0
        %1531 = vmatpush1.bf16.xpose.msra.mxu0 0
        %1532 = vmatprep.subr.bf16.mxu0 0
        %1533 = vmatpush1.bf16.xpose.msra.mxu0 0
        %1534 = vmatprep.subr.bf16.mxu0 0
        %1535 = vmatpush1.bf16.xpose.msra.mxu0 0
        %1536 = vmatprep.subr.bf16.mxu0 0
        %1537 = vmatpush1.bf16.xpose.msra.mxu0 0
        %1538 = vmatprep.subr.bf16.mxu0 0
        %1539 = vmatpush1.bf16.xpose.msra.mxu0 0
        %1540 = vmatprep.subr.bf16.mxu0 0
        %1541 = vmatpush1.bf16.xpose.msra.mxu0 0
        %1542 = vmatprep.subr.bf16.mxu0 0
        %1543 = vmatpush1.bf16.xpose.msra.mxu0 0
        %1544 = vmatprep.subr.bf16.mxu0 0
        %1545 = vmatpush1.bf16.xpose.msra.mxu0 %v1528
        %1546 = vmatprep.subr.bf16.mxu0 0
        %1547 = vmatpush2.bf16.xpose.msra.mxu0 0
        %1548 = vmatprep.subr.bf16.mxu0 0
        %1549 = vmatpush2.bf16.xpose.msra.mxu0 0
        %1550 = vmatprep.subr.bf16.mxu0 0
        %1551 = vmatpush2.bf16.xpose.msra.mxu0 0
        %1552 = vmatprep.subr.bf16.mxu0 0
        %1553 = vmatpush2.bf16.xpose.msra.mxu0 0
        %1554 = vmatprep.subr.bf16.mxu0 0
        %1555 = vmatpush2.bf16.xpose.msra.mxu0 0
        %1556 = vmatprep.subr.bf16.mxu0 0
        %1557 = vmatpush2.bf16.xpose.msra.mxu0 0
        %1558 = vmatprep.subr.bf16.mxu0 0
        %1559 = vmatpush2.bf16.xpose.msra.mxu0 0
        %1560 = vmatprep.subr.bf16.mxu0 0
        %1561 = vmatpush2.bf16.xpose.msra.mxu0 0
        %1562 = vmatprep.mubr.bf16.mxu0 0
        %1563 = vmatmul.mubr.bf16.gmra.mxu0 %v1525
        %v1564 = vpop.f32.mrf.mxu0
        %v1565 = vadd.f32 0.0, %v1564
        %v1566 = vpop.f32.mrf.mxu0
        %v1567 = vpop.f32.mrf.mxu0
        %v1568 = vpop.f32.mrf.mxu0
        %1569 = vdwg.mxu0
        %v1571 = vsel %vm1523, %v1178, 0
        %v1574 = vsel %vm1523, %v1347, 0
        %1576 = vmatprep.subr.bf16.mxu0 0
        %1577 = vmatpush1.bf16.xpose.msra.mxu0 0
        %1578 = vmatprep.subr.bf16.mxu0 0
        %1579 = vmatpush1.bf16.xpose.msra.mxu0 0
        %1580 = vmatprep.subr.bf16.mxu0 0
        %1581 = vmatpush1.bf16.xpose.msra.mxu0 0
        %1582 = vmatprep.subr.bf16.mxu0 0
        %1583 = vmatpush1.bf16.xpose.msra.mxu0 0
        %1584 = vmatprep.subr.bf16.mxu0 0
        %1585 = vmatpush1.bf16.xpose.msra.mxu0 0
        %1586 = vmatprep.subr.bf16.mxu0 0
        %1587 = vmatpush1.bf16.xpose.msra.mxu0 0
        %1588 = vmatprep.subr.bf16.mxu0 0
        %1589 = vmatpush1.bf16.xpose.msra.mxu0 0
        %1590 = vmatprep.subr.bf16.mxu0 0
        %1591 = vmatpush1.bf16.xpose.msra.mxu0 %v1574
        %1592 = vmatprep.subr.bf16.mxu0 0
        %1593 = vmatpush2.bf16.xpose.msra.mxu0 0
        %1594 = vmatprep.subr.bf16.mxu0 0
        %1595 = vmatpush2.bf16.xpose.msra.mxu0 0
        %1596 = vmatprep.subr.bf16.mxu0 0
        %1597 = vmatpush2.bf16.xpose.msra.mxu0 0
        %1598 = vmatprep.subr.bf16.mxu0 0
        %1599 = vmatpush2.bf16.xpose.msra.mxu0 0
        %1600 = vmatprep.subr.bf16.mxu0 0
        %1601 = vmatpush2.bf16.xpose.msra.mxu0 0
        %1602 = vmatprep.subr.bf16.mxu0 0
        %1603 = vmatpush2.bf16.xpose.msra.mxu0 0
        %1604 = vmatprep.subr.bf16.mxu0 0
        %1605 = vmatpush2.bf16.xpose.msra.mxu0 0
        %1606 = vmatprep.subr.bf16.mxu0 0
        %1607 = vmatpush2.bf16.xpose.msra.mxu0 0
        %1608 = vmatprep.mubr.bf16.mxu0 0
        %1609 = vmatmul.mubr.bf16.gmra.mxu0 %v1571
        %v1610 = vpop.f32.mrf.mxu0
        %v1611 = vadd.f32 0.0, %v1610
        %v1612 = vpop.f32.mrf.mxu0
        %v1613 = vpop.f32.mrf.mxu0
        %v1614 = vpop.f32.mrf.mxu0
        %1615 = vdwg.mxu0
        %v1617 = vsel %vm1523, %v1181, 0
        %v1620 = vsel %vm1523, %v1350, 0
        %1622 = vmatprep.subr.bf16.mxu0 0
        %1623 = vmatpush1.bf16.xpose.msra.mxu0 0
        %1624 = vmatprep.subr.bf16.mxu0 0
        %1625 = vmatpush1.bf16.xpose.msra.mxu0 0
        %1626 = vmatprep.subr.bf16.mxu0 0
        %1627 = vmatpush1.bf16.xpose.msra.mxu0 0
        %1628 = vmatprep.subr.bf16.mxu0 0
        %1629 = vmatpush1.bf16.xpose.msra.mxu0 0
        %1630 = vmatprep.subr.bf16.mxu0 0
        %1631 = vmatpush1.bf16.xpose.msra.mxu0 0
        %1632 = vmatprep.subr.bf16.mxu0 0
        %1633 = vmatpush1.bf16.xpose.msra.mxu0 0
        %1634 = vmatprep.subr.bf16.mxu0 0
        %1635 = vmatpush1.bf16.xpose.msra.mxu0 0
        %1636 = vmatprep.subr.bf16.mxu0 0
        %1637 = vmatpush1.bf16.xpose.msra.mxu0 %v1620
        %1638 = vmatprep.subr.bf16.mxu0 0
        %1639 = vmatpush2.bf16.xpose.msra.mxu0 0
        %1640 = vmatprep.subr.bf16.mxu0 0
        %1641 = vmatpush2.bf16.xpose.msra.mxu0 0
        %1642 = vmatprep.subr.bf16.mxu0 0
        %1643 = vmatpush2.bf16.xpose.msra.mxu0 0
        %1644 = vmatprep.subr.bf16.mxu0 0
        %1645 = vmatpush2.bf16.xpose.msra.mxu0 0
        %1646 = vmatprep.subr.bf16.mxu0 0
        %1647 = vmatpush2.bf16.xpose.msra.mxu0 0
        %1648 = vmatprep.subr.bf16.mxu0 0
        %1649 = vmatpush2.bf16.xpose.msra.mxu0 0
        %1650 = vmatprep.subr.bf16.mxu0 0
        %1651 = vmatpush2.bf16.xpose.msra.mxu0 0
        %1652 = vmatprep.subr.bf16.mxu0 0
        %1653 = vmatpush2.bf16.xpose.msra.mxu0 0
        %1654 = vmatprep.mubr.bf16.mxu0 0
        %1655 = vmatmul.mubr.bf16.gmra.mxu0 %v1617
        %v1656 = vpop.f32.mrf.mxu0
        %v1657 = vadd.f32 0.0, %v1656
        %v1658 = vpop.f32.mrf.mxu0
        %v1659 = vpop.f32.mrf.mxu0
        %v1660 = vpop.f32.mrf.mxu0
        %1661 = vdwg.mxu0
        %v1663 = vsel %vm1523, %v1184, 0
        %v1666 = vsel %vm1523, %v1353, 0
        %1668 = vmatprep.subr.bf16.mxu0 0
        %1669 = vmatpush1.bf16.xpose.msra.mxu0 0
        %1670 = vmatprep.subr.bf16.mxu0 0
        %1671 = vmatpush1.bf16.xpose.msra.mxu0 0
        %1672 = vmatprep.subr.bf16.mxu0 0
        %1673 = vmatpush1.bf16.xpose.msra.mxu0 0
        %1674 = vmatprep.subr.bf16.mxu0 0
        %1675 = vmatpush1.bf16.xpose.msra.mxu0 0
        %1676 = vmatprep.subr.bf16.mxu0 0
        %1677 = vmatpush1.bf16.xpose.msra.mxu0 0
        %1678 = vmatprep.subr.bf16.mxu0 0
        %1679 = vmatpush1.bf16.xpose.msra.mxu0 0
        %1680 = vmatprep.subr.bf16.mxu0 0
        %1681 = vmatpush1.bf16.xpose.msra.mxu0 0
        %1682 = vmatprep.subr.bf16.mxu0 0
        %1683 = vmatpush1.bf16.xpose.msra.mxu0 %v1666
        %1684 = vmatprep.subr.bf16.mxu0 0
        %1685 = vmatpush2.bf16.xpose.msra.mxu0 0
        %1686 = vmatprep.subr.bf16.mxu0 0
        %1687 = vmatpush2.bf16.xpose.msra.mxu0 0
        %1688 = vmatprep.subr.bf16.mxu0 0
        %1689 = vmatpush2.bf16.xpose.msra.mxu0 0
        %1690 = vmatprep.subr.bf16.mxu0 0
        %1691 = vmatpush2.bf16.xpose.msra.mxu0 0
        %1692 = vmatprep.subr.bf16.mxu0 0
        %1693 = vmatpush2.bf16.xpose.msra.mxu0 0
        %1694 = vmatprep.subr.bf16.mxu0 0
        %1695 = vmatpush2.bf16.xpose.msra.mxu0 0
        %1696 = vmatprep.subr.bf16.mxu0 0
        %1697 = vmatpush2.bf16.xpose.msra.mxu0 0
        %1698 = vmatprep.subr.bf16.mxu0 0
        %1699 = vmatpush2.bf16.xpose.msra.mxu0 0
        %1700 = vmatprep.mubr.bf16.mxu0 0
        %1701 = vmatmul.mubr.bf16.gmra.mxu0 %v1663
        %v1702 = vpop.f32.mrf.mxu0
        %v1703 = vadd.f32 0.0, %v1702
        %v1704 = vpop.f32.mrf.mxu0
        %v1705 = vpop.f32.mrf.mxu0
        %v1706 = vpop.f32.mrf.mxu0
        %1707 = vdwg.mxu0
        %vm1708 = vcmask 64512
        %v1709 = vsel %vm1708, %v1565, -inf
        %1710 = vmax.xlane.f32.xlu0 %v1709
        %v1711 = vpop.xlane.xlu0 %1710
        %v1712 = vsel %vm1708, %v1611, -inf
        %1713 = vmax.xlane.f32.xlu0 %v1712
        %v1714 = vpop.xlane.xlu0 %1713
        %v1715 = vsel %vm1708, %v1657, -inf
        %1716 = vmax.xlane.f32.xlu0 %v1715
        %v1717 = vpop.xlane.xlu0 %1716
        %v1718 = vsel %vm1708, %v1703, -inf
        %1719 = vmax.xlane.f32.xlu0 %v1718
        %v1720 = vpop.xlane.xlu0 %1719
        %v1721 = vsub.f32 %v1565, %v1711
        %v1722 = vsub.f32 %v1611, %v1714
        %v1723 = vsub.f32 %v1657, %v1717
        %v1724 = vsub.f32 %v1703, %v1720
        %v1725 = vmul.f32 %v1721, 1.442695
        %v1726 = vpow.pop %v1725
        %v1727 = vmul.f32 %v1722, 1.442695
        %v1728 = vpow.pop %v1727
        %v1729 = vmul.f32 %v1723, 1.442695
        %v1730 = vpow.pop %v1729
        %v1731 = vmul.f32 %v1724, 1.442695
        %v1732 = vpow.pop %v1731
        %v1733 = vsel %vm1708, %v1726, 0.0
        %1734 = vadd.xlane.f32.xlu0 %v1733
        %v1735 = vpop.xlane.xlu0 %1734
        %v1736 = vsel %vm1708, %v1728, 0.0
        %1737 = vadd.xlane.f32.xlu0 %v1736
        %v1738 = vpop.xlane.xlu0 %1737
        %v1739 = vsel %vm1708, %v1730, 0.0
        %1740 = vadd.xlane.f32.xlu0 %v1739
        %v1741 = vpop.xlane.xlu0 %1740
        %v1742 = vsel %vm1708, %v1732, 0.0
        %1743 = vadd.xlane.f32.xlu0 %v1742
        %v1744 = vpop.xlane.xlu0 %1743
        %v1745 = vrcp.pop %v1735
        %v1746 = vrcp.pop %v1738
        %v1747 = vrcp.pop %v1741
        %v1748 = vrcp.pop %v1744
        %v1749 = vmul.f32 %v1726, %v1745
        %v1750 = vmul.f32 %v1728, %v1746
        %v1751 = vmul.f32 %v1730, %v1747
        %v1752 = vmul.f32 %v1732, %v1748
        %v1753 = vpack.c.bf16 %v1749, %v1749
        %v1754 = vpack.c.bf16 %v1750, %v1750
        %v1755 = vpack.c.bf16 %v1751, %v1751
        %v1756 = vpack.c.bf16 %v1752, %v1752
        %v1758 = vsel %vm1708, %v1753, 0
        %vm1760 = vcmask 1043456
        %v1762 = vsel %vm1760, %v1513, 0
        %1764 = vmatprep.subr.bf16.mxu0 0
        %1765 = vmatpush1.bf16.msra.mxu0 0
        %1766 = vmatprep.subr.bf16.mxu0 0
        %1767 = vmatpush1.bf16.msra.mxu0 0
        %1768 = vmatprep.subr.bf16.mxu0 0
        %1769 = vmatpush1.bf16.msra.mxu0 0
        %1770 = vmatprep.subr.bf16.mxu0 0
        %1771 = vmatpush1.bf16.msra.mxu0 0
        %1772 = vmatprep.subr.bf16.mxu0 0
        %1773 = vmatpush1.bf16.msra.mxu0 0
        %1774 = vmatprep.subr.bf16.mxu0 0
        %1775 = vmatpush1.bf16.msra.mxu0 0
        %1776 = vmatprep.subr.bf16.mxu0 0
        %1777 = vmatpush1.bf16.msra.mxu0 0
        %1778 = vmatprep.subr.bf16.mxu0 0
        %1779 = vmatpush1.bf16.msra.mxu0 %v1762
        %1780 = vmatprep.subr.bf16.mxu0 0
        %1781 = vmatpush2.bf16.msra.mxu0 0
        %1782 = vmatprep.subr.bf16.mxu0 0
        %1783 = vmatpush2.bf16.msra.mxu0 0
        %1784 = vmatprep.subr.bf16.mxu0 0
        %1785 = vmatpush2.bf16.msra.mxu0 0
        %1786 = vmatprep.subr.bf16.mxu0 0
        %1787 = vmatpush2.bf16.msra.mxu0 0
        %1788 = vmatprep.subr.bf16.mxu0 0
        %1789 = vmatpush2.bf16.msra.mxu0 0
        %1790 = vmatprep.subr.bf16.mxu0 0
        %1791 = vmatpush2.bf16.msra.mxu0 0
        %1792 = vmatprep.subr.bf16.mxu0 0
        %1793 = vmatpush2.bf16.msra.mxu0 0
        %1794 = vmatprep.subr.bf16.mxu0 0
        %1795 = vmatpush2.bf16.msra.mxu0 0
        %1796 = vmatprep.mubr.bf16.mxu0 0
        %1797 = vmatmul.mubr.bf16.gmra.mxu0 %v1758
        %v1798 = vpop.f32.mrf.mxu0
        %v1799 = vadd.f32 0.0, %v1798
        %v1800 = vpop.f32.mrf.mxu0
        %v1801 = vpop.f32.mrf.mxu0
        %v1802 = vpop.f32.mrf.mxu0
        %1803 = vdwg.mxu0
        %v1805 = vsel %vm1708, %v1754, 0
        %v1808 = vsel %vm1760, %v1516, 0
        %1810 = vmatprep.subr.bf16.mxu0 0
        %1811 = vmatpush1.bf16.msra.mxu0 0
        %1812 = vmatprep.subr.bf16.mxu0 0
        %1813 = vmatpush1.bf16.msra.mxu0 0
        %1814 = vmatprep.subr.bf16.mxu0 0
        %1815 = vmatpush1.bf16.msra.mxu0 0
        %1816 = vmatprep.subr.bf16.mxu0 0
        %1817 = vmatpush1.bf16.msra.mxu0 0
        %1818 = vmatprep.subr.bf16.mxu0 0
        %1819 = vmatpush1.bf16.msra.mxu0 0
        %1820 = vmatprep.subr.bf16.mxu0 0
        %1821 = vmatpush1.bf16.msra.mxu0 0
        %1822 = vmatprep.subr.bf16.mxu0 0
        %1823 = vmatpush1.bf16.msra.mxu0 0
        %1824 = vmatprep.subr.bf16.mxu0 0
        %1825 = vmatpush1.bf16.msra.mxu0 %v1808
        %1826 = vmatprep.subr.bf16.mxu0 0
        %1827 = vmatpush2.bf16.msra.mxu0 0
        %1828 = vmatprep.subr.bf16.mxu0 0
        %1829 = vmatpush2.bf16.msra.mxu0 0
        %1830 = vmatprep.subr.bf16.mxu0 0
        %1831 = vmatpush2.bf16.msra.mxu0 0
        %1832 = vmatprep.subr.bf16.mxu0 0
        %1833 = vmatpush2.bf16.msra.mxu0 0
        %1834 = vmatprep.subr.bf16.mxu0 0
        %1835 = vmatpush2.bf16.msra.mxu0 0
        %1836 = vmatprep.subr.bf16.mxu0 0
        %1837 = vmatpush2.bf16.msra.mxu0 0
        %1838 = vmatprep.subr.bf16.mxu0 0
        %1839 = vmatpush2.bf16.msra.mxu0 0
        %1840 = vmatprep.subr.bf16.mxu0 0
        %1841 = vmatpush2.bf16.msra.mxu0 0
        %1842 = vmatprep.mubr.bf16.mxu0 0
        %1843 = vmatmul.mubr.bf16.gmra.mxu0 %v1805
        %v1844 = vpop.f32.mrf.mxu0
        %v1845 = vadd.f32 0.0, %v1844
        %v1846 = vpop.f32.mrf.mxu0
        %v1847 = vpop.f32.mrf.mxu0
        %v1848 = vpop.f32.mrf.mxu0
        %1849 = vdwg.mxu0
        %v1851 = vsel %vm1708, %v1755, 0
        %v1854 = vsel %vm1760, %v1519, 0
        %1856 = vmatprep.subr.bf16.mxu0 0
        %1857 = vmatpush1.bf16.msra.mxu0 0
        %1858 = vmatprep.subr.bf16.mxu0 0
        %1859 = vmatpush1.bf16.msra.mxu0 0
        %1860 = vmatprep.subr.bf16.mxu0 0
        %1861 = vmatpush1.bf16.msra.mxu0 0
        %1862 = vmatprep.subr.bf16.mxu0 0
        %1863 = vmatpush1.bf16.msra.mxu0 0
        %1864 = vmatprep.subr.bf16.mxu0 0
        %1865 = vmatpush1.bf16.msra.mxu0 0
        %1866 = vmatprep.subr.bf16.mxu0 0
        %1867 = vmatpush1.bf16.msra.mxu0 0
        %1868 = vmatprep.subr.bf16.mxu0 0
        %1869 = vmatpush1.bf16.msra.mxu0 0
        %1870 = vmatprep.subr.bf16.mxu0 0
        %1871 = vmatpush1.bf16.msra.mxu0 %v1854
        %1872 = vmatprep.subr.bf16.mxu0 0
        %1873 = vmatpush2.bf16.msra.mxu0 0
        %1874 = vmatprep.subr.bf16.mxu0 0
        %1875 = vmatpush2.bf16.msra.mxu0 0
        %1876 = vmatprep.subr.bf16.mxu0 0
        %1877 = vmatpush2.bf16.msra.mxu0 0
        %1878 = vmatprep.subr.bf16.mxu0 0
        %1879 = vmatpush2.bf16.msra.mxu0 0
        %1880 = vmatprep.subr.bf16.mxu0 0
        %1881 = vmatpush2.bf16.msra.mxu0 0
        %1882 = vmatprep.subr.bf16.mxu0 0
        %1883 = vmatpush2.bf16.msra.mxu0 0
        %1884 = vmatprep.subr.bf16.mxu0 0
        %1885 = vmatpush2.bf16.msra.mxu0 0
        %1886 = vmatprep.subr.bf16.mxu0 0
        %1887 = vmatpush2.bf16.msra.mxu0 0
        %1888 = vmatprep.mubr.bf16.mxu0 0
        %1889 = vmatmul.mubr.bf16.gmra.mxu0 %v1851
        %v1890 = vpop.f32.mrf.mxu0
        %v1891 = vadd.f32 0.0, %v1890
        %v1892 = vpop.f32.mrf.mxu0
        %v1893 = vpop.f32.mrf.mxu0
        %v1894 = vpop.f32.mrf.mxu0
        %1895 = vdwg.mxu0
        %v1897 = vsel %vm1708, %v1756, 0
        %v1900 = vsel %vm1760, %v1522, 0
        %1902 = vmatprep.subr.bf16.mxu0 0
        %1903 = vmatpush1.bf16.msra.mxu0 0
        %1904 = vmatprep.subr.bf16.mxu0 0
        %1905 = vmatpush1.bf16.msra.mxu0 0
        %1906 = vmatprep.subr.bf16.mxu0 0
        %1907 = vmatpush1.bf16.msra.mxu0 0
        %1908 = vmatprep.subr.bf16.mxu0 0
        %1909 = vmatpush1.bf16.msra.mxu0 0
        %1910 = vmatprep.subr.bf16.mxu0 0
        %1911 = vmatpush1.bf16.msra.mxu0 0
        %1912 = vmatprep.subr.bf16.mxu0 0
        %1913 = vmatpush1.bf16.msra.mxu0 0
        %1914 = vmatprep.subr.bf16.mxu0 0
        %1915 = vmatpush1.bf16.msra.mxu0 0
        %1916 = vmatprep.subr.bf16.mxu0 0
        %1917 = vmatpush1.bf16.msra.mxu0 %v1900
        %1918 = vmatprep.subr.bf16.mxu0 0
        %1919 = vmatpush2.bf16.msra.mxu0 0
        %1920 = vmatprep.subr.bf16.mxu0 0
        %1921 = vmatpush2.bf16.msra.mxu0 0
        %1922 = vmatprep.subr.bf16.mxu0 0
        %1923 = vmatpush2.bf16.msra.mxu0 0
        %1924 = vmatprep.subr.bf16.mxu0 0
        %1925 = vmatpush2.bf16.msra.mxu0 0
        %1926 = vmatprep.subr.bf16.mxu0 0
        %1927 = vmatpush2.bf16.msra.mxu0 0
        %1928 = vmatprep.subr.bf16.mxu0 0
        %1929 = vmatpush2.bf16.msra.mxu0 0
        %1930 = vmatprep.subr.bf16.mxu0 0
        %1931 = vmatpush2.bf16.msra.mxu0 0
        %1932 = vmatprep.subr.bf16.mxu0 0
        %1933 = vmatpush2.bf16.msra.mxu0 0
        %1934 = vmatprep.mubr.bf16.mxu0 0
        %1935 = vmatmul.mubr.bf16.gmra.mxu0 %v1897
        %v1936 = vpop.f32.mrf.mxu0
        %v1937 = vadd.f32 0.0, %v1936
        %v1938 = vpop.f32.mrf.mxu0
        %v1939 = vpop.f32.mrf.mxu0
        %v1940 = vpop.f32.mrf.mxu0
        %1941 = vdwg.mxu0
        %v1942 = vpack.c.bf16 %v1799, %v1799
        %v1944 = vunpack.c.l.s4 1983009808
        %v1945 = vunpack.c.0.s8 %v1944
        %v1946 = vlaneseq
        %v1947 = vshrl.u32 %v1946, 7
        %v1948 = vsub.s32 %v1945, %v1947
        %v1949 = vrot.slane %v1942, %v1948
        %v1950 = vpack.c.bf16 %v1891, %v1891
        %v1952 = vunpack.c.l.s4 1983009808
        %v1953 = vunpack.c.0.s8 %v1952
        %v1954 = vlaneseq
        %v1955 = vshrl.u32 %v1954, 7
        %v1956 = vsub.s32 %v1953, %v1955
        %v1957 = vrot.slane %v1950, %v1956
        %v1958 = vcombine.low %v1949, %v1957
        %v1959 = vcombine.high %v1949, %v1957
        %v1961 = vunpack.c.l.s4 1934713408
        %v1962 = vunpack.c.0.s8 %v1961
        %v1963 = vlaneseq
        %v1964 = vshrl.u32 %v1963, 7
        %v1965 = vsub.s32 %v1962, %v1964
        %v1966 = vrot.slane %v1958, %v1965
        %v1968 = vunpack.c.l.s4 1934713408
        %v1969 = vunpack.c.0.s8 %v1968
        %v1970 = vlaneseq
        %v1971 = vshrl.u32 %v1970, 7
        %v1972 = vsub.s32 %v1969, %v1971
        %v1973 = vrot.slane %v1959, %v1972
        %v1974 = vcombine.high %v1966, 0
        %v1975 = vcombine.high %v1973, 0
        %v1976 = vpack.c.bf16 %v1845, %v1845
        %v1978 = vunpack.c.l.s4 1983009808
        %v1979 = vunpack.c.0.s8 %v1978
        %v1980 = vlaneseq
        %v1981 = vshrl.u32 %v1980, 7
        %v1982 = vsub.s32 %v1979, %v1981
        %v1983 = vrot.slane %v1976, %v1982
        %v1984 = vpack.c.bf16 %v1937, %v1937
        %v1986 = vunpack.c.l.s4 1983009808
        %v1987 = vunpack.c.0.s8 %v1986
        %v1988 = vlaneseq
        %v1989 = vshrl.u32 %v1988, 7
        %v1990 = vsub.s32 %v1987, %v1989
        %v1991 = vrot.slane %v1984, %v1990
        %v1992 = vcombine.low %v1983, %v1991
        %v1993 = vcombine.high %v1983, %v1991
        %v1995 = vunpack.c.l.s4 1934713408
        %v1996 = vunpack.c.0.s8 %v1995
        %v1997 = vlaneseq
        %v1998 = vshrl.u32 %v1997, 7
        %v1999 = vsub.s32 %v1996, %v1998
        %v2000 = vrot.slane %v1992, %v1999
        %v2002 = vunpack.c.l.s4 1934713408
        %v2003 = vunpack.c.0.s8 %v2002
        %v2004 = vlaneseq
        %v2005 = vshrl.u32 %v2004, 7
        %v2006 = vsub.s32 %v2003, %v2005
        %v2007 = vrot.slane %v1993, %v2006
        %v2008 = vcombine.high %v2000, 0
        %v2009 = vcombine.high %v2007, 0
        %v2012 = vpack.i.b16 %v2000, %v1966
        %v2014 = vshrl.u32 %v1966, 16
        %v2015 = vshrl.u32 %v2000, 16
        %v2016 = vpack.i.b16 %v2015, %v2014
        %v2020 = vpack.i.b16 %v2008, %v1974
        %v2022 = vshrl.u32 %v1974, 16
        %v2023 = vshrl.u32 %v2008, 16
        %v2024 = vpack.i.b16 %v2023, %v2022
        %v2028 = vpack.i.b16 %v2007, %v1973
        %v2030 = vshrl.u32 %v1973, 16
        %v2031 = vshrl.u32 %v2007, 16
        %v2032 = vpack.i.b16 %v2031, %v2030
        %v2036 = vpack.i.b16 %v2009, %v1975
        %v2038 = vshrl.u32 %v1975, 16
        %v2039 = vshrl.u32 %v2009, 16
        %v2040 = vpack.i.b16 %v2039, %v2038
        %v2042 = vcombine.low %v2012, %v2028
        %v2044 = vunpack.c.l.s4 1983009808
        %v2045 = vunpack.c.0.s8 %v2044
        %v2046 = vlaneseq
        %v2047 = vshrl.u32 %v2046, 7
        %v2048 = vsub.s32 %v2045, %v2047
        %v2049 = vrot.slane %v2042, %v2048
        %v2050 = vcombine.low %v2020, %v2036
        %v2052 = vunpack.c.l.s4 1983009808
        %v2053 = vunpack.c.0.s8 %v2052
        %v2054 = vlaneseq
        %v2055 = vshrl.u32 %v2054, 7
        %v2056 = vsub.s32 %v2053, %v2055
        %v2057 = vrot.slane %v2050, %v2056
        %v2058 = vcombine.low %v2049, %v2057
        %v2060 = vunpack.c.l.s4 1934713408
        %v2061 = vunpack.c.0.s8 %v2060
        %v2062 = vlaneseq
        %v2063 = vshrl.u32 %v2062, 7
        %v2064 = vsub.s32 %v2061, %v2063
        %v2065 = vrot.slane %v2058, %v2064
        %v2066 = vcombine.high %v2065, 0
        %v2067 = vcombine.low %v2016, %v2032
        %v2069 = vunpack.c.l.s4 1983009808
        %v2070 = vunpack.c.0.s8 %v2069
        %v2071 = vlaneseq
        %v2072 = vshrl.u32 %v2071, 7
        %v2073 = vsub.s32 %v2070, %v2072
        %v2074 = vrot.slane %v2067, %v2073
        %v2075 = vcombine.low %v2024, %v2040
        %v2077 = vunpack.c.l.s4 1983009808
        %v2078 = vunpack.c.0.s8 %v2077
        %v2079 = vlaneseq
        %v2080 = vshrl.u32 %v2079, 7
        %v2081 = vsub.s32 %v2078, %v2080
        %v2082 = vrot.slane %v2075, %v2081
        %v2083 = vcombine.low %v2074, %v2082
        %v2085 = vunpack.c.l.s4 1934713408
        %v2086 = vunpack.c.0.s8 %v2085
        %v2087 = vlaneseq
        %v2088 = vshrl.u32 %v2087, 7
        %v2089 = vsub.s32 %v2086, %v2088
        %v2090 = vrot.slane %v2083, %v2089
        %v2091 = vcombine.high %v2090, 0
        %v2094 = vpack.i.b16 %v2090, %v2065
        %v2095 = vshrl.u32 %v2065, 16
        %v2096 = vshrl.u32 %v2090, 16
        %v2097 = vpack.i.b16 %v2096, %v2095
        %v2100 = vpack.i.b16 %v2091, %v2066
        %v2101 = vshrl.u32 %v2066, 16
        %v2102 = vshrl.u32 %v2091, 16
        %v2103 = vpack.i.b16 %v2102, %v2101
        %2104 = vrot.lane.b32.xlu0 %v2097, 32
        %v2105 = vpop.permute.xlu0 %2104
        %2106 = vrot.lane.b32.xlu0 %v2100, 64
        %v2107 = vpop.permute.xlu0 %2106
        %2108 = vrot.lane.b32.xlu0 %v2103, 96
        %v2109 = vpop.permute.xlu0 %2108
        %v2112 = vsel %vm1523, %v2094, %v2105
        %vm2113 = vcmask 523264
        %v2115 = vsel %vm2113, %v2112, %v2107
        %vm2116 = vcmask 785408
        %v2118 = vsel %vm2116, %v2115, %v2109
        %v2120 = vld [vmem:[#allocation6] sm:$0xf]
        %v2121 = vld [vmem:[#allocation6 + $0x4] sm:$0xf]
        %v2122 = vld [vmem:[#allocation6 + $0x8] sm:$0xf]
        %v2123 = vld [vmem:[#allocation6 + $0xc] sm:$0xf]
        %v2124 = vld [vmem:[#allocation6 + $0x10] sm:$0xf]
        %v2125 = vld [vmem:[#allocation6 + $0x14] sm:$0xf]
        %v2126 = vld [vmem:[#allocation6 + $0x18] sm:$0xf]
        %v2127 = vld [vmem:[#allocation6 + $0x1c] sm:$0xf]
        %v2128 = vld [vmem:[#allocation6 + $0x20] sm:$0xf]
        %v2129 = vld [vmem:[#allocation6 + $0x24] sm:$0xf]
        %v2130 = vld [vmem:[#allocation6 + $0x28] sm:$0xf]
        %v2131 = vld [vmem:[#allocation6 + $0x2c] sm:$0xf]
        %v2132 = vld [vmem:[#allocation6 + $0x30] sm:$0xf]
        %v2133 = vld [vmem:[#allocation6 + $0x34] sm:$0xf]
        %v2134 = vld [vmem:[#allocation6 + $0x38] sm:$0xf]
        %v2135 = vld [vmem:[#allocation6 + $0x3c] sm:$0xf]
        %v2136 = vld [vmem:[#allocation7] sm:$0x1]
        %v2138 = vlaneseq
        %v2139 = vshrl.u32 %v2138, 7
        %v2140 = vsub.s32 0, %v2139
        %v2141 = vrot.slane %v2136, %v2140
        %v2159 = vunpack.c.l.b16 %v2120
        %v2160 = vunpack.c.l.b16 %v2121
        %v2161 = vunpack.c.l.b16 %v2122
        %v2162 = vunpack.c.l.b16 %v2123
        %v2163 = vunpack.c.l.b16 %v2124
        %v2164 = vunpack.c.l.b16 %v2125
        %v2165 = vunpack.c.l.b16 %v2126
        %v2166 = vunpack.c.l.b16 %v2127
        %v2167 = vunpack.c.l.b16 %v2128
        %v2168 = vunpack.c.l.b16 %v2129
        %v2169 = vunpack.c.l.b16 %v2130
        %v2170 = vunpack.c.l.b16 %v2131
        %v2171 = vunpack.c.l.b16 %v2132
        %v2172 = vunpack.c.l.b16 %v2133
        %v2173 = vunpack.c.l.b16 %v2134
        %v2174 = vunpack.c.l.b16 %v2135
        %v2175 = vpack.c.b16 %v2160, %v2159
        %v2176 = vpack.c.b16 %v2162, %v2161
        %v2177 = vpack.c.b16 %v2164, %v2163
        %v2178 = vpack.c.b16 %v2166, %v2165
        %v2179 = vpack.c.b16 %v2168, %v2167
        %v2180 = vpack.c.b16 %v2170, %v2169
        %v2181 = vpack.c.b16 %v2172, %v2171
        %v2182 = vpack.c.b16 %v2174, %v2173
        %2191 = vmatprep.subr.bf16.mxu0 0
        %2192 = vmatpush1.bf16.msra.mxu0 %v2182
        %2193 = vmatprep.subr.bf16.mxu0 0
        %2194 = vmatpush1.bf16.msra.mxu0 %v2181
        %2195 = vmatprep.subr.bf16.mxu0 0
        %2196 = vmatpush1.bf16.msra.mxu0 %v2180
        %2197 = vmatprep.subr.bf16.mxu0 0
        %2198 = vmatpush1.bf16.msra.mxu0 %v2179
        %2199 = vmatprep.subr.bf16.mxu0 0
        %2200 = vmatpush1.bf16.msra.mxu0 %v2178
        %2201 = vmatprep.subr.bf16.mxu0 0
        %2202 = vmatpush1.bf16.msra.mxu0 %v2177
        %2203 = vmatprep.subr.bf16.mxu0 0
        %2204 = vmatpush1.bf16.msra.mxu0 %v2176
        %2205 = vmatprep.subr.bf16.mxu0 0
        %2206 = vmatpush1.bf16.msra.mxu0 %v2175
        %2207 = vmatprep.subr.bf16.mxu0 0
        %2208 = vmatpush2.bf16.msra.mxu0 0
        %2209 = vmatprep.subr.bf16.mxu0 0
        %2210 = vmatpush2.bf16.msra.mxu0 0
        %2211 = vmatprep.subr.bf16.mxu0 0
        %2212 = vmatpush2.bf16.msra.mxu0 0
        %2213 = vmatprep.subr.bf16.mxu0 0
        %2214 = vmatpush2.bf16.msra.mxu0 0
        %2215 = vmatprep.subr.bf16.mxu0 0
        %2216 = vmatpush2.bf16.msra.mxu0 0
        %2217 = vmatprep.subr.bf16.mxu0 0
        %2218 = vmatpush2.bf16.msra.mxu0 0
        %2219 = vmatprep.subr.bf16.mxu0 0
        %2220 = vmatpush2.bf16.msra.mxu0 0
        %2221 = vmatprep.subr.bf16.mxu0 0
        %2222 = vmatpush2.bf16.msra.mxu0 0
        %2223 = vmatprep.mubr.bf16.mxu0 0
        %2224 = vmatmul.mubr.bf16.gmra.mxu0 %v2118
        %v2225 = vpop.f32.mrf.mxu0
        %v2226 = vadd.f32 %v2141, %v2225
        %v2227 = vpop.f32.mrf.mxu0
        %v2228 = vpop.f32.mrf.mxu0
        %v2229 = vpop.f32.mrf.mxu0
        %2230 = vdwg.mxu0
        %v2231 = vadd.f32 %v754, %v2226
        %v2232 = vld [vmem:[#allocation9] sm:$0x1]
        %v2233 = vld [vmem:[#allocation10] sm:$0x1]
        %2234 = vadd.xlane.f32.xlu0 %v2231
        %v2235 = vpop.xlane.xlu0 %2234
        %v2236 = vrcp.pop 128.0
        %v2237 = vmul.f32 %v2235, %v2236
        %v2238 = vsub.f32 %v2231, %v2237
        %v2239 = vmul.f32 %v2238, %v2238
        %2240 = vadd.xlane.f32.xlu0 %v2239
        %v2241 = vpop.xlane.xlu0 %2240
        %v2242 = vmul.f32 %v2241, %v2236
        %v2243 = vadd.f32 %v2242, 1e-05
        %v2244 = vrsqrt.pop %v2243
        %v2245 = vmul.f32 %v2238, %v2244
        %v2247 = vlaneseq
        %v2248 = vshrl.u32 %v2247, 7
        %v2249 = vsub.s32 0, %v2248
        %v2250 = vrot.slane %v2232, %v2249
        %v2252 = vmul.f32 %v2245, %v2250
        %v2254 = vlaneseq
        %v2255 = vshrl.u32 %v2254, 7
        %v2256 = vsub.s32 0, %v2255
        %v2257 = vrot.slane %v2233, %v2256
        %v2259 = vadd.f32 %v2252, %v2257
        %v2260 = vpack.c.bf16 %v2259, %v2259
        %v2261 = vld [vmem:[%s12] sm:$0xff]
        %v2262 = vld [vmem:[%s12 + $0x8] sm:$0xff]
        %v2263 = vld [vmem:[%s12 + $0x10] sm:$0xff]
        %v2264 = vld [vmem:[%s12 + $0x18] sm:$0xff]
        %v2265 = vld [vmem:[%s12 + $0x20] sm:$0xff]
        %v2266 = vld [vmem:[%s12 + $0x28] sm:$0xff]
        %v2267 = vld [vmem:[%s12 + $0x30] sm:$0xff]
        %v2268 = vld [vmem:[%s12 + $0x38] sm:$0xff]
        %v2269 = vld [vmem:[%s12 + $0x40] sm:$0xff]
        %v2270 = vld [vmem:[%s12 + $0x48] sm:$0xff]
        %v2271 = vld [vmem:[%s12 + $0x50] sm:$0xff]
        %v2272 = vld [vmem:[%s12 + $0x58] sm:$0xff]
        %v2273 = vld [vmem:[%s12 + $0x60] sm:$0xff]
        %v2274 = vld [vmem:[%s12 + $0x68] sm:$0xff]
        %v2275 = vld [vmem:[%s12 + $0x70] sm:$0xff]
        %v2276 = vld [vmem:[%s12 + $0x78] sm:$0xff]
        %v2277 = vld [vmem:[#allocation12] sm:$0x3]
        %v2279 = vlaneseq
        %v2280 = vshrl.u32 %v2279, 7
        %v2281 = vsub.s32 0, %v2280
        %v2282 = vrot.slane %v2277, %v2281
        %v2283 = vlaneseq
        %v2284 = vshrl.u32 %v2283, 7
        %v2285 = vsub.s32 1, %v2284
        %v2286 = vrot.slane %v2277, %v2285
        %v2305 = vunpack.c.l.b16 %v2261
        %v2306 = vunpack.c.h.b16 %v2261
        %v2307 = vunpack.c.l.b16 %v2262
        %v2308 = vunpack.c.h.b16 %v2262
        %v2309 = vunpack.c.l.b16 %v2263
        %v2310 = vunpack.c.h.b16 %v2263
        %v2311 = vunpack.c.l.b16 %v2264
        %v2312 = vunpack.c.h.b16 %v2264
        %v2313 = vunpack.c.l.b16 %v2265
        %v2314 = vunpack.c.h.b16 %v2265
        %v2315 = vunpack.c.l.b16 %v2266
        %v2316 = vunpack.c.h.b16 %v2266
        %v2317 = vunpack.c.l.b16 %v2267
        %v2318 = vunpack.c.h.b16 %v2267
        %v2319 = vunpack.c.l.b16 %v2268
        %v2320 = vunpack.c.h.b16 %v2268
        %v2321 = vunpack.c.l.b16 %v2269
        %v2322 = vunpack.c.h.b16 %v2269
        %v2323 = vunpack.c.l.b16 %v2270
        %v2324 = vunpack.c.h.b16 %v2270
        %v2325 = vunpack.c.l.b16 %v2271
        %v2326 = vunpack.c.h.b16 %v2271
        %v2327 = vunpack.c.l.b16 %v2272
        %v2328 = vunpack.c.h.b16 %v2272
        %v2329 = vunpack.c.l.b16 %v2273
        %v2330 = vunpack.c.h.b16 %v2273
        %v2331 = vunpack.c.l.b16 %v2274
        %v2332 = vunpack.c.h.b16 %v2274
        %v2333 = vunpack.c.l.b16 %v2275
        %v2334 = vunpack.c.h.b16 %v2275
        %v2335 = vunpack.c.l.b16 %v2276
        %v2336 = vunpack.c.h.b16 %v2276
        %v2337 = vpack.c.b16 %v2307, %v2305
        %v2338 = vpack.c.b16 %v2308, %v2306
        %v2339 = vpack.c.b16 %v2311, %v2309
        %v2340 = vpack.c.b16 %v2312, %v2310
        %v2341 = vpack.c.b16 %v2315, %v2313
        %v2342 = vpack.c.b16 %v2316, %v2314
        %v2343 = vpack.c.b16 %v2319, %v2317
        %v2344 = vpack.c.b16 %v2320, %v2318
        %v2345 = vpack.c.b16 %v2323, %v2321
        %v2346 = vpack.c.b16 %v2324, %v2322
        %v2347 = vpack.c.b16 %v2327, %v2325
        %v2348 = vpack.c.b16 %v2328, %v2326
        %v2349 = vpack.c.b16 %v2331, %v2329
        %v2350 = vpack.c.b16 %v2332, %v2330
        %v2351 = vpack.c.b16 %v2335, %v2333
        %v2352 = vpack.c.b16 %v2336, %v2334
        %2369 = vmatprep.subr.bf16.mxu0 %v2352
        %2370 = vmatpush1.bf16.msra.mxu0 %v2351
        %2371 = vmatprep.subr.bf16.mxu0 %v2350
        %2372 = vmatpush1.bf16.msra.mxu0 %v2349
        %2373 = vmatprep.subr.bf16.mxu0 %v2348
        %2374 = vmatpush1.bf16.msra.mxu0 %v2347
        %2375 = vmatprep.subr.bf16.mxu0 %v2346
        %2376 = vmatpush1.bf16.msra.mxu0 %v2345
        %2377 = vmatprep.subr.bf16.mxu0 %v2344
        %2378 = vmatpush1.bf16.msra.mxu0 %v2343
        %2379 = vmatprep.subr.bf16.mxu0 %v2342
        %2380 = vmatpush1.bf16.msra.mxu0 %v2341
        %2381 = vmatprep.subr.bf16.mxu0 %v2340
        %2382 = vmatpush1.bf16.msra.mxu0 %v2339
        %2383 = vmatprep.subr.bf16.mxu0 %v2338
        %2384 = vmatpush1.bf16.msra.mxu0 %v2337
        %2385 = vmatprep.subr.bf16.mxu0 0
        %2386 = vmatpush2.bf16.msra.mxu0 0
        %2387 = vmatprep.subr.bf16.mxu0 0
        %2388 = vmatpush2.bf16.msra.mxu0 0
        %2389 = vmatprep.subr.bf16.mxu0 0
        %2390 = vmatpush2.bf16.msra.mxu0 0
        %2391 = vmatprep.subr.bf16.mxu0 0
        %2392 = vmatpush2.bf16.msra.mxu0 0
        %2393 = vmatprep.subr.bf16.mxu0 0
        %2394 = vmatpush2.bf16.msra.mxu0 0
        %2395 = vmatprep.subr.bf16.mxu0 0
        %2396 = vmatpush2.bf16.msra.mxu0 0
        %2397 = vmatprep.subr.bf16.mxu0 0
        %2398 = vmatpush2.bf16.msra.mxu0 0
        %2399 = vmatprep.subr.bf16.mxu0 0
        %2400 = vmatpush2.bf16.msra.mxu0 0
        %2401 = vmatprep.mubr.bf16.mxu0 0
        %2402 = vmatmul.mubr.bf16.gmra.mxu0 %v2260
        %v2403 = vpop.f32.mrf.mxu0
        %v2404 = vadd.f32 %v2282, %v2403
        %v2405 = vpop.f32.mrf.mxu0
        %v2406 = vadd.f32 %v2286, %v2405
        %v2407 = vpop.f32.mrf.mxu0
        %v2408 = vpop.f32.mrf.mxu0
        %2409 = vdwg.mxu0
        %v2410 = vmax.f32 %v2404, 0.0
        %v2411 = vmax.f32 %v2406, 0.0
        %v2412 = vpack.c.bf16 %v2410, %v2410
        %v2413 = vpack.c.bf16 %v2411, %v2411
        %v2414 = vld [vmem:[%s14] sm:$0xf]
        %v2415 = vld [vmem:[%s14 + $0x4] sm:$0xf]
        %v2416 = vld [vmem:[%s14 + $0x8] sm:$0xf]
        %v2417 = vld [vmem:[%s14 + $0xc] sm:$0xf]
        %v2418 = vld [vmem:[%s14 + $0x10] sm:$0xf]
        %v2419 = vld [vmem:[%s14 + $0x14] sm:$0xf]
        %v2420 = vld [vmem:[%s14 + $0x18] sm:$0xf]
        %v2421 = vld [vmem:[%s14 + $0x1c] sm:$0xf]
        %v2422 = vld [vmem:[%s14 + $0x20] sm:$0xf]
        %v2423 = vld [vmem:[%s14 + $0x24] sm:$0xf]
        %v2424 = vld [vmem:[%s14 + $0x28] sm:$0xf]
        %v2425 = vld [vmem:[%s14 + $0x2c] sm:$0xf]
        %v2426 = vld [vmem:[%s14 + $0x30] sm:$0xf]
        %v2427 = vld [vmem:[%s14 + $0x34] sm:$0xf]
        %v2428 = vld [vmem:[%s14 + $0x38] sm:$0xf]
        %v2429 = vld [vmem:[%s14 + $0x3c] sm:$0xf]
        %v2430 = vld [vmem:[%s14 + $0x40] sm:$0xf]
        %v2431 = vld [vmem:[%s14 + $0x44] sm:$0xf]
        %v2432 = vld [vmem:[%s14 + $0x48] sm:$0xf]
        %v2433 = vld [vmem:[%s14 + $0x4c] sm:$0xf]
        %v2434 = vld [vmem:[%s14 + $0x50] sm:$0xf]
        %v2435 = vld [vmem:[%s14 + $0x54] sm:$0xf]
        %v2436 = vld [vmem:[%s14 + $0x58] sm:$0xf]
        %v2437 = vld [vmem:[%s14 + $0x5c] sm:$0xf]
        %v2438 = vld [vmem:[%s14 + $0x60] sm:$0xf]
        %v2439 = vld [vmem:[%s14 + $0x64] sm:$0xf]
        %v2440 = vld [vmem:[%s14 + $0x68] sm:$0xf]
        %v2441 = vld [vmem:[%s14 + $0x6c] sm:$0xf]
        %v2442 = vld [vmem:[%s14 + $0x70] sm:$0xf]
        %v2443 = vld [vmem:[%s14 + $0x74] sm:$0xf]
        %v2444 = vld [vmem:[%s14 + $0x78] sm:$0xf]
        %v2445 = vld [vmem:[%s14 + $0x7c] sm:$0xf]
        %v2446 = vld [vmem:[#allocation13] sm:$0x1]
        %v2448 = vlaneseq
        %v2449 = vshrl.u32 %v2448, 7
        %v2450 = vsub.s32 0, %v2449
        %v2451 = vrot.slane %v2446, %v2450
        %v2485 = vunpack.c.l.b16 %v2414
        %v2486 = vunpack.c.l.b16 %v2415
        %v2487 = vunpack.c.l.b16 %v2416
        %v2488 = vunpack.c.l.b16 %v2417
        %v2489 = vunpack.c.l.b16 %v2418
        %v2490 = vunpack.c.l.b16 %v2419
        %v2491 = vunpack.c.l.b16 %v2420
        %v2492 = vunpack.c.l.b16 %v2421
        %v2493 = vunpack.c.l.b16 %v2422
        %v2494 = vunpack.c.l.b16 %v2423
        %v2495 = vunpack.c.l.b16 %v2424
        %v2496 = vunpack.c.l.b16 %v2425
        %v2497 = vunpack.c.l.b16 %v2426
        %v2498 = vunpack.c.l.b16 %v2427
        %v2499 = vunpack.c.l.b16 %v2428
        %v2500 = vunpack.c.l.b16 %v2429
        %v2501 = vunpack.c.l.b16 %v2430
        %v2502 = vunpack.c.l.b16 %v2431
        %v2503 = vunpack.c.l.b16 %v2432
        %v2504 = vunpack.c.l.b16 %v2433
        %v2505 = vunpack.c.l.b16 %v2434
        %v2506 = vunpack.c.l.b16 %v2435
        %v2507 = vunpack.c.l.b16 %v2436
        %v2508 = vunpack.c.l.b16 %v2437
        %v2509 = vunpack.c.l.b16 %v2438
        %v2510 = vunpack.c.l.b16 %v2439
        %v2511 = vunpack.c.l.b16 %v2440
        %v2512 = vunpack.c.l.b16 %v2441
        %v2513 = vunpack.c.l.b16 %v2442
        %v2514 = vunpack.c.l.b16 %v2443
        %v2515 = vunpack.c.l.b16 %v2444
        %v2516 = vunpack.c.l.b16 %v2445
        %v2517 = vpack.c.b16 %v2486, %v2485
        %v2518 = vpack.c.b16 %v2488, %v2487
        %v2519 = vpack.c.b16 %v2490, %v2489
        %v2520 = vpack.c.b16 %v2492, %v2491
        %v2521 = vpack.c.b16 %v2494, %v2493
        %v2522 = vpack.c.b16 %v2496, %v2495
        %v2523 = vpack.c.b16 %v2498, %v2497
        %v2524 = vpack.c.b16 %v2500, %v2499
        %v2525 = vpack.c.b16 %v2502, %v2501
        %v2526 = vpack.c.b16 %v2504, %v2503
        %v2527 = vpack.c.b16 %v2506, %v2505
        %v2528 = vpack.c.b16 %v2508, %v2507
        %v2529 = vpack.c.b16 %v2510, %v2509
        %v2530 = vpack.c.b16 %v2512, %v2511
        %v2531 = vpack.c.b16 %v2514, %v2513
        %v2532 = vpack.c.b16 %v2516, %v2515
        %2549 = vmatprep.subr.bf16.mxu0 0
        %2550 = vmatpush1.bf16.msra.mxu0 %v2524
        %2551 = vmatprep.subr.bf16.mxu0 0
        %2552 = vmatpush1.bf16.msra.mxu0 %v2523
        %2553 = vmatprep.subr.bf16.mxu0 0
        %2554 = vmatpush1.bf16.msra.mxu0 %v2522
        %2555 = vmatprep.subr.bf16.mxu0 0
        %2556 = vmatpush1.bf16.msra.mxu0 %v2521
        %2557 = vmatprep.subr.bf16.mxu0 0
        %2558 = vmatpush1.bf16.msra.mxu0 %v2520
        %2559 = vmatprep.subr.bf16.mxu0 0
        %2560 = vmatpush1.bf16.msra.mxu0 %v2519
        %2561 = vmatprep.subr.bf16.mxu0 0
        %2562 = vmatpush1.bf16.msra.mxu0 %v2518
        %2563 = vmatprep.subr.bf16.mxu0 0
        %2564 = vmatpush1.bf16.msra.mxu0 %v2517
        %2565 = vmatprep.subr.bf16.mxu0 0
        %2566 = vmatpush2.bf16.msra.mxu0 %v2532
        %2567 = vmatprep.subr.bf16.mxu0 0
        %2568 = vmatpush2.bf16.msra.mxu0 %v2531
        %2569 = vmatprep.subr.bf16.mxu0 0
        %2570 = vmatpush2.bf16.msra.mxu0 %v2530
        %2571 = vmatprep.subr.bf16.mxu0 0
        %2572 = vmatpush2.bf16.msra.mxu0 %v2529
        %2573 = vmatprep.subr.bf16.mxu0 0
        %2574 = vmatpush2.bf16.msra.mxu0 %v2528
        %2575 = vmatprep.subr.bf16.mxu0 0
        %2576 = vmatpush2.bf16.msra.mxu0 %v2527
        %2577 = vmatprep.subr.bf16.mxu0 0
        %2578 = vmatpush2.bf16.msra.mxu0 %v2526
        %2579 = vmatprep.subr.bf16.mxu0 0
        %2580 = vmatpush2.bf16.msra.mxu0 %v2525
        %2581 = vmatprep.mubr.bf16.mxu0 %v2413
        %2582 = vmatmul.mubr.bf16.gmra.mxu0 %v2412
        %v2583 = vpop.f32.mrf.mxu0
        %v2584 = vadd.f32 %v2451, %v2583
        %v2585 = vpop.f32.mrf.mxu0
        %v2586 = vpop.f32.mrf.mxu0
        %v2587 = vpop.f32.mrf.mxu0
        %2588 = vdwg.mxu0
        %v2589 = vadd.f32 %v2259, %v2584
        %v2590 = vld [vmem:[%s16] sm:$0x1]
        %v2591 = vld [vmem:[%s17] sm:$0x1]
        %2592 = vadd.xlane.f32.xlu0 %v2589
        %v2593 = vpop.xlane.xlu0 %2592
        %v2594 = vmul.f32 %v2593, %v2236
        %v2595 = vsub.f32 %v2589, %v2594
        %v2596 = vmul.f32 %v2595, %v2595
        %2597 = vadd.xlane.f32.xlu0 %v2596
        %v2598 = vpop.xlane.xlu0 %2597
        %v2599 = vmul.f32 %v2598, %v2236
        %v2600 = vadd.f32 %v2599, 1e-05
        %v2601 = vrsqrt.pop %v2600
        %v2602 = vmul.f32 %v2595, %v2601
        %v2604 = vlaneseq
        %v2605 = vshrl.u32 %v2604, 7
        %v2606 = vsub.s32 0, %v2605
        %v2607 = vrot.slane %v2590, %v2606
        %v2609 = vmul.f32 %v2602, %v2607
        %v2611 = vlaneseq
        %v2612 = vshrl.u32 %v2611, 7
        %v2613 = vsub.s32 0, %v2612
        %v2614 = vrot.slane %v2591, %v2613
        %v2616 = vadd.f32 %v2609, %v2614
        %v2617 = vpack.c.bf16 %v2616, %v2616
        %2618 = vst [vmem:[%s693] sm:$0xf] %v2617
        %p2619 = scmp.lt.s32.totalorder %s38, 1
        %s2620 = scalar_select %p2619, %s38, 1
        %p2621 = scmp.lt.s32.totalorder %s39, 0
        %s2622 = scalar_select %p2621, %s39, 0
        %s2623 = sadd.s32 %s2622, %s2620
        %s2624 = smul.addr %s2623, 4
        %s2625 = scalar_lea.vmem %s18, %s2624
        // Predicated region
        $region125: #{weather_encoder.2} parent=91 // pred_check
          %p2626 = pneg %p449
        $region126: #{weather_encoder.2} parent=91 // pred_check_branch
          %2628 = sbr.rel (%p2626) target = $region128
        $region127: #{weather_encoder.2} parent=91 // pred_region
          _
        $region128: #{weather_encoder.2} parent=91 // pred_fallthru
          _
      $region92: #{weather_encoder.2} parent=5 // pred_fallthru
        _
      %p2629 = scmp.le.s32.totalorder 2, %s29
      // Predicated region
      $region129: #{weather_encoder.2} parent=5 // pred_check
        %p2630 = pneg %p2629
      $region130: #{weather_encoder.2} parent=5 // pred_check_branch
        %2632 = sbr.rel (%p2630) target = $region132
      $region131: #{weather_encoder.2} parent=5 // pred_region
        %s2633 = ssub.s32 %s29, 2
        // Predicated region
        $region133: #{weather_encoder.2} parent=131 // pred_check
          %p2634 = pneg %p455
        $region134: #{weather_encoder.2} parent=131 // pred_check_branch
          %2636 = sbr.rel (%p2634) target = $region136
        $region135: #{weather_encoder.2} parent=131 // pred_region
          %p2637 = scmp.lt.s32.totalorder %s40, 1
          %s2638 = scalar_select %p2637, %s40, 1
          %p2639 = scmp.lt.s32.totalorder %s41, 0
          %s2640 = scalar_select %p2639, %s41, 0
          %s2641 = sadd.s32 %s2640, %s2638
          %s2642 = smul.addr %s2641, 4
          %s2643 = scalar_lea.vmem %s18, %s2642
        $region136: #{weather_encoder.2} parent=131 // pred_fallthru
          _
      $region132: #{weather_encoder.2} parent=5 // pred_fallthru
        _
    $region6: #{weather_encoder.2} parent=1 // loop_footer
      %s33 = sadd.s32 1, %s29
    $region7: #{weather_encoder.2} parent=1 // loop_footer_branch
      %28 = sbr.rel target = $region3
    $region8: #{weather_encoder.2} parent=1 // loop_exit
      _
    %2644 = vsyncpa [#allocation3], 1
    %s2645 = scalar_lea.sflag [#allocation3], 1
    %2646 = vsyncpa %s2645, 1
    %2647 = vsyncpa [#allocation5], 1
    %2648 = vsyncpa [#allocation8], 1
    %2649 = vsyncpa [#allocation11], 1
    %2650 = vsyncpa [#allocation14], 1

// kernel: weather_encoder.3
$region0: #{weather_encoder.3}
  #allocation0 [shape = 'u32[]', space=smem, size = 0x4, offset = 0x4, fixed_abs, tag = 'smem constant byte address 0x4 - core index']
  #allocation1 [shape = 'u32[144,128]{1,0:T(1,128)}', space=vmem, size = 0x12000, scoped, tag = 'internal scratch']
  %s0 = inlined_call_operand.vmem [shape: bf16[2,8,128], index: 0, kind: input, shape index: {}]
  %s1 = inlined_call_operand.vmem [shape: bf16[128,128], index: 1, kind: input, shape index: {}]
  %s2 = inlined_call_operand.vmem [shape: f32[1,128], index: 2, kind: input, shape index: {}]
  %s3 = inlined_call_operand.vmem [shape: bf16[128,256], index: 3, kind: input, shape index: {}]
  %s4 = inlined_call_operand.vmem [shape: f32[1,256], index: 4, kind: input, shape index: {}]
  %s5 = inlined_call_operand.vmem [shape: bf16[128,128], index: 5, kind: input, shape index: {}]
  %s6 = inlined_call_operand.vmem [shape: f32[1,128], index: 6, kind: input, shape index: {}]
  %s7 = inlined_call_operand.vmem [shape: f32[1,128], index: 7, kind: input, shape index: {}]
  %s8 = inlined_call_operand.vmem [shape: f32[1,128], index: 8, kind: input, shape index: {}]
  %s9 = inlined_call_operand.vmem [shape: bf16[128,256], index: 9, kind: input, shape index: {}]
  %s10 = inlined_call_operand.vmem [shape: f32[1,256], index: 10, kind: input, shape index: {}]
  %s11 = inlined_call_operand.vmem [shape: bf16[256,128], index: 11, kind: input, shape index: {}]
  %s12 = inlined_call_operand.vmem [shape: f32[1,128], index: 12, kind: input, shape index: {}]
  %s13 = inlined_call_operand.vmem [shape: f32[1,128], index: 13, kind: input, shape index: {}]
  %s14 = inlined_call_operand.vmem [shape: f32[1,128], index: 14, kind: input, shape index: {}]
  %s15 = inlined_call_operand.hbm [shape: f32[2,8,128], index: 15, kind: output, shape index: {}]
  %s16 = sld [smem:[#allocation0]]
  $region93: #{weather_encoder.3} parent=0
    _
  %s18 = ssub.s32 1, %s16
  %s19 = scalar_select 0, %s18, %s16
  $region1: #{weather_encoder.3} parent=0
    #allocation2 [shape = 'u8[8192]{0}', space=vmem, size = 0x2000, scoped, tag = 'output window, operand 0']
    #allocation3 [shape = 's32[2]{0}', space=sflag, size = 0x8, scoped, tag = 'scoped memory for weather_encoder.3']
    %20 = vsyncpa [#allocation3], 0
    %s21 = scalar_lea.sflag [#allocation3], 1
    %22 = vsyncpa %s21, 0
    loop: start=0, step=1, limit=4
    $region2: #{weather_encoder.3} parent=1 // loop_pre_header
      _
    $region3: #{weather_encoder.3} parent=1 // loop_header
      %s24 = sphi 0, %s28
      %p25 = scmp.ge.s32.totalorder %s24, 4
      %s31 = sphi 0, %s43
      %s32 = sphi 0, %s39
      %s33 = sphi 0, %s31
      %s34 = sphi 0, %s32
      %s35 = sphi 0, %s33
      %s36 = sphi 0, %s34
      %s46 = sphi 0, %s48
      %s49 = sphi 0, %s46
      %s50 = sphi 0, %s49
      %s66 = sphi 0, %s50
      %s70 = sphi 0, %s70
      %s72 = sphi 0, %s70
      %s73 = sphi 0, %s72
      %s87 = sphi 0, %s73
      %s91 = sphi 0, %s91
      %s93 = sphi 0, %s91
      %s94 = sphi 0, %s93
      %s108 = sphi 0, %s94
      %s112 = sphi 0, %s112
      %s114 = sphi 0, %s112
      %s115 = sphi 0, %s114
      %s129 = sphi 0, %s115
      %s133 = sphi 0, %s133
      %s135 = sphi 0, %s133
      %s136 = sphi 0, %s135
      %s150 = sphi 0, %s136
      %s154 = sphi 0, %s154
      %s156 = sphi 0, %s154
      %s157 = sphi 0, %s156
      %s171 = sphi 0, %s157
      %s175 = sphi 0, %s175
      %s177 = sphi 0, %s175
      %s178 = sphi 0, %s177
      %s192 = sphi 0, %s178
      %s196 = sphi 0, %s196
      %s198 = sphi 0, %s196
      %s199 = sphi 0, %s198
      %s213 = sphi 0, %s199
      %s217 = sphi 0, %s217
      %s219 = sphi 0, %s217
      %s220 = sphi 0, %s219
      %s234 = sphi 0, %s220
      %s238 = sphi 0, %s238
      %s240 = sphi 0, %s238
      %s241 = sphi 0, %s240
      %s255 = sphi 0, %s241
      %s259 = sphi 0, %s259
      %s261 = sphi 0, %s259
      %s262 = sphi 0, %s261
      %s276 = sphi 0, %s262
      %s280 = sphi 0, %s280
      %s282 = sphi 0, %s280
      %s283 = sphi 0, %s282
      %s297 = sphi 0, %s283
      %s301 = sphi 0, %s301
      %s303 = sphi 0, %s301
      %s304 = sphi 0, %s303
      %s318 = sphi 0, %s304
      %s322 = sphi 0, %s322
      %s324 = sphi 0, %s322
      %s325 = sphi 0, %s324
      %s339 = sphi 0, %s325
      %s343 = sphi 0, %s343
      %s345 = sphi 0, %s343
      %s346 = sphi 0, %s345
      %s360 = sphi 0, %s346
      %s368 = sphi 0, %s370
      %s371 = sphi 0, %s368
      %s372 = sphi 0, %s371
      %s388 = sphi 0, %s372
    $region4: #{weather_encoder.3} parent=1 // loop_header_branch
      %27 = sbr.rel (%p25) target = $region8
    $region5: #{weather_encoder.3} parent=1 // loop_body
      %s29 = ssub.s32 %s24, 1
      %s30 = ssub.s32 %s24, 2
      %s37 = sadd.s32 1, %s32
      %p38 = scmp.ge.s32.totalorder %s37, 1
      %s39 = scalar_select %p38, 0, %s37
      %s40 = sadd.s32 1, %s31
      %s41 = scalar_select %p38, %s40, %s31
      %p42 = scmp.ge.s32.totalorder %s41, 2
      %s43 = scalar_select %p42, 0, %s41
      %s44 = ssub.s32 %s31, %s43
      %p45 = scmp.eq.s32.totalorder %s44, 0
      %s47 = sadd.s32 %s46, 1
      %s48 = scalar_select %p45, %s46, %s47
      %p51 = pneg %p45
      %p52 = scmp.eq.s32.totalorder %s24, 1
      %p53 = por %p51, %p52
      %p54 = scmp.ne.s32.totalorder %s46, %s49
      %p55 = scmp.eq.s32.totalorder %s24, 0
      %p56 = por %p54, %p55
      %p57 = scmp.ne.s32.totalorder %s46, %s49
      %p58 = scmp.eq.s32.totalorder %s29, 1
      %p59 = por %p57, %p58
      %p60 = scmp.ne.s32.totalorder %s49, %s50
      %p61 = scmp.eq.s32.totalorder %s29, 0
      %p62 = por %p60, %p61
      %p63 = scmp.ne.s32.totalorder %s49, %s50
      %p64 = scmp.eq.s32.totalorder %s30, 1
      %p65 = por %p63, %p64
      %p67 = scmp.ne.s32.totalorder %s50, %s66
      %p68 = scmp.eq.s32.totalorder %s30, 0
      %p69 = por %p67, %p68
      %s71 = sadd.s32 %s70, 1
      %p74 = scmp.eq.s32.totalorder %s24, 1
      %p75 = scmp.ne.s32.totalorder %s70, %s72
      %p76 = scmp.eq.s32.totalorder %s24, 0
      %p77 = por %p75, %p76
      %p78 = scmp.ne.s32.totalorder %s70, %s72
      %p79 = scmp.eq.s32.totalorder %s29, 1
      %p80 = por %p78, %p79
      %p81 = scmp.ne.s32.totalorder %s72, %s73
      %p82 = scmp.eq.s32.totalorder %s29, 0
      %p83 = por %p81, %p82
      %p84 = scmp.ne.s32.totalorder %s72, %s73
      %p85 = scmp.eq.s32.totalorder %s30, 1
      %p86 = por %p84, %p85
      %p88 = scmp.ne.s32.totalorder %s73, %s87
      %p89 = scmp.eq.s32.totalorder %s30, 0
      %p90 = por %p88, %p89
      %s92 = sadd.s32 %s91, 1
      %p95 = scmp.eq.s32.totalorder %s24, 1
      %p96 = scmp.ne.s32.totalorder %s91, %s93
      %p97 = scmp.eq.s32.totalorder %s24, 0
      %p98 = por %p96, %p97
      %p99 = scmp.ne.s32.totalorder %s91, %s93
      %p100 = scmp.eq.s32.totalorder %s29, 1
      %p101 = por %p99, %p100
      %p102 = scmp.ne.s32.totalorder %s93, %s94
      %p103 = scmp.eq.s32.totalorder %s29, 0
      %p104 = por %p102, %p103
      %p105 = scmp.ne.s32.totalorder %s93, %s94
      %p106 = scmp.eq.s32.totalorder %s30, 1
      %p107 = por %p105, %p106
      %p109 = scmp.ne.s32.totalorder %s94, %s108
      %p110 = scmp.eq.s32.totalorder %s30, 0
      %p111 = por %p109, %p110
      %s113 = sadd.s32 %s112, 1
      %p116 = scmp.eq.s32.totalorder %s24, 1
      %p117 = scmp.ne.s32.totalorder %s112, %s114
      %p118 = scmp.eq.s32.totalorder %s24, 0
      %p119 = por %p117, %p118
      %p120 = scmp.ne.s32.totalorder %s112, %s114
      %p121 = scmp.eq.s32.totalorder %s29, 1
      %p122 = por %p120, %p121
      %p123 = scmp.ne.s32.totalorder %s114, %s115
      %p124 = scmp.eq.s32.totalorder %s29, 0
      %p125 = por %p123, %p124
      %p126 = scmp.ne.s32.totalorder %s114, %s115
      %p127 = scmp.eq.s32.totalorder %s30, 1
      %p128 = por %p126, %p127
      %p130 = scmp.ne.s32.totalorder %s115, %s129
      %p131 = scmp.eq.s32.totalorder %s30, 0
      %p132 = por %p130, %p131
      %s134 = sadd.s32 %s133, 1
      %p137 = scmp.eq.s32.totalorder %s24, 1
      %p138 = scmp.ne.s32.totalorder %s133, %s135
      %p139 = scmp.eq.s32.totalorder %s24, 0
      %p140 = por %p138, %p139
      %p141 = scmp.ne.s32.totalorder %s133, %s135
      %p142 = scmp.eq.s32.totalorder %s29, 1
      %p143 = por %p141, %p142
      %p144 = scmp.ne.s32.totalorder %s135, %s136
      %p145 = scmp.eq.s32.totalorder %s29, 0
      %p146 = por %p144, %p145
      %p147 = scmp.ne.s32.totalorder %s135, %s136
      %p148 = scmp.eq.s32.totalorder %s30, 1
      %p149 = por %p147, %p148
      %p151 = scmp.ne.s32.totalorder %s136, %s150
      %p152 = scmp.eq.s32.totalorder %s30, 0
      %p153 = por %p151, %p152
      %s155 = sadd.s32 %s154, 1
      %p158 = scmp.eq.s32.totalorder %s24, 1
      %p159 = scmp.ne.s32.totalorder %s154, %s156
      %p160 = scmp.eq.s32.totalorder %s24, 0
      %p161 = por %p159, %p160
      %p162 = scmp.ne.s32.totalorder %s154, %s156
      %p163 = scmp.eq.s32.totalorder %s29, 1
      %p164 = por %p162, %p163
      %p165 = scmp.ne.s32.totalorder %s156, %s157
      %p166 = scmp.eq.s32.totalorder %s29, 0
      %p167 = por %p165, %p166
      %p168 = scmp.ne.s32.totalorder %s156, %s157
      %p169 = scmp.eq.s32.totalorder %s30, 1
      %p170 = por %p168, %p169
      %p172 = scmp.ne.s32.totalorder %s157, %s171
      %p173 = scmp.eq.s32.totalorder %s30, 0
      %p174 = por %p172, %p173
      %s176 = sadd.s32 %s175, 1
      %p179 = scmp.eq.s32.totalorder %s24, 1
      %p180 = scmp.ne.s32.totalorder %s175, %s177
      %p181 = scmp.eq.s32.totalorder %s24, 0
      %p182 = por %p180, %p181
      %p183 = scmp.ne.s32.totalorder %s175, %s177
      %p184 = scmp.eq.s32.totalorder %s29, 1
      %p185 = por %p183, %p184
      %p186 = scmp.ne.s32.totalorder %s177, %s178
      %p187 = scmp.eq.s32.totalorder %s29, 0
      %p188 = por %p186, %p187
      %p189 = scmp.ne.s32.totalorder %s177, %s178
      %p190 = scmp.eq.s32.totalorder %s30, 1
      %p191 = por %p189, %p190
      %p193 = scmp.ne.s32.totalorder %s178, %s192
      %p194 = scmp.eq.s32.totalorder %s30, 0
      %p195 = por %p193, %p194
      %s197 = sadd.s32 %s196, 1
      %p200 = scmp.eq.s32.totalorder %s24, 1
      %p201 = scmp.ne.s32.totalorder %s196, %s198
      %p202 = scmp.eq.s32.totalorder %s24, 0
      %p203 = por %p201, %p202
      %p204 = scmp.ne.s32.totalorder %s196, %s198
      %p205 = scmp.eq.s32.totalorder %s29, 1
      %p206 = por %p204, %p205
      %p207 = scmp.ne.s32.totalorder %s198, %s199
      %p208 = scmp.eq.s32.totalorder %s29, 0
      %p209 = por %p207, %p208
      %p210 = scmp.ne.s32.totalorder %s198, %s199
      %p211 = scmp.eq.s32.totalorder %s30, 1
      %p212 = por %p210, %p211
      %p214 = scmp.ne.s32.totalorder %s199, %s213
      %p215 = scmp.eq.s32.totalorder %s30, 0
      %p216 = por %p214, %p215
      %s218 = sadd.s32 %s217, 1
      %p221 = scmp.eq.s32.totalorder %s24, 1
      %p222 = scmp.ne.s32.totalorder %s217, %s219
      %p223 = scmp.eq.s32.totalorder %s24, 0
      %p224 = por %p222, %p223
      %p225 = scmp.ne.s32.totalorder %s217, %s219
      %p226 = scmp.eq.s32.totalorder %s29, 1
      %p227 = por %p225, %p226
      %p228 = scmp.ne.s32.totalorder %s219, %s220
      %p229 = scmp.eq.s32.totalorder %s29, 0
      %p230 = por %p228, %p229
      %p231 = scmp.ne.s32.totalorder %s219, %s220
      %p232 = scmp.eq.s32.totalorder %s30, 1
      %p233 = por %p231, %p232
      %p235 = scmp.ne.s32.totalorder %s220, %s234
      %p236 = scmp.eq.s32.totalorder %s30, 0
      %p237 = por %p235, %p236
      %s239 = sadd.s32 %s238, 1
      %p242 = scmp.eq.s32.totalorder %s24, 1
      %p243 = scmp.ne.s32.totalorder %s238, %s240
      %p244 = scmp.eq.s32.totalorder %s24, 0
      %p245 = por %p243, %p244
      %p246 = scmp.ne.s32.totalorder %s238, %s240
      %p247 = scmp.eq.s32.totalorder %s29, 1
      %p248 = por %p246, %p247
      %p249 = scmp.ne.s32.totalorder %s240, %s241
      %p250 = scmp.eq.s32.totalorder %s29, 0
      %p251 = por %p249, %p250
      %p252 = scmp.ne.s32.totalorder %s240, %s241
      %p253 = scmp.eq.s32.totalorder %s30, 1
      %p254 = por %p252, %p253
      %p256 = scmp.ne.s32.totalorder %s241, %s255
      %p257 = scmp.eq.s32.totalorder %s30, 0
      %p258 = por %p256, %p257
      %s260 = sadd.s32 %s259, 1
      %p263 = scmp.eq.s32.totalorder %s24, 1
      %p264 = scmp.ne.s32.totalorder %s259, %s261
      %p265 = scmp.eq.s32.totalorder %s24, 0
      %p266 = por %p264, %p265
      %p267 = scmp.ne.s32.totalorder %s259, %s261
      %p268 = scmp.eq.s32.totalorder %s29, 1
      %p269 = por %p267, %p268
      %p270 = scmp.ne.s32.totalorder %s261, %s262
      %p271 = scmp.eq.s32.totalorder %s29, 0
      %p272 = por %p270, %p271
      %p273 = scmp.ne.s32.totalorder %s261, %s262
      %p274 = scmp.eq.s32.totalorder %s30, 1
      %p275 = por %p273, %p274
      %p277 = scmp.ne.s32.totalorder %s262, %s276
      %p278 = scmp.eq.s32.totalorder %s30, 0
      %p279 = por %p277, %p278
      %s281 = sadd.s32 %s280, 1
      %p284 = scmp.eq.s32.totalorder %s24, 1
      %p285 = scmp.ne.s32.totalorder %s280, %s282
      %p286 = scmp.eq.s32.totalorder %s24, 0
      %p287 = por %p285, %p286
      %p288 = scmp.ne.s32.totalorder %s280, %s282
      %p289 = scmp.eq.s32.totalorder %s29, 1
      %p290 = por %p288, %p289
      %p291 = scmp.ne.s32.totalorder %s282, %s283
      %p292 = scmp.eq.s32.totalorder %s29, 0
      %p293 = por %p291, %p292
      %p294 = scmp.ne.s32.totalorder %s282, %s283
      %p295 = scmp.eq.s32.totalorder %s30, 1
      %p296 = por %p294, %p295
      %p298 = scmp.ne.s32.totalorder %s283, %s297
      %p299 = scmp.eq.s32.totalorder %s30, 0
      %p300 = por %p298, %p299
      %s302 = sadd.s32 %s301, 1
      %p305 = scmp.eq.s32.totalorder %s24, 1
      %p306 = scmp.ne.s32.totalorder %s301, %s303
      %p307 = scmp.eq.s32.totalorder %s24, 0
      %p308 = por %p306, %p307
      %p309 = scmp.ne.s32.totalorder %s301, %s303
      %p310 = scmp.eq.s32.totalorder %s29, 1
      %p311 = por %p309, %p310
      %p312 = scmp.ne.s32.totalorder %s303, %s304
      %p313 = scmp.eq.s32.totalorder %s29, 0
      %p314 = por %p312, %p313
      %p315 = scmp.ne.s32.totalorder %s303, %s304
      %p316 = scmp.eq.s32.totalorder %s30, 1
      %p317 = por %p315, %p316
      %p319 = scmp.ne.s32.totalorder %s304, %s318
      %p320 = scmp.eq.s32.totalorder %s30, 0
      %p321 = por %p319, %p320
      %s323 = sadd.s32 %s322, 1
      %p326 = scmp.eq.s32.totalorder %s24, 1
      %p327 = scmp.ne.s32.totalorder %s322, %s324
      %p328 = scmp.eq.s32.totalorder %s24, 0
      %p329 = por %p327, %p328
      %p330 = scmp.ne.s32.totalorder %s322, %s324
      %p331 = scmp.eq.s32.totalorder %s29, 1
      %p332 = por %p330, %p331
      %p333 = scmp.ne.s32.totalorder %s324, %s325
      %p334 = scmp.eq.s32.totalorder %s29, 0
      %p335 = por %p333, %p334
      %p336 = scmp.ne.s32.totalorder %s324, %s325
      %p337 = scmp.eq.s32.totalorder %s30, 1
      %p338 = por %p336, %p337
      %p340 = scmp.ne.s32.totalorder %s325, %s339
      %p341 = scmp.eq.s32.totalorder %s30, 0
      %p342 = por %p340, %p341
      %s344 = sadd.s32 %s343, 1
      %p347 = scmp.eq.s32.totalorder %s24, 1
      %p348 = scmp.ne.s32.totalorder %s343, %s345
      %p349 = scmp.eq.s32.totalorder %s24, 0
      %p350 = por %p348, %p349
      %p351 = scmp.ne.s32.totalorder %s343, %s345
      %p352 = scmp.eq.s32.totalorder %s29, 1
      %p353 = por %p351, %p352
      %p354 = scmp.ne.s32.totalorder %s345, %s346
      %p355 = scmp.eq.s32.totalorder %s29, 0
      %p356 = por %p354, %p355
      %p357 = scmp.ne.s32.totalorder %s345, %s346
      %p358 = scmp.eq.s32.totalorder %s30, 1
      %p359 = por %p357, %p358
      %p361 = scmp.ne.s32.totalorder %s346, %s360
      %p362 = scmp.eq.s32.totalorder %s30, 0
      %p363 = por %p361, %p362
      %s364 = ssub.s32 %s31, %s43
      %s365 = ssub.s32 %s32, %s39
      %s366 = sor.u32 %s364, %s365
      %p367 = scmp.eq.s32.totalorder %s366, 0
      %s369 = sadd.s32 %s368, 1
      %s370 = scalar_select %p367, %s368, %s369
      %p373 = pneg %p367
      %p374 = scmp.eq.s32.totalorder %s24, 1
      %p375 = por %p373, %p374
      %p376 = scmp.ne.s32.totalorder %s368, %s371
      %p377 = scmp.eq.s32.totalorder %s24, 0
      %p378 = por %p376, %p377
      %p379 = scmp.ne.s32.totalorder %s368, %s371
      %p380 = scmp.eq.s32.totalorder %s29, 1
      %p381 = por %p379, %p380
      %p382 = scmp.ne.s32.totalorder %s371, %s372
      %p383 = scmp.eq.s32.totalorder %s29, 0
      %p384 = por %p382, %p383
      %p385 = scmp.ne.s32.totalorder %s371, %s372
      %p386 = scmp.eq.s32.totalorder %s30, 1
      %p387 = por %p385, %p386
      %p389 = scmp.ne.s32.totalorder %s372, %s388
      %p390 = scmp.eq.s32.totalorder %s30, 0
      %p391 = por %p389, %p390
      %p392 = scmp.le.s32.totalorder 1, %s24
      %p393 = scmp.lt.s32.totalorder %s24, 3
      %p394 = pnand %p392, %p393
      %p395 = pneg %p394
      // Predicated region
      $region9: #{weather_encoder.3} parent=5 // pred_check
        _
      $region10: #{weather_encoder.3} parent=5 // pred_check_branch
        %397 = sbr.rel (%p394) target = $region12
      $region11: #{weather_encoder.3} parent=5 // pred_region
        %s398 = ssub.s32 %s24, 1
        // Predicated region
        $region13: #{weather_encoder.3} parent=11 // pred_check
          %p399 = pneg %p83
        $region14: #{weather_encoder.3} parent=11 // pred_check_branch
          %401 = sbr.rel (%p399) target = $region16
        $region15: #{weather_encoder.3} parent=11 // pred_region
          _
        $region16: #{weather_encoder.3} parent=11 // pred_fallthru
          _
        // Predicated region
        $region17: #{weather_encoder.3} parent=11 // pred_check
          %p402 = pneg %p104
        $region18: #{weather_encoder.3} parent=11 // pred_check_branch
          %404 = sbr.rel (%p402) target = $region20
        $region19: #{weather_encoder.3} parent=11 // pred_region
          _
        $region20: #{weather_encoder.3} parent=11 // pred_fallthru
          _
        // Predicated region
        $region21: #{weather_encoder.3} parent=11 // pred_check
          %p405 = pneg %p125
        $region22: #{weather_encoder.3} parent=11 // pred_check_branch
          %407 = sbr.rel (%p405) target = $region24
        $region23: #{weather_encoder.3} parent=11 // pred_region
          _
        $region24: #{weather_encoder.3} parent=11 // pred_fallthru
          _
        // Predicated region
        $region25: #{weather_encoder.3} parent=11 // pred_check
          %p408 = pneg %p146
        $region26: #{weather_encoder.3} parent=11 // pred_check_branch
          %410 = sbr.rel (%p408) target = $region28
        $region27: #{weather_encoder.3} parent=11 // pred_region
          _
        $region28: #{weather_encoder.3} parent=11 // pred_fallthru
          _
        // Predicated region
        $region29: #{weather_encoder.3} parent=11 // pred_check
          %p411 = pneg %p167
        $region30: #{weather_encoder.3} parent=11 // pred_check_branch
          %413 = sbr.rel (%p411) target = $region32
        $region31: #{weather_encoder.3} parent=11 // pred_region
          _
        $region32: #{weather_encoder.3} parent=11 // pred_fallthru
          _
        // Predicated region
        $region33: #{weather_encoder.3} parent=11 // pred_check
          %p414 = pneg %p188
        $region34: #{weather_encoder.3} parent=11 // pred_check_branch
          %416 = sbr.rel (%p414) target = $region36
        $region35: #{weather_encoder.3} parent=11 // pred_region
          _
        $region36: #{weather_encoder.3} parent=11 // pred_fallthru
          _
        // Predicated region
        $region37: #{weather_encoder.3} parent=11 // pred_check
          %p417 = pneg %p209
        $region38: #{weather_encoder.3} parent=11 // pred_check_branch
          %419 = sbr.rel (%p417) target = $region40
        $region39: #{weather_encoder.3} parent=11 // pred_region
          _
        $region40: #{weather_encoder.3} parent=11 // pred_fallthru
          _
        // Predicated region
        $region41: #{weather_encoder.3} parent=11 // pred_check
          %p420 = pneg %p230
        $region42: #{weather_encoder.3} parent=11 // pred_check_branch
          %422 = sbr.rel (%p420) target = $region44
        $region43: #{weather_encoder.3} parent=11 // pred_region
          _
        $region44: #{weather_encoder.3} parent=11 // pred_fallthru
          _
        // Predicated region
        $region45: #{weather_encoder.3} parent=11 // pred_check
          %p423 = pneg %p251
        $region46: #{weather_encoder.3} parent=11 // pred_check_branch
          %425 = sbr.rel (%p423) target = $region48
        $region47: #{weather_encoder.3} parent=11 // pred_region
          _
        $region48: #{weather_encoder.3} parent=11 // pred_fallthru
          _
        // Predicated region
        $region49: #{weather_encoder.3} parent=11 // pred_check
          %p426 = pneg %p272
        $region50: #{weather_encoder.3} parent=11 // pred_check_branch
          %428 = sbr.rel (%p426) target = $region52
        $region51: #{weather_encoder.3} parent=11 // pred_region
          _
        $region52: #{weather_encoder.3} parent=11 // pred_fallthru
          _
        // Predicated region
        $region53: #{weather_encoder.3} parent=11 // pred_check
          %p429 = pneg %p293
        $region54: #{weather_encoder.3} parent=11 // pred_check_branch
          %431 = sbr.rel (%p429) target = $region56
        $region55: #{weather_encoder.3} parent=11 // pred_region
          _
        $region56: #{weather_encoder.3} parent=11 // pred_fallthru
          _
        // Predicated region
        $region57: #{weather_encoder.3} parent=11 // pred_check
          %p432 = pneg %p314
        $region58: #{weather_encoder.3} parent=11 // pred_check_branch
          %434 = sbr.rel (%p432) target = $region60
        $region59: #{weather_encoder.3} parent=11 // pred_region
          _
        $region60: #{weather_encoder.3} parent=11 // pred_fallthru
          _
        // Predicated region
        $region61: #{weather_encoder.3} parent=11 // pred_check
          %p435 = pneg %p335
        $region62: #{weather_encoder.3} parent=11 // pred_check_branch
          %437 = sbr.rel (%p435) target = $region64
        $region63: #{weather_encoder.3} parent=11 // pred_region
          _
        $region64: #{weather_encoder.3} parent=11 // pred_fallthru
          _
        // Predicated region
        $region65: #{weather_encoder.3} parent=11 // pred_check
          %p438 = pneg %p356
        $region66: #{weather_encoder.3} parent=11 // pred_check_branch
          %440 = sbr.rel (%p438) target = $region68
        $region67: #{weather_encoder.3} parent=11 // pred_region
          _
        $region68: #{weather_encoder.3} parent=11 // pred_fallthru
          _
      $region12: #{weather_encoder.3} parent=5 // pred_fallthru
        _
      %p441 = scmp.lt.s32.totalorder %s24, 2
      // Predicated region
      $region69: #{weather_encoder.3} parent=5 // pred_check
        %p442 = pneg %p441
      $region70: #{weather_encoder.3} parent=5 // pred_check_branch
        %444 = sbr.rel (%p442) target = $region72
      $region71: #{weather_encoder.3} parent=5 // pred_region
        // Predicated region
        $region73: #{weather_encoder.3} parent=71 // pred_check
          %p445 = pneg %p56
        $region74: #{weather_encoder.3} parent=71 // pred_check_branch
          %447 = sbr.rel (%p445) target = $region76
        $region75: #{weather_encoder.3} parent=71 // pred_region
          %p448 = scmp.lt.s32.totalorder %s31, 1
          %s449 = scalar_select %p448, %s31, 1
          %s450 = smul.addr %s449, 4
          %s451 = scalar_lea.vmem %s0, %s450
        $region76: #{weather_encoder.3} parent=71 // pred_fallthru
          _
      $region72: #{weather_encoder.3} parent=5 // pred_fallthru
        _
      %p452 = scmp.le.s32.totalorder 1, %s24
      %p453 = scmp.lt.s32.totalorder %s24, 3
      %p454 = pnand %p452, %p453
      %p455 = pneg %p454
      // Predicated region
      $region77: #{weather_encoder.3} parent=5 // pred_check
        _
      $region78: #{weather_encoder.3} parent=5 // pred_check_branch
        %457 = sbr.rel (%p454) target = $region80
      $region79: #{weather_encoder.3} parent=5 // pred_region
        %s458 = ssub.s32 %s24, 1
        %p459 = scmp.lt.s32.totalorder %s33, 1
        %s460 = scalar_select %p459, %s33, 1
        %s461 = smul.addr %s460, 4
        %s462 = scalar_lea.vmem %s0, %s461
        %p463 = pneg %p62
        %p464 = pneg %p59
        %p465 = pneg %p83
        %p466 = pneg %p80
        %p467 = pneg %p104
        %p468 = pneg %p101
        %p469 = pneg %p125
        %p470 = pneg %p122
        %p471 = pneg %p146
        %p472 = pneg %p143
        %p473 = pneg %p167
        %p474 = pneg %p164
        %p475 = pneg %p188
        %p476 = pneg %p185
        %p477 = pneg %p209
        %p478 = pneg %p206
        %p479 = pneg %p230
        %p480 = pneg %p227
        %p481 = pneg %p251
        %p482 = pneg %p248
        %p483 = pneg %p272
        %p484 = pneg %p269
        %p485 = pneg %p293
        %p486 = pneg %p290
        %p487 = pneg %p314
        %p488 = pneg %p311
        %p489 = pneg %p335
        %p490 = pneg %p332
        %p491 = pneg %p356
        %p492 = pneg %p353
        %p493 = pneg %p384
        %p494 = pneg %p381
        %s495 = sand.u32 %s371, 1
        %s496 = scalar_lea.sflag [#allocation3], %s495
        %s497 = sand.u32 %s371, 1
        %s498 = smul.addr %s497, 8
        %s499 = scalar_lea.vmem [#allocation2], %s498
        %p500 = scmp.lt.s32.totalorder %s33, 1
        %s501 = scalar_select %p500, %s33, 1
        %s502 = smul.addr %s501, 4
        %s503 = scalar_lea.vmem %s0, %s502
        %v505 = vld [vmem:[%s503] sm:$0xf]
        %v506 = vunpack.c.l.bf16 %v505
        %v507 = vld [vmem:[%s1] sm:$0xf]
        %v508 = vld [vmem:[%s1 + $0x4] sm:$0xf]
        %v509 = vld [vmem:[%s1 + $0x8] sm:$0xf]
        %v510 = vld [vmem:[%s1 + $0xc] sm:$0xf]
        %v511 = vld [vmem:[%s1 + $0x10] sm:$0xf]
        %v512 = vld [vmem:[%s1 + $0x14] sm:$0xf]
        %v513 = vld [vmem:[%s1 + $0x18] sm:$0xf]
        %v514 = vld [vmem:[%s1 + $0x1c] sm:$0xf]
        %v515 = vld [vmem:[%s1 + $0x20] sm:$0xf]
        %v516 = vld [vmem:[%s1 + $0x24] sm:$0xf]
        %v517 = vld [vmem:[%s1 + $0x28] sm:$0xf]
        %v518 = vld [vmem:[%s1 + $0x2c] sm:$0xf]
        %v519 = vld [vmem:[%s1 + $0x30] sm:$0xf]
        %v520 = vld [vmem:[%s1 + $0x34] sm:$0xf]
        %v521 = vld [vmem:[%s1 + $0x38] sm:$0xf]
        %v522 = vld [vmem:[%s1 + $0x3c] sm:$0xf]
        %v523 = vld [vmem:[%s2] sm:$0x1]
        %v525 = vlaneseq
        %v526 = vshrl.u32 %v525, 7
        %v527 = vsub.s32 0, %v526
        %v528 = vrot.slane %v523, %v527
        %v546 = vunpack.c.l.b16 %v507
        %v547 = vunpack.c.l.b16 %v508
        %v548 = vunpack.c.l.b16 %v509
        %v549 = vunpack.c.l.b16 %v510
        %v550 = vunpack.c.l.b16 %v511
        %v551 = vunpack.c.l.b16 %v512
        %v552 = vunpack.c.l.b16 %v513
        %v553 = vunpack.c.l.b16 %v514
        %v554 = vunpack.c.l.b16 %v515
        %v555 = vunpack.c.l.b16 %v516
        %v556 = vunpack.c.l.b16 %v517
        %v557 = vunpack.c.l.b16 %v518
        %v558 = vunpack.c.l.b16 %v519
        %v559 = vunpack.c.l.b16 %v520
        %v560 = vunpack.c.l.b16 %v521
        %v561 = vunpack.c.l.b16 %v522
        %v562 = vpack.c.b16 %v547, %v546
        %v563 = vpack.c.b16 %v549, %v548
        %v564 = vpack.c.b16 %v551, %v550
        %v565 = vpack.c.b16 %v553, %v552
        %v566 = vpack.c.b16 %v555, %v554
        %v567 = vpack.c.b16 %v557, %v556
        %v568 = vpack.c.b16 %v559, %v558
        %v569 = vpack.c.b16 %v561, %v560
        %578 = vmatprep.subr.bf16.mxu0 0
        %579 = vmatpush1.bf16.msra.mxu0 %v569
        %580 = vmatprep.subr.bf16.mxu0 0
        %581 = vmatpush1.bf16.msra.mxu0 %v568
        %582 = vmatprep.subr.bf16.mxu0 0
        %583 = vmatpush1.bf16.msra.mxu0 %v567
        %584 = vmatprep.subr.bf16.mxu0 0
        %585 = vmatpush1.bf16.msra.mxu0 %v566
        %586 = vmatprep.subr.bf16.mxu0 0
        %587 = vmatpush1.bf16.msra.mxu0 %v565
        %588 = vmatprep.subr.bf16.mxu0 0
        %589 = vmatpush1.bf16.msra.mxu0 %v564
        %590 = vmatprep.subr.bf16.mxu0 0
        %591 = vmatpush1.bf16.msra.mxu0 %v563
        %592 = vmatprep.subr.bf16.mxu0 0
        %593 = vmatpush1.bf16.msra.mxu0 %v562
        %594 = vmatprep.subr.bf16.mxu0 0
        %595 = vmatpush2.bf16.msra.mxu0 0
        %596 = vmatprep.subr.bf16.mxu0 0
        %597 = vmatpush2.bf16.msra.mxu0 0
        %598 = vmatprep.subr.bf16.mxu0 0
        %599 = vmatpush2.bf16.msra.mxu0 0
        %600 = vmatprep.subr.bf16.mxu0 0
        %601 = vmatpush2.bf16.msra.mxu0 0
        %602 = vmatprep.subr.bf16.mxu0 0
        %603 = vmatpush2.bf16.msra.mxu0 0
        %604 = vmatprep.subr.bf16.mxu0 0
        %605 = vmatpush2.bf16.msra.mxu0 0
        %606 = vmatprep.subr.bf16.mxu0 0
        %607 = vmatpush2.bf16.msra.mxu0 0
        %608 = vmatprep.subr.bf16.mxu0 0
        %609 = vmatpush2.bf16.msra.mxu0 0
        %610 = vmatprep.mubr.bf16.mxu0 0
        %611 = vmatmul.mubr.bf16.gmra.mxu0 %v505
        %v612 = vpop.f32.mrf.mxu0
        %v613 = vadd.f32 %v528, %v612
        %v614 = vpop.f32.mrf.mxu0
        %v615 = vpop.f32.mrf.mxu0
        %v616 = vpop.f32.mrf.mxu0
        %617 = vdwg.mxu0
        %v618 = vld [vmem:[%s3] sm:$0xff]
        %v619 = vld [vmem:[%s3 + $0x8] sm:$0xff]
        %v620 = vld [vmem:[%s3 + $0x10] sm:$0xff]
        %v621 = vld [vmem:[%s3 + $0x18] sm:$0xff]
        %v622 = vld [vmem:[%s3 + $0x20] sm:$0xff]
        %v623 = vld [vmem:[%s3 + $0x28] sm:$0xff]
        %v624 = vld [vmem:[%s3 + $0x30] sm:$0xff]
        %v625 = vld [vmem:[%s3 + $0x38] sm:$0xff]
        %v626 = vld [vmem:[%s3 + $0x40] sm:$0xff]
        %v627 = vld [vmem:[%s3 + $0x48] sm:$0xff]
        %v628 = vld [vmem:[%s3 + $0x50] sm:$0xff]
        %v629 = vld [vmem:[%s3 + $0x58] sm:$0xff]
        %v630 = vld [vmem:[%s3 + $0x60] sm:$0xff]
        %v631 = vld [vmem:[%s3 + $0x68] sm:$0xff]
        %v632 = vld [vmem:[%s3 + $0x70] sm:$0xff]
        %v633 = vld [vmem:[%s3 + $0x78] sm:$0xff]
        %v634 = vld [vmem:[%s4] sm:$0x3]
        %v636 = vlaneseq
        %v637 = vshrl.u32 %v636, 7
        %v638 = vsub.s32 0, %v637
        %v639 = vrot.slane %v634, %v638
        %v640 = vlaneseq
        %v641 = vshrl.u32 %v640, 7
        %v642 = vsub.s32 1, %v641
        %v643 = vrot.slane %v634, %v642
        %v662 = vunpack.c.l.b16 %v618
        %v663 = vunpack.c.h.b16 %v618
        %v664 = vunpack.c.l.b16 %v619
        %v665 = vunpack.c.h.b16 %v619
        %v666 = vunpack.c.l.b16 %v620
        %v667 = vunpack.c.h.b16 %v620
        %v668 = vunpack.c.l.b16 %v621
        %v669 = vunpack.c.h.b16 %v621
        %v670 = vunpack.c.l.b16 %v622
        %v671 = vunpack.c.h.b16 %v622
        %v672 = vunpack.c.l.b16 %v623
        %v673 = vunpack.c.h.b16 %v623
        %v674 = vunpack.c.l.b16 %v624
        %v675 = vunpack.c.h.b16 %v624
        %v676 = vunpack.c.l.b16 %v625
        %v677 = vunpack.c.h.b16 %v625
        %v678 = vunpack.c.l.b16 %v626
        %v679 = vunpack.c.h.b16 %v626
        %v680 = vunpack.c.l.b16 %v627
        %v681 = vunpack.c.h.b16 %v627
        %v682 = vunpack.c.l.b16 %v628
        %v683 = vunpack.c.h.b16 %v628
        %v684 = vunpack.c.l.b16 %v629
        %v685 = vunpack.c.h.b16 %v629
        %v686 = vunpack.c.l.b16 %v630
        %v687 = vunpack.c.h.b16 %v630
        %v688 = vunpack.c.l.b16 %v631
        %v689 = vunpack.c.h.b16 %v631
        %v690 = vunpack.c.l.b16 %v632
        %v691 = vunpack.c.h.b16 %v632
        %v692 = vunpack.c.l.b16 %v633
        %v693 = vunpack.c.h.b16 %v633
        %v694 = vpack.c.b16 %v664, %v662
        %v695 = vpack.c.b16 %v665, %v663
        %v696 = vpack.c.b16 %v668, %v666
        %v697 = vpack.c.b16 %v669, %v667
        %v698 = vpack.c.b16 %v672, %v670
        %v699 = vpack.c.b16 %v673, %v671
        %v700 = vpack.c.b16 %v676, %v674
        %v701 = vpack.c.b16 %v677, %v675
        %v702 = vpack.c.b16 %v680, %v678
        %v703 = vpack.c.b16 %v681, %v679
        %v704 = vpack.c.b16 %v684, %v682
        %v705 = vpack.c.b16 %v685, %v683
        %v706 = vpack.c.b16 %v688, %v686
        %v707 = vpack.c.b16 %v689, %v687
        %v708 = vpack.c.b16 %v692, %v690
        %v709 = vpack.c.b16 %v693, %v691
        %726 = vmatprep.subr.bf16.mxu0 %v709
        %727 = vmatpush1.bf16.msra.mxu0 %v708
        %728 = vmatprep.subr.bf16.mxu0 %v707
        %729 = vmatpush1.bf16.msra.mxu0 %v706
        %730 = vmatprep.subr.bf16.mxu0 %v705
        %731 = vmatpush1.bf16.msra.mxu0 %v704
        %732 = vmatprep.subr.bf16.mxu0 %v703
        %733 = vmatpush1.bf16.msra.mxu0 %v702
        %734 = vmatprep.subr.bf16.mxu0 %v701
        %735 = vmatpush1.bf16.msra.mxu0 %v700
        %736 = vmatprep.subr.bf16.mxu0 %v699
        %737 = vmatpush1.bf16.msra.mxu0 %v698
        %738 = vmatprep.subr.bf16.mxu0 %v697
        %739 = vmatpush1.bf16.msra.mxu0 %v696
        %740 = vmatprep.subr.bf16.mxu0 %v695
        %741 = vmatpush1.bf16.msra.mxu0 %v694
        %742 = vmatprep.subr.bf16.mxu0 0
        %743 = vmatpush2.bf16.msra.mxu0 0
        %744 = vmatprep.subr.bf16.mxu0 0
        %745 = vmatpush2.bf16.msra.mxu0 0
        %746 = vmatprep.subr.bf16.mxu0 0
        %747 = vmatpush2.bf16.msra.mxu0 0
        %748 = vmatprep.subr.bf16.mxu0 0
        %749 = vmatpush2.bf16.msra.mxu0 0
        %750 = vmatprep.subr.bf16.mxu0 0
        %751 = vmatpush2.bf16.msra.mxu0 0
        %752 = vmatprep.subr.bf16.mxu0 0
        %753 = vmatpush2.bf16.msra.mxu0 0
        %754 = vmatprep.subr.bf16.mxu0 0
        %755 = vmatpush2.bf16.msra.mxu0 0
        %756 = vmatprep.subr.bf16.mxu0 0
        %757 = vmatpush2.bf16.msra.mxu0 0
        %758 = vmatprep.mubr.bf16.mxu0 0
        %759 = vmatmul.mubr.bf16.gmra.mxu0 %v505
        %v760 = vpop.f32.mrf.mxu0
        %v761 = vadd.f32 %v639, %v760
        %v762 = vpop.f32.mrf.mxu0
        %v763 = vadd.f32 %v643, %v762
        %v764 = vpop.f32.mrf.mxu0
        %v765 = vpop.f32.mrf.mxu0
        %766 = vdwg.mxu0
        %v767 = vpack.c.bf16 %v613, %v613
        %769 = vrot.lane.b32.xlu0 %v767, 96
        %v770 = vpop.permute.xlu0 %769
        %771 = vrot.lane.b32.xlu0 %v767, 64
        %v772 = vpop.permute.xlu0 %771
        %773 = vrot.lane.b32.xlu0 %v767, 32
        %v774 = vpop.permute.xlu0 %773
        %v776 = vunpack.c.l.s4 1983009808
        %v777 = vunpack.c.0.s8 %v776
        %v778 = vlaneseq
        %v779 = vshrl.u32 %v778, 7
        %v780 = vsub.s32 %v777, %v779
        %v781 = vrot.slane %v767, %v780
        %v784 = vunpack.c.l.s4 1983009808
        %v785 = vunpack.c.0.s8 %v784
        %v786 = vlaneseq
        %v787 = vshrl.u32 %v786, 7
        %v788 = vsub.s32 %v785, %v787
        %v789 = vrot.slane %v772, %v788
        %v790 = vcombine.low %v781, %v789
        %v791 = vcombine.high %v781, %v789
        %v793 = vunpack.c.l.s4 1934713408
        %v794 = vunpack.c.0.s8 %v793
        %v795 = vlaneseq
        %v796 = vshrl.u32 %v795, 7
        %v797 = vsub.s32 %v794, %v796
        %v798 = vrot.slane %v790, %v797
        %v800 = vunpack.c.l.s4 1934713408
        %v801 = vunpack.c.0.s8 %v800
        %v802 = vlaneseq
        %v803 = vshrl.u32 %v802, 7
        %v804 = vsub.s32 %v801, %v803
        %v805 = vrot.slane %v791, %v804
        %v806 = vcombine.high %v798, 0
        %v807 = vcombine.high %v805, 0
        %v810 = vunpack.c.l.s4 1983009808
        %v811 = vunpack.c.0.s8 %v810
        %v812 = vlaneseq
        %v813 = vshrl.u32 %v812, 7
        %v814 = vsub.s32 %v811, %v813
        %v815 = vrot.slane %v770, %v814
        %v818 = vunpack.c.l.s4 1983009808
        %v819 = vunpack.c.0.s8 %v818
        %v820 = vlaneseq
        %v821 = vshrl.u32 %v820, 7
        %v822 = vsub.s32 %v819, %v821
        %v823 = vrot.slane %v774, %v822
        %v824 = vcombine.low %v815, %v823
        %v825 = vcombine.high %v815, %v823
        %v827 = vunpack.c.l.s4 1934713408
        %v828 = vunpack.c.0.s8 %v827
        %v829 = vlaneseq
        %v830 = vshrl.u32 %v829, 7
        %v831 = vsub.s32 %v828, %v830
        %v832 = vrot.slane %v824, %v831
        %v834 = vunpack.c.l.s4 1934713408
        %v835 = vunpack.c.0.s8 %v834
        %v836 = vlaneseq
        %v837 = vshrl.u32 %v836, 7
        %v838 = vsub.s32 %v835, %v837
        %v839 = vrot.slane %v825, %v838
        %v840 = vcombine.high %v832, 0
        %v841 = vcombine.high %v839, 0
        %v844 = vpack.i.b16 %v832, %v798
        %v846 = vshrl.u32 %v798, 16
        %v847 = vshrl.u32 %v832, 16
        %v848 = vpack.i.b16 %v847, %v846
        %v852 = vpack.i.b16 %v840, %v806
        %v854 = vshrl.u32 %v806, 16
        %v855 = vshrl.u32 %v840, 16
        %v856 = vpack.i.b16 %v855, %v854
        %v860 = vpack.i.b16 %v839, %v805
        %v862 = vshrl.u32 %v805, 16
        %v863 = vshrl.u32 %v839, 16
        %v864 = vpack.i.b16 %v863, %v862
        %v868 = vpack.i.b16 %v841, %v807
        %v870 = vshrl.u32 %v807, 16
        %v871 = vshrl.u32 %v841, 16
        %v872 = vpack.i.b16 %v871, %v870
        %v874 = vcombine.low %v844, %v860
        %v876 = vunpack.c.l.s4 1983009808
        %v877 = vunpack.c.0.s8 %v876
        %v878 = vlaneseq
        %v879 = vshrl.u32 %v878, 7
        %v880 = vsub.s32 %v877, %v879
        %v881 = vrot.slane %v874, %v880
        %v882 = vcombine.low %v852, %v868
        %v884 = vunpack.c.l.s4 1983009808
        %v885 = vunpack.c.0.s8 %v884
        %v886 = vlaneseq
        %v887 = vshrl.u32 %v886, 7
        %v888 = vsub.s32 %v885, %v887
        %v889 = vrot.slane %v882, %v888
        %v890 = vcombine.low %v881, %v889
        %v892 = vunpack.c.l.s4 1934713408
        %v893 = vunpack.c.0.s8 %v892
        %v894 = vlaneseq
        %v895 = vshrl.u32 %v894, 7
        %v896 = vsub.s32 %v893, %v895
        %v897 = vrot.slane %v890, %v896
        %v898 = vcombine.high %v897, 0
        %v899 = vcombine.low %v848, %v864
        %v901 = vunpack.c.l.s4 1983009808
        %v902 = vunpack.c.0.s8 %v901
        %v903 = vlaneseq
        %v904 = vshrl.u32 %v903, 7
        %v905 = vsub.s32 %v902, %v904
        %v906 = vrot.slane %v899, %v905
        %v907 = vcombine.low %v856, %v872
        %v909 = vunpack.c.l.s4 1983009808
        %v910 = vunpack.c.0.s8 %v909
        %v911 = vlaneseq
        %v912 = vshrl.u32 %v911, 7
        %v913 = vsub.s32 %v910, %v912
        %v914 = vrot.slane %v907, %v913
        %v915 = vcombine.low %v906, %v914
        %v917 = vunpack.c.l.s4 1934713408
        %v918 = vunpack.c.0.s8 %v917
        %v919 = vlaneseq
        %v920 = vshrl.u32 %v919, 7
        %v921 = vsub.s32 %v918, %v920
        %v922 = vrot.slane %v915, %v921
        %v923 = vcombine.high %v922, 0
        %v926 = vpack.i.b16 %v922, %v897
        %v927 = vshrl.u32 %v897, 16
        %v928 = vshrl.u32 %v922, 16
        %v929 = vpack.i.b16 %v928, %v927
        %v932 = vpack.i.b16 %v923, %v898
        %v933 = vshrl.u32 %v898, 16
        %v934 = vshrl.u32 %v923, 16
        %v935 = vpack.i.b16 %v934, %v933
        %v936 = vpack.c.bf16 %v761, %v761
        %938 = vrot.lane.b32.xlu0 %v936, 96
        %v939 = vpop.permute.xlu0 %938
        %940 = vrot.lane.b32.xlu0 %v936, 64
        %v941 = vpop.permute.xlu0 %940
        %942 = vrot.lane.b32.xlu0 %v936, 32
        %v943 = vpop.permute.xlu0 %942
        %v945 = vunpack.c.l.s4 1983009808
        %v946 = vunpack.c.0.s8 %v945
        %v947 = vlaneseq
        %v948 = vshrl.u32 %v947, 7
        %v949 = vsub.s32 %v946, %v948
        %v950 = vrot.slane %v936, %v949
        %v953 = vunpack.c.l.s4 1983009808
        %v954 = vunpack.c.0.s8 %v953
        %v955 = vlaneseq
        %v956 = vshrl.u32 %v955, 7
        %v957 = vsub.s32 %v954, %v956
        %v958 = vrot.slane %v941, %v957
        %v959 = vcombine.low %v950, %v958
        %v960 = vcombine.high %v950, %v958
        %v962 = vunpack.c.l.s4 1934713408
        %v963 = vunpack.c.0.s8 %v962
        %v964 = vlaneseq
        %v965 = vshrl.u32 %v964, 7
        %v966 = vsub.s32 %v963, %v965
        %v967 = vrot.slane %v959, %v966
        %v969 = vunpack.c.l.s4 1934713408
        %v970 = vunpack.c.0.s8 %v969
        %v971 = vlaneseq
        %v972 = vshrl.u32 %v971, 7
        %v973 = vsub.s32 %v970, %v972
        %v974 = vrot.slane %v960, %v973
        %v975 = vcombine.high %v967, 0
        %v976 = vcombine.high %v974, 0
        %v979 = vunpack.c.l.s4 1983009808
        %v980 = vunpack.c.0.s8 %v979
        %v981 = vlaneseq
        %v982 = vshrl.u32 %v981, 7
        %v983 = vsub.s32 %v980, %v982
        %v984 = vrot.slane %v939, %v983
        %v987 = vunpack.c.l.s4 1983009808
        %v988 = vunpack.c.0.s8 %v987
        %v989 = vlaneseq
        %v990 = vshrl.u32 %v989, 7
        %v991 = vsub.s32 %v988, %v990
        %v992 = vrot.slane %v943, %v991
        %v993 = vcombine.low %v984, %v992
        %v994 = vcombine.high %v984, %v992
        %v996 = vunpack.c.l.s4 1934713408
        %v997 = vunpack.c.0.s8 %v996
        %v998 = vlaneseq
        %v999 = vshrl.u32 %v998, 7
        %v1000 = vsub.s32 %v997, %v999
        %v1001 = vrot.slane %v993, %v1000
        %v1003 = vunpack.c.l.s4 1934713408
        %v1004 = vunpack.c.0.s8 %v1003
        %v1005 = vlaneseq
        %v1006 = vshrl.u32 %v1005, 7
        %v1007 = vsub.s32 %v1004, %v1006
        %v1008 = vrot.slane %v994, %v1007
        %v1009 = vcombine.high %v1001, 0
        %v1010 = vcombine.high %v1008, 0
        %v1013 = vpack.i.b16 %v1001, %v967
        %v1015 = vshrl.u32 %v967, 16
        %v1016 = vshrl.u32 %v1001, 16
        %v1017 = vpack.i.b16 %v1016, %v1015
        %v1021 = vpack.i.b16 %v1009, %v975
        %v1023 = vshrl.u32 %v975, 16
        %v1024 = vshrl.u32 %v1009, 16
        %v1025 = vpack.i.b16 %v1024, %v1023
        %v1029 = vpack.i.b16 %v1008, %v974
        %v1031 = vshrl.u32 %v974, 16
        %v1032 = vshrl.u32 %v1008, 16
        %v1033 = vpack.i.b16 %v1032, %v1031
        %v1037 = vpack.i.b16 %v1010, %v976
        %v1039 = vshrl.u32 %v976, 16
        %v1040 = vshrl.u32 %v1010, 16
        %v1041 = vpack.i.b16 %v1040, %v1039
        %v1043 = vcombine.low %v1013, %v1029
        %v1045 = vunpack.c.l.s4 1983009808
        %v1046 = vunpack.c.0.s8 %v1045
        %v1047 = vlaneseq
        %v1048 = vshrl.u32 %v1047, 7
        %v1049 = vsub.s32 %v1046, %v1048
        %v1050 = vrot.slane %v1043, %v1049
        %v1051 = vcombine.low %v1021, %v1037
        %v1053 = vunpack.c.l.s4 1983009808
        %v1054 = vunpack.c.0.s8 %v1053
        %v1055 = vlaneseq
        %v1056 = vshrl.u32 %v1055, 7
        %v1057 = vsub.s32 %v1054, %v1056
        %v1058 = vrot.slane %v1051, %v1057
        %v1059 = vcombine.low %v1050, %v1058
        %v1061 = vunpack.c.l.s4 1934713408
        %v1062 = vunpack.c.0.s8 %v1061
        %v1063 = vlaneseq
        %v1064 = vshrl.u32 %v1063, 7
        %v1065 = vsub.s32 %v1062, %v1064
        %v1066 = vrot.slane %v1059, %v1065
        %v1067 = vcombine.high %v1066, 0
        %v1068 = vcombine.low %v1017, %v1033
        %v1070 = vunpack.c.l.s4 1983009808
        %v1071 = vunpack.c.0.s8 %v1070
        %v1072 = vlaneseq
        %v1073 = vshrl.u32 %v1072, 7
        %v1074 = vsub.s32 %v1071, %v1073
        %v1075 = vrot.slane %v1068, %v1074
        %v1076 = vcombine.low %v1025, %v1041
        %v1078 = vunpack.c.l.s4 1983009808
        %v1079 = vunpack.c.0.s8 %v1078
        %v1080 = vlaneseq
        %v1081 = vshrl.u32 %v1080, 7
        %v1082 = vsub.s32 %v1079, %v1081
        %v1083 = vrot.slane %v1076, %v1082
        %v1084 = vcombine.low %v1075, %v1083
        %v1086 = vunpack.c.l.s4 1934713408
        %v1087 = vunpack.c.0.s8 %v1086
        %v1088 = vlaneseq
        %v1089 = vshrl.u32 %v1088, 7
        %v1090 = vsub.s32 %v1087, %v1089
        %v1091 = vrot.slane %v1084, %v1090
        %v1092 = vcombine.high %v1091, 0
        %v1095 = vpack.i.b16 %v1091, %v1066
        %v1096 = vshrl.u32 %v1066, 16
        %v1097 = vshrl.u32 %v1091, 16
        %v1098 = vpack.i.b16 %v1097, %v1096
        %v1101 = vpack.i.b16 %v1092, %v1067
        %v1102 = vshrl.u32 %v1067, 16
        %v1103 = vshrl.u32 %v1092, 16
        %v1104 = vpack.i.b16 %v1103, %v1102
        %v1105 = vpack.c.bf16 %v763, %v763
        %1107 = vrot.lane.b32.xlu0 %v1105, 96
        %v1108 = vpop.permute.xlu0 %1107
        %1109 = vrot.lane.b32.xlu0 %v1105, 64
        %v1110 = vpop.permute.xlu0 %1109
        %1111 = vrot.lane.b32.xlu0 %v1105, 32
        %v1112 = vpop.permute.xlu0 %1111
        %v1114 = vunpack.c.l.s4 1983009808
        %v1115 = vunpack.c.0.s8 %v1114
        %v1116 = vlaneseq
        %v1117 = vshrl.u32 %v1116, 7
        %v1118 = vsub.s32 %v1115, %v1117
        %v1119 = vrot.slane %v1105, %v1118
        %v1122 = vunpack.c.l.s4 1983009808
        %v1123 = vunpack.c.0.s8 %v1122
        %v1124 = vlaneseq
        %v1125 = vshrl.u32 %v1124, 7
        %v1126 = vsub.s32 %v1123, %v1125
        %v1127 = vrot.slane %v1110, %v1126
        %v1128 = vcombine.low %v1119, %v1127
        %v1129 = vcombine.high %v1119, %v1127
        %v1131 = vunpack.c.l.s4 1934713408
        %v1132 = vunpack.c.0.s8 %v1131
        %v1133 = vlaneseq
        %v1134 = vshrl.u32 %v1133, 7
        %v1135 = vsub.s32 %v1132, %v1134
        %v1136 = vrot.slane %v1128, %v1135
        %v1138 = vunpack.c.l.s4 1934713408
        %v1139 = vunpack.c.0.s8 %v1138
        %v1140 = vlaneseq
        %v1141 = vshrl.u32 %v1140, 7
        %v1142 = vsub.s32 %v1139, %v1141
        %v1143 = vrot.slane %v1129, %v1142
        %v1144 = vcombine.high %v1136, 0
        %v1145 = vcombine.high %v1143, 0
        %v1148 = vunpack.c.l.s4 1983009808
        %v1149 = vunpack.c.0.s8 %v1148
        %v1150 = vlaneseq
        %v1151 = vshrl.u32 %v1150, 7
        %v1152 = vsub.s32 %v1149, %v1151
        %v1153 = vrot.slane %v1108, %v1152
        %v1156 = vunpack.c.l.s4 1983009808
        %v1157 = vunpack.c.0.s8 %v1156
        %v1158 = vlaneseq
        %v1159 = vshrl.u32 %v1158, 7
        %v1160 = vsub.s32 %v1157, %v1159
        %v1161 = vrot.slane %v1112, %v1160
        %v1162 = vcombine.low %v1153, %v1161
        %v1163 = vcombine.high %v1153, %v1161
        %v1165 = vunpack.c.l.s4 1934713408
        %v1166 = vunpack.c.0.s8 %v1165
        %v1167 = vlaneseq
        %v1168 = vshrl.u32 %v1167, 7
        %v1169 = vsub.s32 %v1166, %v1168
        %v1170 = vrot.slane %v1162, %v1169
        %v1172 = vunpack.c.l.s4 1934713408
        %v1173 = vunpack.c.0.s8 %v1172
        %v1174 = vlaneseq
        %v1175 = vshrl.u32 %v1174, 7
        %v1176 = vsub.s32 %v1173, %v1175
        %v1177 = vrot.slane %v1163, %v1176
        %v1178 = vcombine.high %v1170, 0
        %v1179 = vcombine.high %v1177, 0
        %v1182 = vpack.i.b16 %v1170, %v1136
        %v1184 = vshrl.u32 %v1136, 16
        %v1185 = vshrl.u32 %v1170, 16
        %v1186 = vpack.i.b16 %v1185, %v1184
        %v1190 = vpack.i.b16 %v1178, %v1144
        %v1192 = vshrl.u32 %v1144, 16
        %v1193 = vshrl.u32 %v1178, 16
        %v1194 = vpack.i.b16 %v1193, %v1192
        %v1198 = vpack.i.b16 %v1177, %v1143
        %v1200 = vshrl.u32 %v1143, 16
        %v1201 = vshrl.u32 %v1177, 16
        %v1202 = vpack.i.b16 %v1201, %v1200
        %v1206 = vpack.i.b16 %v1179, %v1145
        %v1208 = vshrl.u32 %v1145, 16
        %v1209 = vshrl.u32 %v1179, 16
        %v1210 = vpack.i.b16 %v1209, %v1208
        %v1212 = vcombine.low %v1182, %v1198
        %v1214 = vunpack.c.l.s4 1983009808
        %v1215 = vunpack.c.0.s8 %v1214
        %v1216 = vlaneseq
        %v1217 = vshrl.u32 %v1216, 7
        %v1218 = vsub.s32 %v1215, %v1217
        %v1219 = vrot.slane %v1212, %v1218
        %v1220 = vcombine.low %v1190, %v1206
        %v1222 = vunpack.c.l.s4 1983009808
        %v1223 = vunpack.c.0.s8 %v1222
        %v1224 = vlaneseq
        %v1225 = vshrl.u32 %v1224, 7
        %v1226 = vsub.s32 %v1223, %v1225
        %v1227 = vrot.slane %v1220, %v1226
        %v1228 = vcombine.low %v1219, %v1227
        %v1230 = vunpack.c.l.s4 1934713408
        %v1231 = vunpack.c.0.s8 %v1230
        %v1232 = vlaneseq
        %v1233 = vshrl.u32 %v1232, 7
        %v1234 = vsub.s32 %v1231, %v1233
        %v1235 = vrot.slane %v1228, %v1234
        %v1236 = vcombine.high %v1235, 0
        %v1237 = vcombine.low %v1186, %v1202
        %v1239 = vunpack.c.l.s4 1983009808
        %v1240 = vunpack.c.0.s8 %v1239
        %v1241 = vlaneseq
        %v1242 = vshrl.u32 %v1241, 7
        %v1243 = vsub.s32 %v1240, %v1242
        %v1244 = vrot.slane %v1237, %v1243
        %v1245 = vcombine.low %v1194, %v1210
        %v1247 = vunpack.c.l.s4 1983009808
        %v1248 = vunpack.c.0.s8 %v1247
        %v1249 = vlaneseq
        %v1250 = vshrl.u32 %v1249, 7
        %v1251 = vsub.s32 %v1248, %v1250
        %v1252 = vrot.slane %v1245, %v1251
        %v1253 = vcombine.low %v1244, %v1252
        %v1255 = vunpack.c.l.s4 1934713408
        %v1256 = vunpack.c.0.s8 %v1255
        %v1257 = vlaneseq
        %v1258 = vshrl.u32 %v1257, 7
        %v1259 = vsub.s32 %v1256, %v1258
        %v1260 = vrot.slane %v1253, %v1259
        %v1261 = vcombine.high %v1260, 0
        %v1264 = vpack.i.b16 %v1260, %v1235
        %v1265 = vshrl.u32 %v1235, 16
        %v1266 = vshrl.u32 %v1260, 16
        %v1267 = vpack.i.b16 %v1266, %v1265
        %v1270 = vpack.i.b16 %v1261, %v1236
        %v1271 = vshrl.u32 %v1236, 16
        %v1272 = vshrl.u32 %v1261, 16
        %v1273 = vpack.i.b16 %v1272, %v1271
        %vm1274 = vcmask 261120
        %v1276 = vsel %vm1274, %v926, 0
        %v1279 = vsel %vm1274, %v1095, 0
        %1281 = vmatprep.subr.bf16.mxu0 0
        %1282 = vmatpush1.bf16.xpose.msra.mxu0 0
        %1283 = vmatprep.subr.bf16.mxu0 0
        %1284 = vmatpush1.bf16.xpose.msra.mxu0 0
        %1285 = vmatprep.subr.bf16.mxu0 0
        %1286 = vmatpush1.bf16.xpose.msra.mxu0 0
        %1287 = vmatprep.subr.bf16.mxu0 0
        %1288 = vmatpush1.bf16.xpose.msra.mxu0 0
        %1289 = vmatprep.subr.bf16.mxu0 0
        %1290 = vmatpush1.bf16.xpose.msra.mxu0 0
        %1291 = vmatprep.subr.bf16.mxu0 0
        %1292 = vmatpush1.bf16.xpose.msra.mxu0 0
        %1293 = vmatprep.subr.bf16.mxu0 0
        %1294 = vmatpush1.bf16.xpose.msra.mxu0 0
        %1295 = vmatprep.subr.bf16.mxu0 0
        %1296 = vmatpush1.bf16.xpose.msra.mxu0 %v1279
        %1297 = vmatprep.subr.bf16.mxu0 0
        %1298 = vmatpush2.bf16.xpose.msra.mxu0 0
        %1299 = vmatprep.subr.bf16.mxu0 0
        %1300 = vmatpush2.bf16.xpose.msra.mxu0 0
        %1301 = vmatprep.subr.bf16.mxu0 0
        %1302 = vmatpush2.bf16.xpose.msra.mxu0 0
        %1303 = vmatprep.subr.bf16.mxu0 0
        %1304 = vmatpush2.bf16.xpose.msra.mxu0 0
        %1305 = vmatprep.subr.bf16.mxu0 0
        %1306 = vmatpush2.bf16.xpose.msra.mxu0 0
        %1307 = vmatprep.subr.bf16.mxu0 0
        %1308 = vmatpush2.bf16.xpose.msra.mxu0 0
        %1309 = vmatprep.subr.bf16.mxu0 0
        %1310 = vmatpush2.bf16.xpose.msra.mxu0 0
        %1311 = vmatprep.subr.bf16.mxu0 0
        %1312 = vmatpush2.bf16.xpose.msra.mxu0 0
        %1313 = vmatprep.mubr.bf16.mxu0 0
        %1314 = vmatmul.mubr.bf16.gmra.mxu0 %v1276
        %v1315 = vpop.f32.mrf.mxu0
        %v1316 = vadd.f32 0.0, %v1315
        %v1317 = vpop.f32.mrf.mxu0
        %v1318 = vpop.f32.mrf.mxu0
        %v1319 = vpop.f32.mrf.mxu0
        %1320 = vdwg.mxu0
        %v1322 = vsel %vm1274, %v929, 0
        %v1325 = vsel %vm1274, %v1098, 0
        %1327 = vmatprep.subr.bf16.mxu0 0
        %1328 = vmatpush1.bf16.xpose.msra.mxu0 0
        %1329 = vmatprep.subr.bf16.mxu0 0
        %1330 = vmatpush1.bf16.xpose.msra.mxu0 0
        %1331 = vmatprep.subr.bf16.mxu0 0
        %1332 = vmatpush1.bf16.xpose.msra.mxu0 0
        %1333 = vmatprep.subr.bf16.mxu0 0
        %1334 = vmatpush1.bf16.xpose.msra.mxu0 0
        %1335 = vmatprep.subr.bf16.mxu0 0
        %1336 = vmatpush1.bf16.xpose.msra.mxu0 0
        %1337 = vmatprep.subr.bf16.mxu0 0
        %1338 = vmatpush1.bf16.xpose.msra.mxu0 0
        %1339 = vmatprep.subr.bf16.mxu0 0
        %1340 = vmatpush1.bf16.xpose.msra.mxu0 0
        %1341 = vmatprep.subr.bf16.mxu0 0
        %1342 = vmatpush1.bf16.xpose.msra.mxu0 %v1325
        %1343 = vmatprep.subr.bf16.mxu0 0
        %1344 = vmatpush2.bf16.xpose.msra.mxu0 0
        %1345 = vmatprep.subr.bf16.mxu0 0
        %1346 = vmatpush2.bf16.xpose.msra.mxu0 0
        %1347 = vmatprep.subr.bf16.mxu0 0
        %1348 = vmatpush2.bf16.xpose.msra.mxu0 0
        %1349 = vmatprep.subr.bf16.mxu0 0
        %1350 = vmatpush2.bf16.xpose.msra.mxu0 0
        %1351 = vmatprep.subr.bf16.mxu0 0
        %1352 = vmatpush2.bf16.xpose.msra.mxu0 0
        %1353 = vmatprep.subr.bf16.mxu0 0
        %1354 = vmatpush2.bf16.xpose.msra.mxu0 0
        %1355 = vmatprep.subr.bf16.mxu0 0
        %1356 = vmatpush2.bf16.xpose.msra.mxu0 0
        %1357 = vmatprep.subr.bf16.mxu0 0
        %1358 = vmatpush2.bf16.xpose.msra.mxu0 0
        %1359 = vmatprep.mubr.bf16.mxu0 0
        %1360 = vmatmul.mubr.bf16.gmra.mxu0 %v1322
        %v1361 = vpop.f32.mrf.mxu0
        %v1362 = vadd.f32 0.0, %v1361
        %v1363 = vpop.f32.mrf.mxu0
        %v1364 = vpop.f32.mrf.mxu0
        %v1365 = vpop.f32.mrf.mxu0
        %1366 = vdwg.mxu0
        %v1368 = vsel %vm1274, %v932, 0
        %v1371 = vsel %vm1274, %v1101, 0
        %1373 = vmatprep.subr.bf16.mxu0 0
        %1374 = vmatpush1.bf16.xpose.msra.mxu0 0
        %1375 = vmatprep.subr.bf16.mxu0 0
        %1376 = vmatpush1.bf16.xpose.msra.mxu0 0
        %1377 = vmatprep.subr.bf16.mxu0 0
        %1378 = vmatpush1.bf16.xpose.msra.mxu0 0
        %1379 = vmatprep.subr.bf16.mxu0 0
        %1380 = vmatpush1.bf16.xpose.msra.mxu0 0
        %1381 = vmatprep.subr.bf16.mxu0 0
        %1382 = vmatpush1.bf16.xpose.msra.mxu0 0
        %1383 = vmatprep.subr.bf16.mxu0 0
        %1384 = vmatpush1.bf16.xpose.msra.mxu0 0
        %1385 = vmatprep.subr.bf16.mxu0 0
        %1386 = vmatpush1.bf16.xpose.msra.mxu0 0
        %1387 = vmatprep.subr.bf16.mxu0 0
        %1388 = vmatpush1.bf16.xpose.msra.mxu0 %v1371
        %1389 = vmatprep.subr.bf16.mxu0 0
        %1390 = vmatpush2.bf16.xpose.msra.mxu0 0
        %1391 = vmatprep.subr.bf16.mxu0 0
        %1392 = vmatpush2.bf16.xpose.msra.mxu0 0
        %1393 = vmatprep.subr.bf16.mxu0 0
        %1394 = vmatpush2.bf16.xpose.msra.mxu0 0
        %1395 = vmatprep.subr.bf16.mxu0 0
        %1396 = vmatpush2.bf16.xpose.msra.mxu0 0
        %1397 = vmatprep.subr.bf16.mxu0 0
        %1398 = vmatpush2.bf16.xpose.msra.mxu0 0
        %1399 = vmatprep.subr.bf16.mxu0 0
        %1400 = vmatpush2.bf16.xpose.msra.mxu0 0
        %1401 = vmatprep.subr.bf16.mxu0 0
        %1402 = vmatpush2.bf16.xpose.msra.mxu0 0
        %1403 = vmatprep.subr.bf16.mxu0 0
        %1404 = vmatpush2.bf16.xpose.msra.mxu0 0
        %1405 = vmatprep.mubr.bf16.mxu0 0
        %1406 = vmatmul.mubr.bf16.gmra.mxu0 %v1368
        %v1407 = vpop.f32.mrf.mxu0
        %v1408 = vadd.f32 0.0, %v1407
        %v1409 = vpop.f32.mrf.mxu0
        %v1410 = vpop.f32.mrf.mxu0
        %v1411 = vpop.f32.mrf.mxu0
        %1412 = vdwg.mxu0
        %v1414 = vsel %vm1274, %v935, 0
        %v1417 = vsel %vm1274, %v1104, 0
        %1419 = vmatprep.subr.bf16.mxu0 0
        %1420 = vmatpush1.bf16.xpose.msra.mxu0 0
        %1421 = vmatprep.subr.bf16.mxu0 0
        %1422 = vmatpush1.bf16.xpose.msra.mxu0 0
        %1423 = vmatprep.subr.bf16.mxu0 0
        %1424 = vmatpush1.bf16.xpose.msra.mxu0 0
        %1425 = vmatprep.subr.bf16.mxu0 0
        %1426 = vmatpush1.bf16.xpose.msra.mxu0 0
        %1427 = vmatprep.subr.bf16.mxu0 0
        %1428 = vmatpush1.bf16.xpose.msra.mxu0 0
        %1429 = vmatprep.subr.bf16.mxu0 0
        %1430 = vmatpush1.bf16.xpose.msra.mxu0 0
        %1431 = vmatprep.subr.bf16.mxu0 0
        %1432 = vmatpush1.bf16.xpose.msra.mxu0 0
        %1433 = vmatprep.subr.bf16.mxu0 0
        %1434 = vmatpush1.bf16.xpose.msra.mxu0 %v1417
        %1435 = vmatprep.subr.bf16.mxu0 0
        %1436 = vmatpush2.bf16.xpose.msra.mxu0 0
        %1437 = vmatprep.subr.bf16.mxu0 0
        %1438 = vmatpush2.bf16.xpose.msra.mxu0 0
        %1439 = vmatprep.subr.bf16.mxu0 0
        %1440 = vmatpush2.bf16.xpose.msra.mxu0 0
        %1441 = vmatprep.subr.bf16.mxu0 0
        %1442 = vmatpush2.bf16.xpose.msra.mxu0 0
        %1443 = vmatprep.subr.bf16.mxu0 0
        %1444 = vmatpush2.bf16.xpose.msra.mxu0 0
        %1445 = vmatprep.subr.bf16.mxu0 0
        %1446 = vmatpush2.bf16.xpose.msra.mxu0 0
        %1447 = vmatprep.subr.bf16.mxu0 0
        %1448 = vmatpush2.bf16.xpose.msra.mxu0 0
        %1449 = vmatprep.subr.bf16.mxu0 0
        %1450 = vmatpush2.bf16.xpose.msra.mxu0 0
        %1451 = vmatprep.mubr.bf16.mxu0 0
        %1452 = vmatmul.mubr.bf16.gmra.mxu0 %v1414
        %v1453 = vpop.f32.mrf.mxu0
        %v1454 = vadd.f32 0.0, %v1453
        %v1455 = vpop.f32.mrf.mxu0
        %v1456 = vpop.f32.mrf.mxu0
        %v1457 = vpop.f32.mrf.mxu0
        %1458 = vdwg.mxu0
        %vm1459 = vcmask 64512
        %v1460 = vsel %vm1459, %v1316, -inf
        %1461 = vmax.xlane.f32.xlu0 %v1460
        %v1462 = vpop.xlane.xlu0 %1461
        %v1463 = vsel %vm1459, %v1362, -inf
        %1464 = vmax.xlane.f32.xlu0 %v1463
        %v1465 = vpop.xlane.xlu0 %1464
        %v1466 = vsel %vm1459, %v1408, -inf
        %1467 = vmax.xlane.f32.xlu0 %v1466
        %v1468 = vpop.xlane.xlu0 %1467
        %v1469 = vsel %vm1459, %v1454, -inf
        %1470 = vmax.xlane.f32.xlu0 %v1469
        %v1471 = vpop.xlane.xlu0 %1470
        %v1472 = vsub.f32 %v1316, %v1462
        %v1473 = vsub.f32 %v1362, %v1465
        %v1474 = vsub.f32 %v1408, %v1468
        %v1475 = vsub.f32 %v1454, %v1471
        %v1476 = vmul.f32 %v1472, 1.442695
        %v1477 = vpow.pop %v1476
        %v1478 = vmul.f32 %v1473, 1.442695
        %v1479 = vpow.pop %v1478
        %v1480 = vmul.f32 %v1474, 1.442695
        %v1481 = vpow.pop %v1480
        %v1482 = vmul.f32 %v1475, 1.442695
        %v1483 = vpow.pop %v1482
        %v1484 = vsel %vm1459, %v1477, 0.0
        %1485 = vadd.xlane.f32.xlu0 %v1484
        %v1486 = vpop.xlane.xlu0 %1485
        %v1487 = vsel %vm1459, %v1479, 0.0
        %1488 = vadd.xlane.f32.xlu0 %v1487
        %v1489 = vpop.xlane.xlu0 %1488
        %v1490 = vsel %vm1459, %v1481, 0.0
        %1491 = vadd.xlane.f32.xlu0 %v1490
        %v1492 = vpop.xlane.xlu0 %1491
        %v1493 = vsel %vm1459, %v1483, 0.0
        %1494 = vadd.xlane.f32.xlu0 %v1493
        %v1495 = vpop.xlane.xlu0 %1494
        %v1496 = vrcp.pop %v1486
        %v1497 = vrcp.pop %v1489
        %v1498 = vrcp.pop %v1492
        %v1499 = vrcp.pop %v1495
        %v1500 = vmul.f32 %v1477, %v1496
        %v1501 = vmul.f32 %v1479, %v1497
        %v1502 = vmul.f32 %v1481, %v1498
        %v1503 = vmul.f32 %v1483, %v1499
        %v1504 = vpack.c.bf16 %v1500, %v1500
        %v1505 = vpack.c.bf16 %v1501, %v1501
        %v1506 = vpack.c.bf16 %v1502, %v1502
        %v1507 = vpack.c.bf16 %v1503, %v1503
        %v1509 = vsel %vm1459, %v1504, 0
        %vm1511 = vcmask 1043456
        %v1513 = vsel %vm1511, %v1264, 0
        %1515 = vmatprep.subr.bf16.mxu0 0
        %1516 = vmatpush1.bf16.msra.mxu0 0
        %1517 = vmatprep.subr.bf16.mxu0 0
        %1518 = vmatpush1.bf16.msra.mxu0 0
        %1519 = vmatprep.subr.bf16.mxu0 0
        %1520 = vmatpush1.bf16.msra.mxu0 0
        %1521 = vmatprep.subr.bf16.mxu0 0
        %1522 = vmatpush1.bf16.msra.mxu0 0
        %1523 = vmatprep.subr.bf16.mxu0 0
        %1524 = vmatpush1.bf16.msra.mxu0 0
        %1525 = vmatprep.subr.bf16.mxu0 0
        %1526 = vmatpush1.bf16.msra.mxu0 0
        %1527 = vmatprep.subr.bf16.mxu0 0
        %1528 = vmatpush1.bf16.msra.mxu0 0
        %1529 = vmatprep.subr.bf16.mxu0 0
        %1530 = vmatpush1.bf16.msra.mxu0 %v1513
        %1531 = vmatprep.subr.bf16.mxu0 0
        %1532 = vmatpush2.bf16.msra.mxu0 0
        %1533 = vmatprep.subr.bf16.mxu0 0
        %1534 = vmatpush2.bf16.msra.mxu0 0
        %1535 = vmatprep.subr.bf16.mxu0 0
        %1536 = vmatpush2.bf16.msra.mxu0 0
        %1537 = vmatprep.subr.bf16.mxu0 0
        %1538 = vmatpush2.bf16.msra.mxu0 0
        %1539 = vmatprep.subr.bf16.mxu0 0
        %1540 = vmatpush2.bf16.msra.mxu0 0
        %1541 = vmatprep.subr.bf16.mxu0 0
        %1542 = vmatpush2.bf16.msra.mxu0 0
        %1543 = vmatprep.subr.bf16.mxu0 0
        %1544 = vmatpush2.bf16.msra.mxu0 0
        %1545 = vmatprep.subr.bf16.mxu0 0
        %1546 = vmatpush2.bf16.msra.mxu0 0
        %1547 = vmatprep.mubr.bf16.mxu0 0
        %1548 = vmatmul.mubr.bf16.gmra.mxu0 %v1509
        %v1549 = vpop.f32.mrf.mxu0
        %v1550 = vadd.f32 0.0, %v1549
        %v1551 = vpop.f32.mrf.mxu0
        %v1552 = vpop.f32.mrf.mxu0
        %v1553 = vpop.f32.mrf.mxu0
        %1554 = vdwg.mxu0
        %v1556 = vsel %vm1459, %v1505, 0
        %v1559 = vsel %vm1511, %v1267, 0
        %1561 = vmatprep.subr.bf16.mxu0 0
        %1562 = vmatpush1.bf16.msra.mxu0 0
        %1563 = vmatprep.subr.bf16.mxu0 0
        %1564 = vmatpush1.bf16.msra.mxu0 0
        %1565 = vmatprep.subr.bf16.mxu0 0
        %1566 = vmatpush1.bf16.msra.mxu0 0
        %1567 = vmatprep.subr.bf16.mxu0 0
        %1568 = vmatpush1.bf16.msra.mxu0 0
        %1569 = vmatprep.subr.bf16.mxu0 0
        %1570 = vmatpush1.bf16.msra.mxu0 0
        %1571 = vmatprep.subr.bf16.mxu0 0
        %1572 = vmatpush1.bf16.msra.mxu0 0
        %1573 = vmatprep.subr.bf16.mxu0 0
        %1574 = vmatpush1.bf16.msra.mxu0 0
        %1575 = vmatprep.subr.bf16.mxu0 0
        %1576 = vmatpush1.bf16.msra.mxu0 %v1559
        %1577 = vmatprep.subr.bf16.mxu0 0
        %1578 = vmatpush2.bf16.msra.mxu0 0
        %1579 = vmatprep.subr.bf16.mxu0 0
        %1580 = vmatpush2.bf16.msra.mxu0 0
        %1581 = vmatprep.subr.bf16.mxu0 0
        %1582 = vmatpush2.bf16.msra.mxu0 0
        %1583 = vmatprep.subr.bf16.mxu0 0
        %1584 = vmatpush2.bf16.msra.mxu0 0
        %1585 = vmatprep.subr.bf16.mxu0 0
        %1586 = vmatpush2.bf16.msra.mxu0 0
        %1587 = vmatprep.subr.bf16.mxu0 0
        %1588 = vmatpush2.bf16.msra.mxu0 0
        %1589 = vmatprep.subr.bf16.mxu0 0
        %1590 = vmatpush2.bf16.msra.mxu0 0
        %1591 = vmatprep.subr.bf16.mxu0 0
        %1592 = vmatpush2.bf16.msra.mxu0 0
        %1593 = vmatprep.mubr.bf16.mxu0 0
        %1594 = vmatmul.mubr.bf16.gmra.mxu0 %v1556
        %v1595 = vpop.f32.mrf.mxu0
        %v1596 = vadd.f32 0.0, %v1595
        %v1597 = vpop.f32.mrf.mxu0
        %v1598 = vpop.f32.mrf.mxu0
        %v1599 = vpop.f32.mrf.mxu0
        %1600 = vdwg.mxu0
        %v1602 = vsel %vm1459, %v1506, 0
        %v1605 = vsel %vm1511, %v1270, 0
        %1607 = vmatprep.subr.bf16.mxu0 0
        %1608 = vmatpush1.bf16.msra.mxu0 0
        %1609 = vmatprep.subr.bf16.mxu0 0
        %1610 = vmatpush1.bf16.msra.mxu0 0
        %1611 = vmatprep.subr.bf16.mxu0 0
        %1612 = vmatpush1.bf16.msra.mxu0 0
        %1613 = vmatprep.subr.bf16.mxu0 0
        %1614 = vmatpush1.bf16.msra.mxu0 0
        %1615 = vmatprep.subr.bf16.mxu0 0
        %1616 = vmatpush1.bf16.msra.mxu0 0
        %1617 = vmatprep.subr.bf16.mxu0 0
        %1618 = vmatpush1.bf16.msra.mxu0 0
        %1619 = vmatprep.subr.bf16.mxu0 0
        %1620 = vmatpush1.bf16.msra.mxu0 0
        %1621 = vmatprep.subr.bf16.mxu0 0
        %1622 = vmatpush1.bf16.msra.mxu0 %v1605
        %1623 = vmatprep.subr.bf16.mxu0 0
        %1624 = vmatpush2.bf16.msra.mxu0 0
        %1625 = vmatprep.subr.bf16.mxu0 0
        %1626 = vmatpush2.bf16.msra.mxu0 0
        %1627 = vmatprep.subr.bf16.mxu0 0
        %1628 = vmatpush2.bf16.msra.mxu0 0
        %1629 = vmatprep.subr.bf16.mxu0 0
        %1630 = vmatpush2.bf16.msra.mxu0 0
        %1631 = vmatprep.subr.bf16.mxu0 0
        %1632 = vmatpush2.bf16.msra.mxu0 0
        %1633 = vmatprep.subr.bf16.mxu0 0
        %1634 = vmatpush2.bf16.msra.mxu0 0
        %1635 = vmatprep.subr.bf16.mxu0 0
        %1636 = vmatpush2.bf16.msra.mxu0 0
        %1637 = vmatprep.subr.bf16.mxu0 0
        %1638 = vmatpush2.bf16.msra.mxu0 0
        %1639 = vmatprep.mubr.bf16.mxu0 0
        %1640 = vmatmul.mubr.bf16.gmra.mxu0 %v1602
        %v1641 = vpop.f32.mrf.mxu0
        %v1642 = vadd.f32 0.0, %v1641
        %v1643 = vpop.f32.mrf.mxu0
        %v1644 = vpop.f32.mrf.mxu0
        %v1645 = vpop.f32.mrf.mxu0
        %1646 = vdwg.mxu0
        %v1648 = vsel %vm1459, %v1507, 0
        %v1651 = vsel %vm1511, %v1273, 0
        %1653 = vmatprep.subr.bf16.mxu0 0
        %1654 = vmatpush1.bf16.msra.mxu0 0
        %1655 = vmatprep.subr.bf16.mxu0 0
        %1656 = vmatpush1.bf16.msra.mxu0 0
        %1657 = vmatprep.subr.bf16.mxu0 0
        %1658 = vmatpush1.bf16.msra.mxu0 0
        %1659 = vmatprep.subr.bf16.mxu0 0
        %1660 = vmatpush1.bf16.msra.mxu0 0
        %1661 = vmatprep.subr.bf16.mxu0 0
        %1662 = vmatpush1.bf16.msra.mxu0 0
        %1663 = vmatprep.subr.bf16.mxu0 0
        %1664 = vmatpush1.bf16.msra.mxu0 0
        %1665 = vmatprep.subr.bf16.mxu0 0
        %1666 = vmatpush1.bf16.msra.mxu0 0
        %1667 = vmatprep.subr.bf16.mxu0 0
        %1668 = vmatpush1.bf16.msra.mxu0 %v1651
        %1669 = vmatprep.subr.bf16.mxu0 0
        %1670 = vmatpush2.bf16.msra.mxu0 0
        %1671 = vmatprep.subr.bf16.mxu0 0
        %1672 = vmatpush2.bf16.msra.mxu0 0
        %1673 = vmatprep.subr.bf16.mxu0 0
        %1674 = vmatpush2.bf16.msra.mxu0 0
        %1675 = vmatprep.subr.bf16.mxu0 0
        %1676 = vmatpush2.bf16.msra.mxu0 0
        %1677 = vmatprep.subr.bf16.mxu0 0
        %1678 = vmatpush2.bf16.msra.mxu0 0
        %1679 = vmatprep.subr.bf16.mxu0 0
        %1680 = vmatpush2.bf16.msra.mxu0 0
        %1681 = vmatprep.subr.bf16.mxu0 0
        %1682 = vmatpush2.bf16.msra.mxu0 0
        %1683 = vmatprep.subr.bf16.mxu0 0
        %1684 = vmatpush2.bf16.msra.mxu0 0
        %1685 = vmatprep.mubr.bf16.mxu0 0
        %1686 = vmatmul.mubr.bf16.gmra.mxu0 %v1648
        %v1687 = vpop.f32.mrf.mxu0
        %v1688 = vadd.f32 0.0, %v1687
        %v1689 = vpop.f32.mrf.mxu0
        %v1690 = vpop.f32.mrf.mxu0
        %v1691 = vpop.f32.mrf.mxu0
        %1692 = vdwg.mxu0
        %v1693 = vpack.c.bf16 %v1550, %v1550
        %v1695 = vunpack.c.l.s4 1983009808
        %v1696 = vunpack.c.0.s8 %v1695
        %v1697 = vlaneseq
        %v1698 = vshrl.u32 %v1697, 7
        %v1699 = vsub.s32 %v1696, %v1698
        %v1700 = vrot.slane %v1693, %v1699
        %v1701 = vpack.c.bf16 %v1642, %v1642
        %v1703 = vunpack.c.l.s4 1983009808
        %v1704 = vunpack.c.0.s8 %v1703
        %v1705 = vlaneseq
        %v1706 = vshrl.u32 %v1705, 7
        %v1707 = vsub.s32 %v1704, %v1706
        %v1708 = vrot.slane %v1701, %v1707
        %v1709 = vcombine.low %v1700, %v1708
        %v1710 = vcombine.high %v1700, %v1708
        %v1712 = vunpack.c.l.s4 1934713408
        %v1713 = vunpack.c.0.s8 %v1712
        %v1714 = vlaneseq
        %v1715 = vshrl.u32 %v1714, 7
        %v1716 = vsub.s32 %v1713, %v1715
        %v1717 = vrot.slane %v1709, %v1716
        %v1719 = vunpack.c.l.s4 1934713408
        %v1720 = vunpack.c.0.s8 %v1719
        %v1721 = vlaneseq
        %v1722 = vshrl.u32 %v1721, 7
        %v1723 = vsub.s32 %v1720, %v1722
        %v1724 = vrot.slane %v1710, %v1723
        %v1725 = vcombine.high %v1717, 0
        %v1726 = vcombine.high %v1724, 0
        %v1727 = vpack.c.bf16 %v1596, %v1596
        %v1729 = vunpack.c.l.s4 1983009808
        %v1730 = vunpack.c.0.s8 %v1729
        %v1731 = vlaneseq
        %v1732 = vshrl.u32 %v1731, 7
        %v1733 = vsub.s32 %v1730, %v1732
        %v1734 = vrot.slane %v1727, %v1733
        %v1735 = vpack.c.bf16 %v1688, %v1688
        %v1737 = vunpack.c.l.s4 1983009808
        %v1738 = vunpack.c.0.s8 %v1737
        %v1739 = vlaneseq
        %v1740 = vshrl.u32 %v1739, 7
        %v1741 = vsub.s32 %v1738, %v1740
        %v1742 = vrot.slane %v1735, %v1741
        %v1743 = vcombine.low %v1734, %v1742
        %v1744 = vcombine.high %v1734, %v1742
        %v1746 = vunpack.c.l.s4 1934713408
        %v1747 = vunpack.c.0.s8 %v1746
        %v1748 = vlaneseq
        %v1749 = vshrl.u32 %v1748, 7
        %v1750 = vsub.s32 %v1747, %v1749
        %v1751 = vrot.slane %v1743, %v1750
        %v1753 = vunpack.c.l.s4 1934713408
        %v1754 = vunpack.c.0.s8 %v1753
        %v1755 = vlaneseq
        %v1756 = vshrl.u32 %v1755, 7
        %v1757 = vsub.s32 %v1754, %v1756
        %v1758 = vrot.slane %v1744, %v1757
        %v1759 = vcombine.high %v1751, 0
        %v1760 = vcombine.high %v1758, 0
        %v1763 = vpack.i.b16 %v1751, %v1717
        %v1765 = vshrl.u32 %v1717, 16
        %v1766 = vshrl.u32 %v1751, 16
        %v1767 = vpack.i.b16 %v1766, %v1765
        %v1771 = vpack.i.b16 %v1759, %v1725
        %v1773 = vshrl.u32 %v1725, 16
        %v1774 = vshrl.u32 %v1759, 16
        %v1775 = vpack.i.b16 %v1774, %v1773
        %v1779 = vpack.i.b16 %v1758, %v1724
        %v1781 = vshrl.u32 %v1724, 16
        %v1782 = vshrl.u32 %v1758, 16
        %v1783 = vpack.i.b16 %v1782, %v1781
        %v1787 = vpack.i.b16 %v1760, %v1726
        %v1789 = vshrl.u32 %v1726, 16
        %v1790 = vshrl.u32 %v1760, 16
        %v1791 = vpack.i.b16 %v1790, %v1789
        %v1793 = vcombine.low %v1763, %v1779
        %v1795 = vunpack.c.l.s4 1983009808
        %v1796 = vunpack.c.0.s8 %v1795
        %v1797 = vlaneseq
        %v1798 = vshrl.u32 %v1797, 7
        %v1799 = vsub.s32 %v1796, %v1798
        %v1800 = vrot.slane %v1793, %v1799
        %v1801 = vcombine.low %v1771, %v1787
        %v1803 = vunpack.c.l.s4 1983009808
        %v1804 = vunpack.c.0.s8 %v1803
        %v1805 = vlaneseq
        %v1806 = vshrl.u32 %v1805, 7
        %v1807 = vsub.s32 %v1804, %v1806
        %v1808 = vrot.slane %v1801, %v1807
        %v1809 = vcombine.low %v1800, %v1808
        %v1811 = vunpack.c.l.s4 1934713408
        %v1812 = vunpack.c.0.s8 %v1811
        %v1813 = vlaneseq
        %v1814 = vshrl.u32 %v1813, 7
        %v1815 = vsub.s32 %v1812, %v1814
        %v1816 = vrot.slane %v1809, %v1815
        %v1817 = vcombine.high %v1816, 0
        %v1818 = vcombine.low %v1767, %v1783
        %v1820 = vunpack.c.l.s4 1983009808
        %v1821 = vunpack.c.0.s8 %v1820
        %v1822 = vlaneseq
        %v1823 = vshrl.u32 %v1822, 7
        %v1824 = vsub.s32 %v1821, %v1823
        %v1825 = vrot.slane %v1818, %v1824
        %v1826 = vcombine.low %v1775, %v1791
        %v1828 = vunpack.c.l.s4 1983009808
        %v1829 = vunpack.c.0.s8 %v1828
        %v1830 = vlaneseq
        %v1831 = vshrl.u32 %v1830, 7
        %v1832 = vsub.s32 %v1829, %v1831
        %v1833 = vrot.slane %v1826, %v1832
        %v1834 = vcombine.low %v1825, %v1833
        %v1836 = vunpack.c.l.s4 1934713408
        %v1837 = vunpack.c.0.s8 %v1836
        %v1838 = vlaneseq
        %v1839 = vshrl.u32 %v1838, 7
        %v1840 = vsub.s32 %v1837, %v1839
        %v1841 = vrot.slane %v1834, %v1840
        %v1842 = vcombine.high %v1841, 0
        %v1845 = vpack.i.b16 %v1841, %v1816
        %v1846 = vshrl.u32 %v1816, 16
        %v1847 = vshrl.u32 %v1841, 16
        %v1848 = vpack.i.b16 %v1847, %v1846
        %v1851 = vpack.i.b16 %v1842, %v1817
        %v1852 = vshrl.u32 %v1817, 16
        %v1853 = vshrl.u32 %v1842, 16
        %v1854 = vpack.i.b16 %v1853, %v1852
        %1855 = vrot.lane.b32.xlu0 %v1848, 32
        %v1856 = vpop.permute.xlu0 %1855
        %1857 = vrot.lane.b32.xlu0 %v1851, 64
        %v1858 = vpop.permute.xlu0 %1857
        %1859 = vrot.lane.b32.xlu0 %v1854, 96
        %v1860 = vpop.permute.xlu0 %1859
        %v1863 = vsel %vm1274, %v1845, %v1856
        %vm1864 = vcmask 523264
        %v1866 = vsel %vm1864, %v1863, %v1858
        %vm1867 = vcmask 785408
        %v1869 = vsel %vm1867, %v1866, %v1860
        %v1871 = vld [vmem:[%s5] sm:$0xf]
        %v1872 = vld [vmem:[%s5 + $0x4] sm:$0xf]
        %v1873 = vld [vmem:[%s5 + $0x8] sm:$0xf]
        %v1874 = vld [vmem:[%s5 + $0xc] sm:$0xf]
        %v1875 = vld [vmem:[%s5 + $0x10] sm:$0xf]
        %v1876 = vld [vmem:[%s5 + $0x14] sm:$0xf]
        %v1877 = vld [vmem:[%s5 + $0x18] sm:$0xf]
        %v1878 = vld [vmem:[%s5 + $0x1c] sm:$0xf]
        %v1879 = vld [vmem:[%s5 + $0x20] sm:$0xf]
        %v1880 = vld [vmem:[%s5 + $0x24] sm:$0xf]
        %v1881 = vld [vmem:[%s5 + $0x28] sm:$0xf]
        %v1882 = vld [vmem:[%s5 + $0x2c] sm:$0xf]
        %v1883 = vld [vmem:[%s5 + $0x30] sm:$0xf]
        %v1884 = vld [vmem:[%s5 + $0x34] sm:$0xf]
        %v1885 = vld [vmem:[%s5 + $0x38] sm:$0xf]
        %v1886 = vld [vmem:[%s5 + $0x3c] sm:$0xf]
        %v1887 = vld [vmem:[%s6] sm:$0x1]
        %v1889 = vlaneseq
        %v1890 = vshrl.u32 %v1889, 7
        %v1891 = vsub.s32 0, %v1890
        %v1892 = vrot.slane %v1887, %v1891
        %v1910 = vunpack.c.l.b16 %v1871
        %v1911 = vunpack.c.l.b16 %v1872
        %v1912 = vunpack.c.l.b16 %v1873
        %v1913 = vunpack.c.l.b16 %v1874
        %v1914 = vunpack.c.l.b16 %v1875
        %v1915 = vunpack.c.l.b16 %v1876
        %v1916 = vunpack.c.l.b16 %v1877
        %v1917 = vunpack.c.l.b16 %v1878
        %v1918 = vunpack.c.l.b16 %v1879
        %v1919 = vunpack.c.l.b16 %v1880
        %v1920 = vunpack.c.l.b16 %v1881
        %v1921 = vunpack.c.l.b16 %v1882
        %v1922 = vunpack.c.l.b16 %v1883
        %v1923 = vunpack.c.l.b16 %v1884
        %v1924 = vunpack.c.l.b16 %v1885
        %v1925 = vunpack.c.l.b16 %v1886
        %v1926 = vpack.c.b16 %v1911, %v1910
        %v1927 = vpack.c.b16 %v1913, %v1912
        %v1928 = vpack.c.b16 %v1915, %v1914
        %v1929 = vpack.c.b16 %v1917, %v1916
        %v1930 = vpack.c.b16 %v1919, %v1918
        %v1931 = vpack.c.b16 %v1921, %v1920
        %v1932 = vpack.c.b16 %v1923, %v1922
        %v1933 = vpack.c.b16 %v1925, %v1924
        %1942 = vmatprep.subr.bf16.mxu0 0
        %1943 = vmatpush1.bf16.msra.mxu0 %v1933
        %1944 = vmatprep.subr.bf16.mxu0 0
        %1945 = vmatpush1.bf16.msra.mxu0 %v1932
        %1946 = vmatprep.subr.bf16.mxu0 0
        %1947 = vmatpush1.bf16.msra.mxu0 %v1931
        %1948 = vmatprep.subr.bf16.mxu0 0
        %1949 = vmatpush1.bf16.msra.mxu0 %v1930
        %1950 = vmatprep.subr.bf16.mxu0 0
        %1951 = vmatpush1.bf16.msra.mxu0 %v1929
        %1952 = vmatprep.subr.bf16.mxu0 0
        %1953 = vmatpush1.bf16.msra.mxu0 %v1928
        %1954 = vmatprep.subr.bf16.mxu0 0
        %1955 = vmatpush1.bf16.msra.mxu0 %v1927
        %1956 = vmatprep.subr.bf16.mxu0 0
        %1957 = vmatpush1.bf16.msra.mxu0 %v1926
        %1958 = vmatprep.subr.bf16.mxu0 0
        %1959 = vmatpush2.bf16.msra.mxu0 0
        %1960 = vmatprep.subr.bf16.mxu0 0
        %1961 = vmatpush2.bf16.msra.mxu0 0
        %1962 = vmatprep.subr.bf16.mxu0 0
        %1963 = vmatpush2.bf16.msra.mxu0 0
        %1964 = vmatprep.subr.bf16.mxu0 0
        %1965 = vmatpush2.bf16.msra.mxu0 0
        %1966 = vmatprep.subr.bf16.mxu0 0
        %1967 = vmatpush2.bf16.msra.mxu0 0
        %1968 = vmatprep.subr.bf16.mxu0 0
        %1969 = vmatpush2.bf16.msra.mxu0 0
        %1970 = vmatprep.subr.bf16.mxu0 0
        %1971 = vmatpush2.bf16.msra.mxu0 0
        %1972 = vmatprep.subr.bf16.mxu0 0
        %1973 = vmatpush2.bf16.msra.mxu0 0
        %1974 = vmatprep.mubr.bf16.mxu0 0
        %1975 = vmatmul.mubr.bf16.gmra.mxu0 %v1869
        %v1976 = vpop.f32.mrf.mxu0
        %v1977 = vadd.f32 %v1892, %v1976
        %v1978 = vpop.f32.mrf.mxu0
        %v1979 = vpop.f32.mrf.mxu0
        %v1980 = vpop.f32.mrf.mxu0
        %1981 = vdwg.mxu0
        %v1982 = vadd.f32 %v506, %v1977
        %v1983 = vld [vmem:[%s7] sm:$0x1]
        %v1984 = vld [vmem:[%s8] sm:$0x1]
        %1985 = vadd.xlane.f32.xlu0 %v1982
        %v1986 = vpop.xlane.xlu0 %1985
        %v1987 = vrcp.pop 128.0
        %v1988 = vmul.f32 %v1986, %v1987
        %v1989 = vsub.f32 %v1982, %v1988
        %v1990 = vmul.f32 %v1989, %v1989
        %1991 = vadd.xlane.f32.xlu0 %v1990
        %v1992 = vpop.xlane.xlu0 %1991
        %v1993 = vmul.f32 %v1992, %v1987
        %v1994 = vadd.f32 %v1993, 1e-05
        %v1995 = vrsqrt.pop %v1994
        %v1996 = vmul.f32 %v1989, %v1995
        %v1998 = vlaneseq
        %v1999 = vshrl.u32 %v1998, 7
        %v2000 = vsub.s32 0, %v1999
        %v2001 = vrot.slane %v1983, %v2000
        %v2003 = vmul.f32 %v1996, %v2001
        %v2005 = vlaneseq
        %v2006 = vshrl.u32 %v2005, 7
        %v2007 = vsub.s32 0, %v2006
        %v2008 = vrot.slane %v1984, %v2007
        %v2010 = vadd.f32 %v2003, %v2008
        %v2011 = vpack.c.bf16 %v2010, %v2010
        %v2012 = vld [vmem:[%s9] sm:$0xff]
        %v2013 = vld [vmem:[%s9 + $0x8] sm:$0xff]
        %v2014 = vld [vmem:[%s9 + $0x10] sm:$0xff]
        %v2015 = vld [vmem:[%s9 + $0x18] sm:$0xff]
        %v2016 = vld [vmem:[%s9 + $0x20] sm:$0xff]
        %v2017 = vld [vmem:[%s9 + $0x28] sm:$0xff]
        %v2018 = vld [vmem:[%s9 + $0x30] sm:$0xff]
        %v2019 = vld [vmem:[%s9 + $0x38] sm:$0xff]
        %v2020 = vld [vmem:[%s9 + $0x40] sm:$0xff]
        %v2021 = vld [vmem:[%s9 + $0x48] sm:$0xff]
        %v2022 = vld [vmem:[%s9 + $0x50] sm:$0xff]
        %v2023 = vld [vmem:[%s9 + $0x58] sm:$0xff]
        %v2024 = vld [vmem:[%s9 + $0x60] sm:$0xff]
        %v2025 = vld [vmem:[%s9 + $0x68] sm:$0xff]
        %v2026 = vld [vmem:[%s9 + $0x70] sm:$0xff]
        %v2027 = vld [vmem:[%s9 + $0x78] sm:$0xff]
        %v2028 = vld [vmem:[%s10] sm:$0x3]
        %v2030 = vlaneseq
        %v2031 = vshrl.u32 %v2030, 7
        %v2032 = vsub.s32 0, %v2031
        %v2033 = vrot.slane %v2028, %v2032
        %v2034 = vlaneseq
        %v2035 = vshrl.u32 %v2034, 7
        %v2036 = vsub.s32 1, %v2035
        %v2037 = vrot.slane %v2028, %v2036
        %v2056 = vunpack.c.l.b16 %v2012
        %v2057 = vunpack.c.h.b16 %v2012
        %v2058 = vunpack.c.l.b16 %v2013
        %v2059 = vunpack.c.h.b16 %v2013
        %v2060 = vunpack.c.l.b16 %v2014
        %v2061 = vunpack.c.h.b16 %v2014
        %v2062 = vunpack.c.l.b16 %v2015
        %v2063 = vunpack.c.h.b16 %v2015
        %v2064 = vunpack.c.l.b16 %v2016
        %v2065 = vunpack.c.h.b16 %v2016
        %v2066 = vunpack.c.l.b16 %v2017
        %v2067 = vunpack.c.h.b16 %v2017
        %v2068 = vunpack.c.l.b16 %v2018
        %v2069 = vunpack.c.h.b16 %v2018
        %v2070 = vunpack.c.l.b16 %v2019
        %v2071 = vunpack.c.h.b16 %v2019
        %v2072 = vunpack.c.l.b16 %v2020
        %v2073 = vunpack.c.h.b16 %v2020
        %v2074 = vunpack.c.l.b16 %v2021
        %v2075 = vunpack.c.h.b16 %v2021
        %v2076 = vunpack.c.l.b16 %v2022
        %v2077 = vunpack.c.h.b16 %v2022
        %v2078 = vunpack.c.l.b16 %v2023
        %v2079 = vunpack.c.h.b16 %v2023
        %v2080 = vunpack.c.l.b16 %v2024
        %v2081 = vunpack.c.h.b16 %v2024
        %v2082 = vunpack.c.l.b16 %v2025
        %v2083 = vunpack.c.h.b16 %v2025
        %v2084 = vunpack.c.l.b16 %v2026
        %v2085 = vunpack.c.h.b16 %v2026
        %v2086 = vunpack.c.l.b16 %v2027
        %v2087 = vunpack.c.h.b16 %v2027
        %v2088 = vpack.c.b16 %v2058, %v2056
        %v2089 = vpack.c.b16 %v2059, %v2057
        %v2090 = vpack.c.b16 %v2062, %v2060
        %v2091 = vpack.c.b16 %v2063, %v2061
        %v2092 = vpack.c.b16 %v2066, %v2064
        %v2093 = vpack.c.b16 %v2067, %v2065
        %v2094 = vpack.c.b16 %v2070, %v2068
        %v2095 = vpack.c.b16 %v2071, %v2069
        %v2096 = vpack.c.b16 %v2074, %v2072
        %v2097 = vpack.c.b16 %v2075, %v2073
        %v2098 = vpack.c.b16 %v2078, %v2076
        %v2099 = vpack.c.b16 %v2079, %v2077
        %v2100 = vpack.c.b16 %v2082, %v2080
        %v2101 = vpack.c.b16 %v2083, %v2081
        %v2102 = vpack.c.b16 %v2086, %v2084
        %v2103 = vpack.c.b16 %v2087, %v2085
        %2120 = vmatprep.subr.bf16.mxu0 %v2103
        %2121 = vmatpush1.bf16.msra.mxu0 %v2102
        %2122 = vmatprep.subr.bf16.mxu0 %v2101
        %2123 = vmatpush1.bf16.msra.mxu0 %v2100
        %2124 = vmatprep.subr.bf16.mxu0 %v2099
        %2125 = vmatpush1.bf16.msra.mxu0 %v2098
        %2126 = vmatprep.subr.bf16.mxu0 %v2097
        %2127 = vmatpush1.bf16.msra.mxu0 %v2096
        %2128 = vmatprep.subr.bf16.mxu0 %v2095
        %2129 = vmatpush1.bf16.msra.mxu0 %v2094
        %2130 = vmatprep.subr.bf16.mxu0 %v2093
        %2131 = vmatpush1.bf16.msra.mxu0 %v2092
        %2132 = vmatprep.subr.bf16.mxu0 %v2091
        %2133 = vmatpush1.bf16.msra.mxu0 %v2090
        %2134 = vmatprep.subr.bf16.mxu0 %v2089
        %2135 = vmatpush1.bf16.msra.mxu0 %v2088
        %2136 = vmatprep.subr.bf16.mxu0 0
        %2137 = vmatpush2.bf16.msra.mxu0 0
        %2138 = vmatprep.subr.bf16.mxu0 0
        %2139 = vmatpush2.bf16.msra.mxu0 0
        %2140 = vmatprep.subr.bf16.mxu0 0
        %2141 = vmatpush2.bf16.msra.mxu0 0
        %2142 = vmatprep.subr.bf16.mxu0 0
        %2143 = vmatpush2.bf16.msra.mxu0 0
        %2144 = vmatprep.subr.bf16.mxu0 0
        %2145 = vmatpush2.bf16.msra.mxu0 0
        %2146 = vmatprep.subr.bf16.mxu0 0
        %2147 = vmatpush2.bf16.msra.mxu0 0
        %2148 = vmatprep.subr.bf16.mxu0 0
        %2149 = vmatpush2.bf16.msra.mxu0 0
        %2150 = vmatprep.subr.bf16.mxu0 0
        %2151 = vmatpush2.bf16.msra.mxu0 0
        %2152 = vmatprep.mubr.bf16.mxu0 0
        %2153 = vmatmul.mubr.bf16.gmra.mxu0 %v2011
        %v2154 = vpop.f32.mrf.mxu0
        %v2155 = vadd.f32 %v2033, %v2154
        %v2156 = vpop.f32.mrf.mxu0
        %v2157 = vadd.f32 %v2037, %v2156
        %v2158 = vpop.f32.mrf.mxu0
        %v2159 = vpop.f32.mrf.mxu0
        %2160 = vdwg.mxu0
        %v2161 = vmax.f32 %v2155, 0.0
        %v2162 = vmax.f32 %v2157, 0.0
        %v2163 = vpack.c.bf16 %v2161, %v2161
        %v2164 = vpack.c.bf16 %v2162, %v2162
        %v2165 = vld [vmem:[%s11] sm:$0xf]
        %v2166 = vld [vmem:[%s11 + $0x4] sm:$0xf]
        %v2167 = vld [vmem:[%s11 + $0x8] sm:$0xf]
        %v2168 = vld [vmem:[%s11 + $0xc] sm:$0xf]
        %v2169 = vld [vmem:[%s11 + $0x10] sm:$0xf]
        %v2170 = vld [vmem:[%s11 + $0x14] sm:$0xf]
        %v2171 = vld [vmem:[%s11 + $0x18] sm:$0xf]
        %v2172 = vld [vmem:[%s11 + $0x1c] sm:$0xf]
        %v2173 = vld [vmem:[%s11 + $0x20] sm:$0xf]
        %v2174 = vld [vmem:[%s11 + $0x24] sm:$0xf]
        %v2175 = vld [vmem:[%s11 + $0x28] sm:$0xf]
        %v2176 = vld [vmem:[%s11 + $0x2c] sm:$0xf]
        %v2177 = vld [vmem:[%s11 + $0x30] sm:$0xf]
        %v2178 = vld [vmem:[%s11 + $0x34] sm:$0xf]
        %v2179 = vld [vmem:[%s11 + $0x38] sm:$0xf]
        %v2180 = vld [vmem:[%s11 + $0x3c] sm:$0xf]
        %v2181 = vld [vmem:[%s11 + $0x40] sm:$0xf]
        %v2182 = vld [vmem:[%s11 + $0x44] sm:$0xf]
        %v2183 = vld [vmem:[%s11 + $0x48] sm:$0xf]
        %v2184 = vld [vmem:[%s11 + $0x4c] sm:$0xf]
        %v2185 = vld [vmem:[%s11 + $0x50] sm:$0xf]
        %v2186 = vld [vmem:[%s11 + $0x54] sm:$0xf]
        %v2187 = vld [vmem:[%s11 + $0x58] sm:$0xf]
        %v2188 = vld [vmem:[%s11 + $0x5c] sm:$0xf]
        %v2189 = vld [vmem:[%s11 + $0x60] sm:$0xf]
        %v2190 = vld [vmem:[%s11 + $0x64] sm:$0xf]
        %v2191 = vld [vmem:[%s11 + $0x68] sm:$0xf]
        %v2192 = vld [vmem:[%s11 + $0x6c] sm:$0xf]
        %v2193 = vld [vmem:[%s11 + $0x70] sm:$0xf]
        %v2194 = vld [vmem:[%s11 + $0x74] sm:$0xf]
        %v2195 = vld [vmem:[%s11 + $0x78] sm:$0xf]
        %v2196 = vld [vmem:[%s11 + $0x7c] sm:$0xf]
        %v2197 = vld [vmem:[%s12] sm:$0x1]
        %v2199 = vlaneseq
        %v2200 = vshrl.u32 %v2199, 7
        %v2201 = vsub.s32 0, %v2200
        %v2202 = vrot.slane %v2197, %v2201
        %v2236 = vunpack.c.l.b16 %v2165
        %v2237 = vunpack.c.l.b16 %v2166
        %v2238 = vunpack.c.l.b16 %v2167
        %v2239 = vunpack.c.l.b16 %v2168
        %v2240 = vunpack.c.l.b16 %v2169
        %v2241 = vunpack.c.l.b16 %v2170
        %v2242 = vunpack.c.l.b16 %v2171
        %v2243 = vunpack.c.l.b16 %v2172
        %v2244 = vunpack.c.l.b16 %v2173
        %v2245 = vunpack.c.l.b16 %v2174
        %v2246 = vunpack.c.l.b16 %v2175
        %v2247 = vunpack.c.l.b16 %v2176
        %v2248 = vunpack.c.l.b16 %v2177
        %v2249 = vunpack.c.l.b16 %v2178
        %v2250 = vunpack.c.l.b16 %v2179
        %v2251 = vunpack.c.l.b16 %v2180
        %v2252 = vunpack.c.l.b16 %v2181
        %v2253 = vunpack.c.l.b16 %v2182
        %v2254 = vunpack.c.l.b16 %v2183
        %v2255 = vunpack.c.l.b16 %v2184
        %v2256 = vunpack.c.l.b16 %v2185
        %v2257 = vunpack.c.l.b16 %v2186
        %v2258 = vunpack.c.l.b16 %v2187
        %v2259 = vunpack.c.l.b16 %v2188
        %v2260 = vunpack.c.l.b16 %v2189
        %v2261 = vunpack.c.l.b16 %v2190
        %v2262 = vunpack.c.l.b16 %v2191
        %v2263 = vunpack.c.l.b16 %v2192
        %v2264 = vunpack.c.l.b16 %v2193
        %v2265 = vunpack.c.l.b16 %v2194
        %v2266 = vunpack.c.l.b16 %v2195
        %v2267 = vunpack.c.l.b16 %v2196
        %v2268 = vpack.c.b16 %v2237, %v2236
        %v2269 = vpack.c.b16 %v2239, %v2238
        %v2270 = vpack.c.b16 %v2241, %v2240
        %v2271 = vpack.c.b16 %v2243, %v2242
        %v2272 = vpack.c.b16 %v2245, %v2244
        %v2273 = vpack.c.b16 %v2247, %v2246
        %v2274 = vpack.c.b16 %v2249, %v2248
        %v2275 = vpack.c.b16 %v2251, %v2250
        %v2276 = vpack.c.b16 %v2253, %v2252
        %v2277 = vpack.c.b16 %v2255, %v2254
        %v2278 = vpack.c.b16 %v2257, %v2256
        %v2279 = vpack.c.b16 %v2259, %v2258
        %v2280 = vpack.c.b16 %v2261, %v2260
        %v2281 = vpack.c.b16 %v2263, %v2262
        %v2282 = vpack.c.b16 %v2265, %v2264
        %v2283 = vpack.c.b16 %v2267, %v2266
        %2300 = vmatprep.subr.bf16.mxu0 0
        %2301 = vmatpush1.bf16.msra.mxu0 %v2275
        %2302 = vmatprep.subr.bf16.mxu0 0
        %2303 = vmatpush1.bf16.msra.mxu0 %v2274
        %2304 = vmatprep.subr.bf16.mxu0 0
        %2305 = vmatpush1.bf16.msra.mxu0 %v2273
        %2306 = vmatprep.subr.bf16.mxu0 0
        %2307 = vmatpush1.bf16.msra.mxu0 %v2272
        %2308 = vmatprep.subr.bf16.mxu0 0
        %2309 = vmatpush1.bf16.msra.mxu0 %v2271
        %2310 = vmatprep.subr.bf16.mxu0 0
        %2311 = vmatpush1.bf16.msra.mxu0 %v2270
        %2312 = vmatprep.subr.bf16.mxu0 0
        %2313 = vmatpush1.bf16.msra.mxu0 %v2269
        %2314 = vmatprep.subr.bf16.mxu0 0
        %2315 = vmatpush1.bf16.msra.mxu0 %v2268
        %2316 = vmatprep.subr.bf16.mxu0 0
        %2317 = vmatpush2.bf16.msra.mxu0 %v2283
        %2318 = vmatprep.subr.bf16.mxu0 0
        %2319 = vmatpush2.bf16.msra.mxu0 %v2282
        %2320 = vmatprep.subr.bf16.mxu0 0
        %2321 = vmatpush2.bf16.msra.mxu0 %v2281
        %2322 = vmatprep.subr.bf16.mxu0 0
        %2323 = vmatpush2.bf16.msra.mxu0 %v2280
        %2324 = vmatprep.subr.bf16.mxu0 0
        %2325 = vmatpush2.bf16.msra.mxu0 %v2279
        %2326 = vmatprep.subr.bf16.mxu0 0
        %2327 = vmatpush2.bf16.msra.mxu0 %v2278
        %2328 = vmatprep.subr.bf16.mxu0 0
        %2329 = vmatpush2.bf16.msra.mxu0 %v2277
        %2330 = vmatprep.subr.bf16.mxu0 0
        %2331 = vmatpush2.bf16.msra.mxu0 %v2276
        %2332 = vmatprep.mubr.bf16.mxu0 %v2164
        %2333 = vmatmul.mubr.bf16.gmra.mxu0 %v2163
        %v2334 = vpop.f32.mrf.mxu0
        %v2335 = vadd.f32 %v2202, %v2334
        %v2336 = vpop.f32.mrf.mxu0
        %v2337 = vpop.f32.mrf.mxu0
        %v2338 = vpop.f32.mrf.mxu0
        %2339 = vdwg.mxu0
        %v2340 = vadd.f32 %v2010, %v2335
        %v2341 = vld [vmem:[%s13] sm:$0x1]
        %v2342 = vld [vmem:[%s14] sm:$0x1]
        %2343 = vadd.xlane.f32.xlu0 %v2340
        %v2344 = vpop.xlane.xlu0 %2343
        %v2345 = vmul.f32 %v2344, %v1987
        %v2346 = vsub.f32 %v2340, %v2345
        %v2347 = vmul.f32 %v2346, %v2346
        %2348 = vadd.xlane.f32.xlu0 %v2347
        %v2349 = vpop.xlane.xlu0 %2348
        %v2350 = vmul.f32 %v2349, %v1987
        %v2351 = vadd.f32 %v2350, 1e-05
        %v2352 = vrsqrt.pop %v2351
        %v2353 = vmul.f32 %v2346, %v2352
        %v2355 = vlaneseq
        %v2356 = vshrl.u32 %v2355, 7
        %v2357 = vsub.s32 0, %v2356
        %v2358 = vrot.slane %v2341, %v2357
        %v2360 = vmul.f32 %v2353, %v2358
        %v2362 = vlaneseq
        %v2363 = vshrl.u32 %v2362, 7
        %v2364 = vsub.s32 0, %v2363
        %v2365 = vrot.slane %v2342, %v2364
        %v2367 = vadd.f32 %v2360, %v2365
        %2368 = vst [vmem:[%s499] sm:$0xff] %v2367
        %s2369 = sand.u32 %s371, 1
        %s2370 = scalar_lea.sflag [#allocation3], %s2369
        %s2371 = sand.u32 %s371, 1
        %s2372 = smul.addr %s2371, 8
        %s2373 = scalar_lea.vmem [#allocation2], %s2372
        // Predicated region
        $region81: #{weather_encoder.3} parent=79 // pred_check
          %p2374 = pneg %p381
        $region82: #{weather_encoder.3} parent=79 // pred_check_branch
          %2376 = sbr.rel (%p2374) target = $region84
        $region83: #{weather_encoder.3} parent=79 // pred_region
          %s2378 = ssub.s32 128, 128
          %2379 = vsyncadd %s2370, %s2378
          %s2380 = sadd.s32 %s34, %s33
          %s2381 = smul.addr %s2380, 128
          %s2382 = scalar_lea.hbm %s15, %s2381
          %s2384 = sshll.u32 %s2373, 4
          %s2385 = int_to_ptr.vmem [resolvable:$true] %s2384
          %2387 = dma.vmem_to_hbm [thread:$0]  %s2385, 128, %s2382, %s2370
        $region84: #{weather_encoder.3} parent=79 // pred_fallthru
          _
      $region80: #{weather_encoder.3} parent=5 // pred_fallthru
        _
      %p2388 = scmp.le.s32.totalorder 2, %s24
      // Predicated region
      $region85: #{weather_encoder.3} parent=5 // pred_check
        %p2389 = pneg %p2388
      $region86: #{weather_encoder.3} parent=5 // pred_check_branch
        %2391 = sbr.rel (%p2389) target = $region88
      $region87: #{weather_encoder.3} parent=5 // pred_region
        %s2392 = ssub.s32 %s24, 2
        // Predicated region
        $region89: #{weather_encoder.3} parent=87 // pred_check
          %p2393 = pneg %p387
        $region90: #{weather_encoder.3} parent=87 // pred_check_branch
          %2395 = sbr.rel (%p2393) target = $region92
        $region91: #{weather_encoder.3} parent=87 // pred_region
          %s2396 = sand.u32 %s372, 1
          %s2397 = scalar_lea.sflag [#allocation3], %s2396
          %s2398 = sand.u32 %s372, 1
          %s2399 = smul.addr %s2398, 8
          %s2400 = scalar_lea.vmem [#allocation2], %s2399
          %2401 = dma.done %s2397, 128
        $region92: #{weather_encoder.3} parent=87 // pred_fallthru
          _
      $region88: #{weather_encoder.3} parent=5 // pred_fallthru
        _
    $region6: #{weather_encoder.3} parent=1 // loop_footer
      %s28 = sadd.s32 1, %s24
    $region7: #{weather_encoder.3} parent=1 // loop_footer_branch
      %23 = sbr.rel target = $region3
    $region8: #{weather_encoder.3} parent=1 // loop_exit
      _
    %2402 = vsyncpa [#allocation3], 1
    %s2403 = scalar_lea.sflag [#allocation3], 1
    %2404 = vsyncpa %s2403, 1

</llo_original>
